<compile_context>
chip_gen: v7x
topology: tpu7x:2x2x1
jax: 0.10.0
libtpu: 0.0.40
codegen_flags: <defaults>
</compile_context>

<pallas_src>
import jax
import jax.numpy as jnp
from jax.experimental import pallas as pl
from jax.experimental.pallas import tpu as pltpu


# ----------------------------------------------------------------------------
# Pallas kernel: one batch *block* (G sequences) of additive attention
# ----------------------------------------------------------------------------
def _attention_kernel(enc_ref, dec_ref, wh_ref, ws_ref, bhs_ref, wv_ref,
                      out_ref):
    G, S, H = enc_ref.shape
    T = dec_ref.shape[1]
    A = wh_ref.shape[1]

    # ---- batched projections: feed the MXU G*S / G*T rows in one call each ----
    enc2 = enc_ref[...].reshape(G * S, H)
    dec2 = dec_ref[...].reshape(G * T, H)
    a_enc = (jnp.dot(enc2, wh_ref[...], preferred_element_type=jnp.float32)
             + bhs_ref[0:1, :]).reshape(G, S, A)                      # (G, S, A)
    a_dec = (jnp.dot(dec2, ws_ref[...], preferred_element_type=jnp.float32)
             + bhs_ref[1:2, :]).reshape(G, T, A)                      # (G, T, A)
    # TODO(synk): at A >= 128 fuse the two projections into one MXU call
    # (LHS = concat rows, RHS = concat([Wh, Ws], axis=1)).

    wv = wv_ref[0, :]                                                 # (A,) row, lane layout

    # ---- energy + softmax, fully vectorized over the block ----
    # b_v omitted: it is constant along the softmax axis and cancels exactly.
    e = jnp.tanh(a_dec[:, :, None, :] + a_enc[:, None, :, :])         # (G, T, S, A)
    energy = jnp.sum(e * wv, axis=-1)                                 # (G, T, S)
    # TODO(synk): at production A, do this reduction as (G*T*S, A) @ w_v on the
    # MXU instead of a cross-lane XLU sum.

    energy = energy - jnp.max(energy, axis=-1, keepdims=True)
    p = jnp.exp(energy)
    inv = pl.reciprocal(jnp.sum(p, axis=-1, keepdims=True), approx=False)
    attn = p * inv                                                    # (G, T, S)

    # ---- single lane-dense store for the whole block ----
    out_ref[...] = attn.reshape(1, 1, G * T * S)


# ----------------------------------------------------------------------------
# Wrapper
# ----------------------------------------------------------------------------
def _tensorcores_per_chip():
    """2 on v7x (dual TensorCore), 1 on v5e/v6e (and as a safe fallback)."""
    try:
        kind = str(jax.devices()[0].device_kind).lower()
    except Exception:
        return 1
    return 2 if "v7" in kind else 1


def attention_forward(encoder_outputs, decoder_hidden, params):
    """Mirrors Attention.forward.

    encoder_outputs: [B, slen, H]   decoder_hidden: [B, tlen, H]
    returns attention_map: [B, tlen, slen]
    """
    B, S, H = encoder_outputs.shape
    _, T, _ = decoder_hidden.shape
    A = params["wh"].shape[1]

    # Split the batch across grid steps only when there are 2 TensorCores
    # (v7x). On single-TC chips the grid is a serial loop, so use one block
    # holding the whole batch (bigger MXU M, no extra per-step overhead).
    num_blocks = 2 if (_tensorcores_per_chip() >= 2 and B % 2 == 0 and B >= 2) else 1
    G = B // num_blocks

    bhs = jnp.concatenate(
        [params["bh"].reshape(1, A), params["bs"].reshape(1, A)], axis=0)
    wv_row = params["wv"].reshape(1, A)          # (A,1) column -> (1,A) lane row
    # b_v intentionally not passed to the kernel (softmax-invariant).

    in_specs = [
        pl.BlockSpec((G, S, H), lambda i: (i, 0, 0)),                 # enc
        pl.BlockSpec((G, T, H), lambda i: (i, 0, 0)),                 # dec
        pl.BlockSpec((H, A), lambda i: (0, 0)),                       # W_h
        pl.BlockSpec((H, A), lambda i: (0, 0)),                       # W_s
        pl.BlockSpec((2, A), lambda i: (0, 0)),                       # [b_h; b_s]
        pl.BlockSpec((1, A), lambda i: (0, 0)),                       # w_v row
    ]
    out_specs = pl.BlockSpec((1, 1, G * T * S), lambda i: (i, 0, 0))
    out_shape = jax.ShapeDtypeStruct((num_blocks, 1, G * T * S), jnp.float32)

    flat = pl.pallas_call(
        _attention_kernel,
        out_shape=out_shape,
        grid=(num_blocks,),
        in_specs=in_specs,
        out_specs=out_specs,
        compiler_params=pltpu.CompilerParams(
            dimension_semantics=("parallel",)),
    )(encoder_outputs, decoder_hidden,
      params["wh"], params["ws"], bhs, wv_row)

    return flat.reshape(B, T, S)


# ----------------------------------------------------------------------------
# Pure-JAX reference for verification
# ----------------------------------------------------------------------------
def attention_ref(enc, dec, p):
    a_enc = enc @ p["wh"] + p["bh"]                                   # (B, S, A)
    a_dec = dec @ p["ws"] + p["bs"]                                   # (B, T, A)
    e = jnp.tanh(a_dec[:, :, None, :] + a_enc[:, None, :, :])         # (B, T, S, A)
    energy = (e @ p["wv"])[..., 0] + p["bv"][0]                       # (B, T, S)
    return jax.nn.softmax(energy, axis=-1)


# ----------------------------------------------------------------------------
# main
# ----------------------------------------------------------------------------
if __name__ == "__main__":
    B, S, T = 4, 8, 8        # batch, slen, tlen
    H, A = 32, 32            # hidden_size, attention_size

    key = jax.random.PRNGKey(0)
    ks = jax.random.split(key, 8)

    def rnd(k, shape, scale):
        return (scale * jax.random.normal(k, shape)).astype(jnp.float32)

    # nn.Linear weights stored in (in, out) layout (i.e. already transposed).
    params = {
        "wh": rnd(ks[0], (H, A), 0.1), "bh": rnd(ks[1], (A,), 0.1),
        "ws": rnd(ks[2], (H, A), 0.1), "bs": rnd(ks[3], (A,), 0.1),
        "wv": rnd(ks[4], (A, 1), 0.1), "bv": rnd(ks[5], (1,), 0.1),
    }
    encoder_outputs = rnd(ks[6], (B, S, H), 1.0)
    decoder_hidden = rnd(ks[7], (B, T, H), 1.0)

    attn = attention_forward(encoder_outputs, decoder_hidden, params)
    jax.block_until_ready(attn)

    ref = attention_ref(encoder_outputs, decoder_hidden, params)
    err = float(jnp.max(jnp.abs(attn - ref)))
    assert err < 2e-4, f"mismatch vs reference: max abs err {err}"
    row_err = float(jnp.max(jnp.abs(jnp.sum(attn, axis=-1) - 1.0)))
    assert row_err < 1e-5, f"softmax rows not normalized: {row_err}"

    print("KERNEL_OK")
</pallas_src>

<mosaic_0001>
module attributes {stable_mosaic.version = 11 : i64} {
  func.func @_attention_kernel(%arg0: i32, %arg1: memref<4x8x32xf32, #tpu.memory_space<vmem>>, %arg2: memref<4x8x32xf32, #tpu.memory_space<vmem>>, %arg3: memref<32x32xf32, #tpu.memory_space<vmem>>, %arg4: memref<32x32xf32, #tpu.memory_space<vmem>>, %arg5: memref<2x32xf32, #tpu.memory_space<vmem>>, %arg6: memref<1x32xf32, #tpu.memory_space<vmem>>, %arg7: memref<1x1x256xf32, #tpu.memory_space<vmem>>) attributes {dimension_semantics = [#tpu.dimension_semantics<parallel>], iteration_bounds = array<i64: 1>, scalar_prefetch = 0 : i64, scratch_operands = 0 : i64, tpu.core_type = #tpu.core_type<tc>, window_params = [{transform_indices = @transform_0, window_bounds = array<i64: 4, 8, 32>}, {transform_indices = @transform_1, window_bounds = array<i64: 4, 8, 32>}, {pipeline_mode = #tpu.pipeline_mode<synchronous>, transform_indices = @transform_2, window_bounds = array<i64: 32, 32>}, {pipeline_mode = #tpu.pipeline_mode<synchronous>, transform_indices = @transform_3, window_bounds = array<i64: 32, 32>}, {pipeline_mode = #tpu.pipeline_mode<synchronous>, transform_indices = @transform_4, window_bounds = array<i64: 2, 32>}, {pipeline_mode = #tpu.pipeline_mode<synchronous>, transform_indices = @transform_5, window_bounds = array<i64: 1, 32>}, {transform_indices = @transform_6, window_bounds = array<i64: 1, 1, 256>}]} {
    %c0 = arith.constant 0 : index
    %c0_0 = arith.constant 0 : index
    %c0_1 = arith.constant 0 : index
    %0 = vector.load %arg1[%c0, %c0_0, %c0_1] : memref<4x8x32xf32, #tpu.memory_space<vmem>>, vector<4x8x32xf32>
    %1 = vector.shape_cast %0 : vector<4x8x32xf32> to vector<32x32xf32>
    %c0_2 = arith.constant 0 : index
    %c0_3 = arith.constant 0 : index
    %c0_4 = arith.constant 0 : index
    %2 = vector.load %arg2[%c0_2, %c0_3, %c0_4] : memref<4x8x32xf32, #tpu.memory_space<vmem>>, vector<4x8x32xf32>
    %3 = vector.shape_cast %2 : vector<4x8x32xf32> to vector<32x32xf32>
    %c0_5 = arith.constant 0 : index
    %c0_6 = arith.constant 0 : index
    %4 = vector.load %arg3[%c0_5, %c0_6] : memref<32x32xf32, #tpu.memory_space<vmem>>, vector<32x32xf32>
    %cst = arith.constant dense<0.000000e+00> : vector<32x32xf32>
    %5 = tpu.matmul %1, %4, %cst {dimension_numbers = #tpu.dot_dimension_numbers<[1], [0], [0], [1], [0, 0, 1, 1], [], []>} : vector<32x32xf32>, vector<32x32xf32>, vector<32x32xf32> -> vector<32x32xf32>
    %c0_7 = arith.constant 0 : index
    %c0_8 = arith.constant 0 : index
    %6 = vector.load %arg5[%c0_7, %c0_8] : memref<2x32xf32, #tpu.memory_space<vmem>>, vector<1x32xf32>
    %7 = vector.broadcast %6 : vector<1x32xf32> to vector<32x32xf32>
    %8 = arith.addf %5, %7 : vector<32x32xf32>
    %9 = vector.shape_cast %8 : vector<32x32xf32> to vector<4x8x32xf32>
    %c0_9 = arith.constant 0 : index
    %c0_10 = arith.constant 0 : index
    %10 = vector.load %arg4[%c0_9, %c0_10] : memref<32x32xf32, #tpu.memory_space<vmem>>, vector<32x32xf32>
    %cst_11 = arith.constant dense<0.000000e+00> : vector<32x32xf32>
    %11 = tpu.matmul %3, %10, %cst_11 {dimension_numbers = #tpu.dot_dimension_numbers<[1], [0], [0], [1], [0, 0, 1, 1], [], []>} : vector<32x32xf32>, vector<32x32xf32>, vector<32x32xf32> -> vector<32x32xf32>
    %c1 = arith.constant 1 : index
    %c0_12 = arith.constant 0 : index
    %12 = vector.load %arg5[%c1, %c0_12] : memref<2x32xf32, #tpu.memory_space<vmem>>, vector<1x32xf32>
    %13 = vector.broadcast %12 : vector<1x32xf32> to vector<32x32xf32>
    %14 = arith.addf %11, %13 : vector<32x32xf32>
    %15 = vector.shape_cast %14 : vector<32x32xf32> to vector<4x8x32xf32>
    %c0_13 = arith.constant 0 : index
    %c0_14 = arith.constant 0 : index
    %16 = vector.load %arg6[%c0_13, %c0_14] : memref<1x32xf32, #tpu.memory_space<vmem>>, vector<1x32xf32>
    %17 = vector.shape_cast %16 : vector<1x32xf32> to vector<32xf32>
    %18 = vector.shape_cast %15 : vector<4x8x32xf32> to vector<4x8x1x32xf32>
    %19 = vector.shape_cast %9 : vector<4x8x32xf32> to vector<4x1x8x32xf32>
    %20 = vector.broadcast %18 : vector<4x8x1x32xf32> to vector<4x8x8x32xf32>
    %21 = vector.broadcast %19 : vector<4x1x8x32xf32> to vector<4x8x8x32xf32>
    %22 = arith.addf %20, %21 : vector<4x8x8x32xf32>
    %23 = math.tanh %22 : vector<4x8x8x32xf32>
    %24 = vector.shape_cast %17 : vector<32xf32> to vector<1x1x1x32xf32>
    %25 = vector.broadcast %24 : vector<1x1x1x32xf32> to vector<4x8x8x32xf32>
    %26 = arith.mulf %23, %25 : vector<4x8x8x32xf32>
    %cst_15 = arith.constant dense<0.000000e+00> : vector<4x8x8xf32>
    %27 = vector.multi_reduction <add>, %26, %cst_15 [3] : vector<4x8x8x32xf32> to vector<4x8x8xf32>
    %cst_16 = arith.constant dense<0xFF800000> : vector<4x8xf32>
    %28 = vector.multi_reduction <maximumf>, %27, %cst_16 [2] : vector<4x8x8xf32> to vector<4x8xf32>
    %29 = vector.shape_cast %28 : vector<4x8xf32> to vector<4x8x1xf32>
    %30 = vector.broadcast %29 : vector<4x8x1xf32> to vector<4x8x8xf32>
    %31 = arith.subf %27, %30 : vector<4x8x8xf32>
    %32 = math.exp %31 : vector<4x8x8xf32>
    %cst_17 = arith.constant dense<0.000000e+00> : vector<4x8xf32>
    %33 = vector.multi_reduction <add>, %32, %cst_17 [2] : vector<4x8x8xf32> to vector<4x8xf32>
    %34 = vector.shape_cast %33 : vector<4x8xf32> to vector<4x8x1xf32>
    %35 = tpu.reciprocal %34 : vector<4x8x1xf32> -> vector<4x8x1xf32>
    %36 = vector.broadcast %35 : vector<4x8x1xf32> to vector<4x8x8xf32>
    %37 = arith.mulf %32, %36 : vector<4x8x8xf32>
    %38 = vector.shape_cast %37 : vector<4x8x8xf32> to vector<1x1x256xf32>
    %c0_18 = arith.constant 0 : index
    %c0_19 = arith.constant 0 : index
    %c0_20 = arith.constant 0 : index
    %39 = vector.load %arg7[%c0_18, %c0_19, %c0_20] : memref<1x1x256xf32, #tpu.memory_space<vmem>>, vector<1x1x256xf32>
    tpu.vector_store %arg7[%c0_18, %c0_19, %c0_20], %38 {strides = array<i32>} : memref<1x1x256xf32, #tpu.memory_space<vmem>>, vector<1x1x256xf32>,
    return
  }
  func.func @transform_0(%arg0: i32) -> (i32, i32, i32) {
    %c0_i32 = arith.constant 0 : i32
    %c0_i32_0 = arith.constant 0 : i32
    %c0_i32_1 = arith.constant 0 : i32
    return %arg0, %c0_i32, %c0_i32_0 : i32, i32, i32
  }
  func.func @transform_1(%arg0: i32) -> (i32, i32, i32) {
    %c0_i32 = arith.constant 0 : i32
    %c0_i32_0 = arith.constant 0 : i32
    %c0_i32_1 = arith.constant 0 : i32
    return %arg0, %c0_i32, %c0_i32_0 : i32, i32, i32
  }
  func.func @transform_2(%arg0: i32) -> (i32, i32) {
    %c0_i32 = arith.constant 0 : i32
    %c0_i32_0 = arith.constant 0 : i32
    %c0_i32_1 = arith.constant 0 : i32
    return %c0_i32, %c0_i32_0 : i32, i32
  }
  func.func @transform_3(%arg0: i32) -> (i32, i32) {
    %c0_i32 = arith.constant 0 : i32
    %c0_i32_0 = arith.constant 0 : i32
    %c0_i32_1 = arith.constant 0 : i32
    return %c0_i32, %c0_i32_0 : i32, i32
  }
  func.func @transform_4(%arg0: i32) -> (i32, i32) {
    %c0_i32 = arith.constant 0 : i32
    %c0_i32_0 = arith.constant 0 : i32
    %c0_i32_1 = arith.constant 0 : i32
    return %c0_i32, %c0_i32_0 : i32, i32
  }
  func.func @transform_5(%arg0: i32) -> (i32, i32) {
    %c0_i32 = arith.constant 0 : i32
    %c0_i32_0 = arith.constant 0 : i32
    %c0_i32_1 = arith.constant 0 : i32
    return %c0_i32, %c0_i32_0 : i32, i32
  }
  func.func @transform_6(%arg0: i32) -> (i32, i32, i32) {
    %c0_i32 = arith.constant 0 : i32
    %c0_i32_0 = arith.constant 0 : i32
    %c0_i32_1 = arith.constant 0 : i32
    return %arg0, %c0_i32, %c0_i32_0 : i32, i32, i32
  }
}

</mosaic_0001>

<llo_original>
// kernel: tpu_custom_call.1
$region0: #{tpu_custom_call.1}
  #allocation0 [shape = 'u32[]', space=smem, size = 0x4, offset = 0x4, fixed_abs, tag = 'smem constant byte address 0x4 - core index']
  #allocation1 [shape = 'u32[144,128]{1,0:T(1,128)}', space=vmem, size = 0x12000, scoped, tag = 'internal scratch']
  %s0 = inlined_call_operand.hbm [shape: f32[4,8,32], index: 0, kind: input, shape index: {}]
  %s1 = inlined_call_operand.hbm [shape: f32[4,8,32], index: 1, kind: input, shape index: {}]
  %s2 = inlined_call_operand.hbm [shape: f32[32,32], index: 2, kind: input, shape index: {}]
  %s3 = inlined_call_operand.hbm [shape: f32[32,32], index: 3, kind: input, shape index: {}]
  %s4 = inlined_call_operand.vmem [shape: f32[2,32], index: 4, kind: input, shape index: {}]
  %s5 = inlined_call_operand.vmem [shape: f32[1,32], index: 5, kind: input, shape index: {}]
  %s6 = inlined_call_operand.hbm [shape: f32[1,1,256], index: 6, kind: output, shape index: {}]
  %s7 = sld [smem:[#allocation0]]
  $region50: #{tpu_custom_call.1} parent=0
    _
  %s9 = ssub.s32 1, %s7
  %s10 = scalar_select 0, %s9, %s7
  $region1: #{tpu_custom_call.1} parent=0
    #allocation2 [shape = 'u8[16384]{0}', space=vmem, size = 0x4000, scoped, tag = 'input window, operand 0, single buffered']
    #allocation3 [shape = 's32[1]{0}', space=sflag, size = 0x4, scoped, tag = 'scoped memory for tpu_custom_call.1']
    #allocation4 [shape = 's32[1]{0}', space=sflag, size = 0x4, scoped, tag = 'scoped memory for tpu_custom_call.1']
    #allocation5 [shape = 'u8[16384]{0}', space=vmem, size = 0x4000, scoped, tag = 'input window, operand 1, single buffered']
    #allocation6 [shape = 's32[1]{0}', space=sflag, size = 0x4, scoped, tag = 'scoped memory for tpu_custom_call.1']
    #allocation7 [shape = 'u8[16384]{0}', space=vmem, size = 0x4000, scoped, tag = 'input window, operand 2, single buffered']
    #allocation8 [shape = 'u8[16384]{0}', space=vmem, size = 0x4000, scoped, tag = 'input window, operand 3, single buffered']
    #allocation9 [shape = 's32[1]{0}', space=sflag, size = 0x4, scoped, tag = 'scoped memory for tpu_custom_call.1']
    #allocation10 [shape = 'u8[1024]{0}', space=vmem, size = 0x400, scoped, tag = 'output window, operand 0, single buffered']
    %11 = vsyncpa [#allocation3], 0
    %12 = vsyncpa [#allocation6], 0
    %13 = vsyncpa [#allocation9], 0
    %14 = vsyncpa [#allocation4], 0
    // Predicated region
    $region2: #{tpu_custom_call.1} parent=1 // pred_check
      _
    $region3: #{tpu_custom_call.1} parent=1 // pred_check_branch
      %16 = sbr.rel (0) target = $region5
    $region4: #{tpu_custom_call.1} parent=1 // pred_region
      %s18 = ssub.s32 512, 512
      %19 = vsyncadd [#allocation3], %s18
      %s20 = sshll.u32 [#allocation2], 4
      %s21 = int_to_ptr.vmem [resolvable:$true] %s20
      %26 = dma.hbm_to_vmem [thread:$0]  %s0, 512, %s21, [#allocation3], 128, 128, 8
    $region5: #{tpu_custom_call.1} parent=1 // pred_fallthru
      _
    // Predicated region
    $region6: #{tpu_custom_call.1} parent=1 // pred_check
      _
    $region7: #{tpu_custom_call.1} parent=1 // pred_check_branch
      %28 = sbr.rel (0) target = $region9
    $region8: #{tpu_custom_call.1} parent=1 // pred_region
      %s30 = ssub.s32 512, 512
      %31 = vsyncadd [#allocation6], %s30
      %s32 = sshll.u32 [#allocation5], 4
      %s33 = int_to_ptr.vmem [resolvable:$true] %s32
      %38 = dma.hbm_to_vmem [thread:$0]  %s1, 512, %s33, [#allocation6], 128, 128, 8
    $region9: #{tpu_custom_call.1} parent=1 // pred_fallthru
      _
    // Predicated region
    $region10: #{tpu_custom_call.1} parent=1 // pred_check
      _
    $region11: #{tpu_custom_call.1} parent=1 // pred_check_branch
      %40 = sbr.rel (0) target = $region13
    $region12: #{tpu_custom_call.1} parent=1 // pred_region
      %s42 = ssub.s32 512, 512
      %43 = vsyncadd [#allocation6], %s42
      %s44 = sshll.u32 [#allocation7], 4
      %s45 = int_to_ptr.vmem [resolvable:$true] %s44
      %50 = dma.hbm_to_vmem [thread:$0]  %s2, 512, %s45, [#allocation6], 128, 128, 8
    $region13: #{tpu_custom_call.1} parent=1 // pred_fallthru
      _
    // Predicated region
    $region14: #{tpu_custom_call.1} parent=1 // pred_check
      _
    $region15: #{tpu_custom_call.1} parent=1 // pred_check_branch
      %52 = sbr.rel (0) target = $region17
    $region16: #{tpu_custom_call.1} parent=1 // pred_region
      %s54 = ssub.s32 512, 512
      %55 = vsyncadd [#allocation9], %s54
      %s56 = sshll.u32 [#allocation8], 4
      %s57 = int_to_ptr.vmem [resolvable:$true] %s56
      %62 = dma.hbm_to_vmem [thread:$0]  %s3, 512, %s57, [#allocation9], 128, 128, 8
    $region17: #{tpu_custom_call.1} parent=1 // pred_fallthru
      _
    // Predicated region
    $region18: #{tpu_custom_call.1} parent=1 // pred_check
      _
    $region19: #{tpu_custom_call.1} parent=1 // pred_check_branch
      %64 = sbr.rel (0) target = $region21
    $region20: #{tpu_custom_call.1} parent=1 // pred_region
      _
    $region21: #{tpu_custom_call.1} parent=1 // pred_fallthru
      _
    // Predicated region
    $region22: #{tpu_custom_call.1} parent=1 // pred_check
      _
    $region23: #{tpu_custom_call.1} parent=1 // pred_check_branch
      %66 = sbr.rel (0) target = $region25
    $region24: #{tpu_custom_call.1} parent=1 // pred_region
      _
    $region25: #{tpu_custom_call.1} parent=1 // pred_fallthru
      _
    // Predicated region
    $region26: #{tpu_custom_call.1} parent=1 // pred_check
      _
    $region27: #{tpu_custom_call.1} parent=1 // pred_check_branch
      %68 = sbr.rel (0) target = $region29
    $region28: #{tpu_custom_call.1} parent=1 // pred_region
      %69 = dma.done [#allocation3], 512
    $region29: #{tpu_custom_call.1} parent=1 // pred_fallthru
      _
    // Predicated region
    $region30: #{tpu_custom_call.1} parent=1 // pred_check
      _
    $region31: #{tpu_custom_call.1} parent=1 // pred_check_branch
      %71 = sbr.rel (0) target = $region33
    $region32: #{tpu_custom_call.1} parent=1 // pred_region
      %72 = dma.done [#allocation6], 512
    $region33: #{tpu_custom_call.1} parent=1 // pred_fallthru
      _
    // Predicated region
    $region34: #{tpu_custom_call.1} parent=1 // pred_check
      _
    $region35: #{tpu_custom_call.1} parent=1 // pred_check_branch
      %74 = sbr.rel (0) target = $region37
    $region36: #{tpu_custom_call.1} parent=1 // pred_region
      %75 = dma.done [#allocation6], 512
    $region37: #{tpu_custom_call.1} parent=1 // pred_fallthru
      _
    // Predicated region
    $region38: #{tpu_custom_call.1} parent=1 // pred_check
      _
    $region39: #{tpu_custom_call.1} parent=1 // pred_check_branch
      %77 = sbr.rel (0) target = $region41
    $region40: #{tpu_custom_call.1} parent=1 // pred_region
      %78 = dma.done [#allocation9], 512
    $region41: #{tpu_custom_call.1} parent=1 // pred_fallthru
      _
    %v79 = vld [vmem:[#allocation2] sm:$0xff]
    %v80 = vld [vmem:[#allocation2 + $0x8] sm:$0xff]
    %v81 = vld [vmem:[#allocation2 + $0x10] sm:$0xff]
    %v82 = vld [vmem:[#allocation2 + $0x18] sm:$0xff]
    %v83 = vld [vmem:[#allocation5] sm:$0xff]
    %v84 = vld [vmem:[#allocation5 + $0x8] sm:$0xff]
    %v85 = vld [vmem:[#allocation5 + $0x10] sm:$0xff]
    %v86 = vld [vmem:[#allocation5 + $0x18] sm:$0xff]
    %v87 = vld [vmem:[#allocation7] sm:$0xff]
    %v88 = vld [vmem:[#allocation7 + $0x8] sm:$0xff]
    %v89 = vld [vmem:[#allocation7 + $0x10] sm:$0xff]
    %v90 = vld [vmem:[#allocation7 + $0x18] sm:$0xff]
    %v91 = vld [vmem:[%s4] sm:$0x1]
    %v92 = vlaneseq
    %v93 = vshrl.u32 %v92, 7
    %v94 = vsub.s32 0, %v93
    %v95 = vrot.slane %v91, %v94
    %vm96 = vcmask 261120
    %v98 = vsel %vm96, %v79, 0
    %v101 = vsel %vm96, %v80, 0
    %v104 = vsel %vm96, %v81, 0
    %v107 = vsel %vm96, %v82, 0
    %109 = vmatprep.subr.mxu0 0.0
    %110 = vmatpush1.msra.mxu0 %v87
    %111 = vmatprep.subr.mxu0 0.0
    %112 = vmatpush1.msra.mxu0 %v88
    %113 = vmatprep.subr.mxu0 0.0
    %114 = vmatpush1.msra.mxu0 %v89
    %115 = vmatprep.subr.mxu0 0.0
    %116 = vmatpush1.msra.mxu0 %v90
    %117 = vmatprep.subr.mxu0 0.0
    %118 = vmatpush1.msra.mxu0 0.0
    %119 = vmatprep.subr.mxu0 0.0
    %120 = vmatpush1.msra.mxu0 0.0
    %121 = vmatprep.subr.mxu0 0.0
    %122 = vmatpush1.msra.mxu0 0.0
    %123 = vmatprep.subr.mxu0 0.0
    %124 = vmatpush1.msra.mxu0 0.0
    %125 = vmatprep.subr.mxu0 0.0
    %126 = vmatpush1.msra.mxu0 0.0
    %127 = vmatprep.subr.mxu0 0.0
    %128 = vmatpush1.msra.mxu0 0.0
    %129 = vmatprep.subr.mxu0 0.0
    %130 = vmatpush1.msra.mxu0 0.0
    %131 = vmatprep.subr.mxu0 0.0
    %132 = vmatpush1.msra.mxu0 0.0
    %133 = vmatprep.subr.mxu0 0.0
    %134 = vmatpush1.msra.mxu0 0.0
    %135 = vmatprep.subr.mxu0 0.0
    %136 = vmatpush1.msra.mxu0 0.0
    %137 = vmatprep.subr.mxu0 0.0
    %138 = vmatpush1.msra.mxu0 0.0
    %139 = vmatprep.subr.mxu0 0.0
    %140 = vmatpush1.msra.mxu0 0.0
    %141 = vmatprep.subr.mxu0 0.0
    %142 = vmatpush1.msra.mxu0 0.0
    %143 = vmatprep.subr.mxu0 0.0
    %144 = vmatpush1.msra.mxu0 0.0
    %145 = vmatprep.subr.mxu0 0.0
    %146 = vmatpush1.msra.mxu0 0.0
    %147 = vmatprep.subr.mxu0 0.0
    %148 = vmatpush1.msra.mxu0 0.0
    %149 = vmatprep.subr.mxu0 0.0
    %150 = vmatpush1.msra.mxu0 0.0
    %151 = vmatprep.subr.mxu0 0.0
    %152 = vmatpush1.msra.mxu0 0.0
    %153 = vmatprep.subr.mxu0 0.0
    %154 = vmatpush1.msra.mxu0 0.0
    %155 = vmatprep.subr.mxu0 0.0
    %156 = vmatpush1.msra.mxu0 0.0
    %157 = vmatprep.subr.mxu0 0.0
    %158 = vmatpush1.msra.mxu0 0.0
    %159 = vmatprep.subr.mxu0 0.0
    %160 = vmatpush1.msra.mxu0 0.0
    %161 = vmatprep.subr.mxu0 0.0
    %162 = vmatpush1.msra.mxu0 0.0
    %163 = vmatprep.subr.mxu0 0.0
    %164 = vmatpush1.msra.mxu0 0.0
    %165 = vmatprep.subr.mxu0 0.0
    %166 = vmatpush1.msra.mxu0 0.0
    %167 = vmatprep.subr.mxu0 0.0
    %168 = vmatpush1.msra.mxu0 0.0
    %169 = vmatprep.subr.mxu0 0.0
    %170 = vmatpush1.msra.mxu0 0.0
    %171 = vmatprep.subr.mxu0 0.0
    %172 = vmatpush1.msra.mxu0 0.0
    %173 = vmatprep.mubr.f32.mxu0 0.0
    %174 = vmatmul.mubr.f32.gmra.mrb[0].mxu0 %v98
    %v175 = vpop.f32.mrb[0].mxu0
    %v176 = vadd.f32 %v95, %v175
    %v177 = vpop.f32.mrb[0].mxu0
    %178 = vmatprep.mubr.f32.mxu0 0.0
    %179 = vmatmul.mubr.f32.gmra.mrb[0].mxu0 %v101
    %v180 = vpop.f32.mrb[0].mxu0
    %v181 = vadd.f32 %v95, %v180
    %v182 = vpop.f32.mrb[0].mxu0
    %183 = vmatprep.mubr.f32.mxu0 0.0
    %184 = vmatmul.mubr.f32.gmra.mrb[0].mxu0 %v104
    %v185 = vpop.f32.mrb[0].mxu0
    %v186 = vadd.f32 %v95, %v185
    %v187 = vpop.f32.mrb[0].mxu0
    %188 = vmatprep.mubr.f32.mxu0 0.0
    %189 = vmatmul.mubr.f32.gmra.mrb[0].mxu0 %v107
    %v190 = vpop.f32.mrb[0].mxu0
    %v191 = vadd.f32 %v95, %v190
    %v192 = vpop.f32.mrb[0].mxu0
    %193 = vdwg.mxu0
    %v194 = vld [vmem:[#allocation8] sm:$0xff]
    %v195 = vld [vmem:[#allocation8 + $0x8] sm:$0xff]
    %v196 = vld [vmem:[#allocation8 + $0x10] sm:$0xff]
    %v197 = vld [vmem:[#allocation8 + $0x18] sm:$0xff]
    %v198 = vld [vmem:[%s4 + $0x1] sm:$0x1]
    %v199 = vlaneseq
    %v200 = vshrl.u32 %v199, 7
    %v201 = vsub.s32 0, %v200
    %v202 = vrot.slane %v198, %v201
    %v204 = vsel %vm96, %v83, 0
    %v207 = vsel %vm96, %v84, 0
    %v210 = vsel %vm96, %v85, 0
    %v213 = vsel %vm96, %v86, 0
    %215 = vmatprep.subr.mxu0 0.0
    %216 = vmatpush1.msra.mxu0 %v194
    %217 = vmatprep.subr.mxu0 0.0
    %218 = vmatpush1.msra.mxu0 %v195
    %219 = vmatprep.subr.mxu0 0.0
    %220 = vmatpush1.msra.mxu0 %v196
    %221 = vmatprep.subr.mxu0 0.0
    %222 = vmatpush1.msra.mxu0 %v197
    %223 = vmatprep.subr.mxu0 0.0
    %224 = vmatpush1.msra.mxu0 0.0
    %225 = vmatprep.subr.mxu0 0.0
    %226 = vmatpush1.msra.mxu0 0.0
    %227 = vmatprep.subr.mxu0 0.0
    %228 = vmatpush1.msra.mxu0 0.0
    %229 = vmatprep.subr.mxu0 0.0
    %230 = vmatpush1.msra.mxu0 0.0
    %231 = vmatprep.subr.mxu0 0.0
    %232 = vmatpush1.msra.mxu0 0.0
    %233 = vmatprep.subr.mxu0 0.0
    %234 = vmatpush1.msra.mxu0 0.0
    %235 = vmatprep.subr.mxu0 0.0
    %236 = vmatpush1.msra.mxu0 0.0
    %237 = vmatprep.subr.mxu0 0.0
    %238 = vmatpush1.msra.mxu0 0.0
    %239 = vmatprep.subr.mxu0 0.0
    %240 = vmatpush1.msra.mxu0 0.0
    %241 = vmatprep.subr.mxu0 0.0
    %242 = vmatpush1.msra.mxu0 0.0
    %243 = vmatprep.subr.mxu0 0.0
    %244 = vmatpush1.msra.mxu0 0.0
    %245 = vmatprep.subr.mxu0 0.0
    %246 = vmatpush1.msra.mxu0 0.0
    %247 = vmatprep.subr.mxu0 0.0
    %248 = vmatpush1.msra.mxu0 0.0
    %249 = vmatprep.subr.mxu0 0.0
    %250 = vmatpush1.msra.mxu0 0.0
    %251 = vmatprep.subr.mxu0 0.0
    %252 = vmatpush1.msra.mxu0 0.0
    %253 = vmatprep.subr.mxu0 0.0
    %254 = vmatpush1.msra.mxu0 0.0
    %255 = vmatprep.subr.mxu0 0.0
    %256 = vmatpush1.msra.mxu0 0.0
    %257 = vmatprep.subr.mxu0 0.0
    %258 = vmatpush1.msra.mxu0 0.0
    %259 = vmatprep.subr.mxu0 0.0
    %260 = vmatpush1.msra.mxu0 0.0
    %261 = vmatprep.subr.mxu0 0.0
    %262 = vmatpush1.msra.mxu0 0.0
    %263 = vmatprep.subr.mxu0 0.0
    %264 = vmatpush1.msra.mxu0 0.0
    %265 = vmatprep.subr.mxu0 0.0
    %266 = vmatpush1.msra.mxu0 0.0
    %267 = vmatprep.subr.mxu0 0.0
    %268 = vmatpush1.msra.mxu0 0.0
    %269 = vmatprep.subr.mxu0 0.0
    %270 = vmatpush1.msra.mxu0 0.0
    %271 = vmatprep.subr.mxu0 0.0
    %272 = vmatpush1.msra.mxu0 0.0
    %273 = vmatprep.subr.mxu0 0.0
    %274 = vmatpush1.msra.mxu0 0.0
    %275 = vmatprep.subr.mxu0 0.0
    %276 = vmatpush1.msra.mxu0 0.0
    %277 = vmatprep.subr.mxu0 0.0
    %278 = vmatpush1.msra.mxu0 0.0
    %279 = vmatprep.mubr.f32.mxu0 0.0
    %280 = vmatmul.mubr.f32.gmra.mrb[0].mxu0 %v204
    %v281 = vpop.f32.mrb[0].mxu0
    %v282 = vadd.f32 %v202, %v281
    %v283 = vpop.f32.mrb[0].mxu0
    %284 = vmatprep.mubr.f32.mxu0 0.0
    %285 = vmatmul.mubr.f32.gmra.mrb[0].mxu0 %v207
    %v286 = vpop.f32.mrb[0].mxu0
    %v287 = vadd.f32 %v202, %v286
    %v288 = vpop.f32.mrb[0].mxu0
    %289 = vmatprep.mubr.f32.mxu0 0.0
    %290 = vmatmul.mubr.f32.gmra.mrb[0].mxu0 %v210
    %v291 = vpop.f32.mrb[0].mxu0
    %v292 = vadd.f32 %v202, %v291
    %v293 = vpop.f32.mrb[0].mxu0
    %294 = vmatprep.mubr.f32.mxu0 0.0
    %295 = vmatmul.mubr.f32.gmra.mrb[0].mxu0 %v213
    %v296 = vpop.f32.mrb[0].mxu0
    %v297 = vadd.f32 %v202, %v296
    %v298 = vpop.f32.mrb[0].mxu0
    %299 = vdwg.mxu0
    %v300 = vld [vmem:[%s5] sm:$0x1]
    %v305 = vcombine.high %v282, %v282
    %v307 = vunpack.c.l.s4 1966171168
    %v308 = vunpack.c.0.s8 %v307
    %v309 = vlaneseq
    %v310 = vshrl.u32 %v309, 7
    %v311 = vsub.s32 %v308, %v310
    %v312 = vrot.slane %v282, %v311
    %v314 = vunpack.c.l.s4 1966171168
    %v315 = vunpack.c.0.s8 %v314
    %v316 = vlaneseq
    %v317 = vshrl.u32 %v316, 7
    %v318 = vsub.s32 %v315, %v317
    %v319 = vrot.slane %v305, %v318
    %v320 = vcombine.high %v312, %v312
    %v321 = vcombine.high %v319, %v319
    %v323 = vunpack.c.l.s4 1966171168
    %v324 = vunpack.c.0.s8 %v323
    %v325 = vlaneseq
    %v326 = vshrl.u32 %v325, 7
    %v327 = vsub.s32 %v324, %v326
    %v328 = vrot.slane %v312, %v327
    %v330 = vunpack.c.l.s4 1966171168
    %v331 = vunpack.c.0.s8 %v330
    %v332 = vlaneseq
    %v333 = vshrl.u32 %v332, 7
    %v334 = vsub.s32 %v331, %v333
    %v335 = vrot.slane %v319, %v334
    %v337 = vunpack.c.l.s4 1966171168
    %v338 = vunpack.c.0.s8 %v337
    %v339 = vlaneseq
    %v340 = vshrl.u32 %v339, 7
    %v341 = vsub.s32 %v338, %v340
    %v342 = vrot.slane %v320, %v341
    %v344 = vunpack.c.l.s4 1966171168
    %v345 = vunpack.c.0.s8 %v344
    %v346 = vlaneseq
    %v347 = vshrl.u32 %v346, 7
    %v348 = vsub.s32 %v345, %v347
    %v349 = vrot.slane %v321, %v348
    %v350 = vcombine.high %v328, %v328
    %v351 = vcombine.high %v335, %v335
    %v352 = vcombine.high %v342, %v342
    %v353 = vcombine.high %v349, %v349
    %v354 = vcombine.high %v287, %v287
    %v356 = vunpack.c.l.s4 1966171168
    %v357 = vunpack.c.0.s8 %v356
    %v358 = vlaneseq
    %v359 = vshrl.u32 %v358, 7
    %v360 = vsub.s32 %v357, %v359
    %v361 = vrot.slane %v287, %v360
    %v363 = vunpack.c.l.s4 1966171168
    %v364 = vunpack.c.0.s8 %v363
    %v365 = vlaneseq
    %v366 = vshrl.u32 %v365, 7
    %v367 = vsub.s32 %v364, %v366
    %v368 = vrot.slane %v354, %v367
    %v369 = vcombine.high %v361, %v361
    %v370 = vcombine.high %v368, %v368
    %v372 = vunpack.c.l.s4 1966171168
    %v373 = vunpack.c.0.s8 %v372
    %v374 = vlaneseq
    %v375 = vshrl.u32 %v374, 7
    %v376 = vsub.s32 %v373, %v375
    %v377 = vrot.slane %v361, %v376
    %v379 = vunpack.c.l.s4 1966171168
    %v380 = vunpack.c.0.s8 %v379
    %v381 = vlaneseq
    %v382 = vshrl.u32 %v381, 7
    %v383 = vsub.s32 %v380, %v382
    %v384 = vrot.slane %v368, %v383
    %v386 = vunpack.c.l.s4 1966171168
    %v387 = vunpack.c.0.s8 %v386
    %v388 = vlaneseq
    %v389 = vshrl.u32 %v388, 7
    %v390 = vsub.s32 %v387, %v389
    %v391 = vrot.slane %v369, %v390
    %v393 = vunpack.c.l.s4 1966171168
    %v394 = vunpack.c.0.s8 %v393
    %v395 = vlaneseq
    %v396 = vshrl.u32 %v395, 7
    %v397 = vsub.s32 %v394, %v396
    %v398 = vrot.slane %v370, %v397
    %v399 = vcombine.high %v377, %v377
    %v400 = vcombine.high %v384, %v384
    %v401 = vcombine.high %v391, %v391
    %v402 = vcombine.high %v398, %v398
    %v403 = vcombine.high %v292, %v292
    %v405 = vunpack.c.l.s4 1966171168
    %v406 = vunpack.c.0.s8 %v405
    %v407 = vlaneseq
    %v408 = vshrl.u32 %v407, 7
    %v409 = vsub.s32 %v406, %v408
    %v410 = vrot.slane %v292, %v409
    %v412 = vunpack.c.l.s4 1966171168
    %v413 = vunpack.c.0.s8 %v412
    %v414 = vlaneseq
    %v415 = vshrl.u32 %v414, 7
    %v416 = vsub.s32 %v413, %v415
    %v417 = vrot.slane %v403, %v416
    %v418 = vcombine.high %v410, %v410
    %v419 = vcombine.high %v417, %v417
    %v421 = vunpack.c.l.s4 1966171168
    %v422 = vunpack.c.0.s8 %v421
    %v423 = vlaneseq
    %v424 = vshrl.u32 %v423, 7
    %v425 = vsub.s32 %v422, %v424
    %v426 = vrot.slane %v410, %v425
    %v428 = vunpack.c.l.s4 1966171168
    %v429 = vunpack.c.0.s8 %v428
    %v430 = vlaneseq
    %v431 = vshrl.u32 %v430, 7
    %v432 = vsub.s32 %v429, %v431
    %v433 = vrot.slane %v417, %v432
    %v435 = vunpack.c.l.s4 1966171168
    %v436 = vunpack.c.0.s8 %v435
    %v437 = vlaneseq
    %v438 = vshrl.u32 %v437, 7
    %v439 = vsub.s32 %v436, %v438
    %v440 = vrot.slane %v418, %v439
    %v442 = vunpack.c.l.s4 1966171168
    %v443 = vunpack.c.0.s8 %v442
    %v444 = vlaneseq
    %v445 = vshrl.u32 %v444, 7
    %v446 = vsub.s32 %v443, %v445
    %v447 = vrot.slane %v419, %v446
    %v448 = vcombine.high %v426, %v426
    %v449 = vcombine.high %v433, %v433
    %v450 = vcombine.high %v440, %v440
    %v451 = vcombine.high %v447, %v447
    %v452 = vcombine.high %v297, %v297
    %v454 = vunpack.c.l.s4 1966171168
    %v455 = vunpack.c.0.s8 %v454
    %v456 = vlaneseq
    %v457 = vshrl.u32 %v456, 7
    %v458 = vsub.s32 %v455, %v457
    %v459 = vrot.slane %v297, %v458
    %v461 = vunpack.c.l.s4 1966171168
    %v462 = vunpack.c.0.s8 %v461
    %v463 = vlaneseq
    %v464 = vshrl.u32 %v463, 7
    %v465 = vsub.s32 %v462, %v464
    %v466 = vrot.slane %v452, %v465
    %v467 = vcombine.high %v459, %v459
    %v468 = vcombine.high %v466, %v466
    %v470 = vunpack.c.l.s4 1966171168
    %v471 = vunpack.c.0.s8 %v470
    %v472 = vlaneseq
    %v473 = vshrl.u32 %v472, 7
    %v474 = vsub.s32 %v471, %v473
    %v475 = vrot.slane %v459, %v474
    %v477 = vunpack.c.l.s4 1966171168
    %v478 = vunpack.c.0.s8 %v477
    %v479 = vlaneseq
    %v480 = vshrl.u32 %v479, 7
    %v481 = vsub.s32 %v478, %v480
    %v482 = vrot.slane %v466, %v481
    %v484 = vunpack.c.l.s4 1966171168
    %v485 = vunpack.c.0.s8 %v484
    %v486 = vlaneseq
    %v487 = vshrl.u32 %v486, 7
    %v488 = vsub.s32 %v485, %v487
    %v489 = vrot.slane %v467, %v488
    %v491 = vunpack.c.l.s4 1966171168
    %v492 = vunpack.c.0.s8 %v491
    %v493 = vlaneseq
    %v494 = vshrl.u32 %v493, 7
    %v495 = vsub.s32 %v492, %v494
    %v496 = vrot.slane %v468, %v495
    %v497 = vcombine.high %v475, %v475
    %v498 = vcombine.high %v482, %v482
    %v499 = vcombine.high %v489, %v489
    %v500 = vcombine.high %v496, %v496
    %v501 = vlaneseq
    %v502 = vshrl.u32 %v501, 7
    %v503 = vsub.s32 0, %v502
    %v504 = vrot.slane %v328, %v503
    %v505 = vlaneseq
    %v506 = vshrl.u32 %v505, 7
    %v507 = vsub.s32 0, %v506
    %v508 = vrot.slane %v342, %v507
    %v509 = vlaneseq
    %v510 = vshrl.u32 %v509, 7
    %v511 = vsub.s32 0, %v510
    %v512 = vrot.slane %v350, %v511
    %v513 = vlaneseq
    %v514 = vshrl.u32 %v513, 7
    %v515 = vsub.s32 0, %v514
    %v516 = vrot.slane %v352, %v515
    %v517 = vlaneseq
    %v518 = vshrl.u32 %v517, 7
    %v519 = vsub.s32 0, %v518
    %v520 = vrot.slane %v335, %v519
    %v521 = vlaneseq
    %v522 = vshrl.u32 %v521, 7
    %v523 = vsub.s32 0, %v522
    %v524 = vrot.slane %v349, %v523
    %v525 = vlaneseq
    %v526 = vshrl.u32 %v525, 7
    %v527 = vsub.s32 0, %v526
    %v528 = vrot.slane %v351, %v527
    %v529 = vlaneseq
    %v530 = vshrl.u32 %v529, 7
    %v531 = vsub.s32 0, %v530
    %v532 = vrot.slane %v353, %v531
    %v533 = vlaneseq
    %v534 = vshrl.u32 %v533, 7
    %v535 = vsub.s32 0, %v534
    %v536 = vrot.slane %v377, %v535
    %v537 = vlaneseq
    %v538 = vshrl.u32 %v537, 7
    %v539 = vsub.s32 0, %v538
    %v540 = vrot.slane %v391, %v539
    %v541 = vlaneseq
    %v542 = vshrl.u32 %v541, 7
    %v543 = vsub.s32 0, %v542
    %v544 = vrot.slane %v399, %v543
    %v545 = vlaneseq
    %v546 = vshrl.u32 %v545, 7
    %v547 = vsub.s32 0, %v546
    %v548 = vrot.slane %v401, %v547
    %v549 = vlaneseq
    %v550 = vshrl.u32 %v549, 7
    %v551 = vsub.s32 0, %v550
    %v552 = vrot.slane %v384, %v551
    %v553 = vlaneseq
    %v554 = vshrl.u32 %v553, 7
    %v555 = vsub.s32 0, %v554
    %v556 = vrot.slane %v398, %v555
    %v557 = vlaneseq
    %v558 = vshrl.u32 %v557, 7
    %v559 = vsub.s32 0, %v558
    %v560 = vrot.slane %v400, %v559
    %v561 = vlaneseq
    %v562 = vshrl.u32 %v561, 7
    %v563 = vsub.s32 0, %v562
    %v564 = vrot.slane %v402, %v563
    %v565 = vlaneseq
    %v566 = vshrl.u32 %v565, 7
    %v567 = vsub.s32 0, %v566
    %v568 = vrot.slane %v426, %v567
    %v569 = vlaneseq
    %v570 = vshrl.u32 %v569, 7
    %v571 = vsub.s32 0, %v570
    %v572 = vrot.slane %v440, %v571
    %v573 = vlaneseq
    %v574 = vshrl.u32 %v573, 7
    %v575 = vsub.s32 0, %v574
    %v576 = vrot.slane %v448, %v575
    %v577 = vlaneseq
    %v578 = vshrl.u32 %v577, 7
    %v579 = vsub.s32 0, %v578
    %v580 = vrot.slane %v450, %v579
    %v581 = vlaneseq
    %v582 = vshrl.u32 %v581, 7
    %v583 = vsub.s32 0, %v582
    %v584 = vrot.slane %v433, %v583
    %v585 = vlaneseq
    %v586 = vshrl.u32 %v585, 7
    %v587 = vsub.s32 0, %v586
    %v588 = vrot.slane %v447, %v587
    %v589 = vlaneseq
    %v590 = vshrl.u32 %v589, 7
    %v591 = vsub.s32 0, %v590
    %v592 = vrot.slane %v449, %v591
    %v593 = vlaneseq
    %v594 = vshrl.u32 %v593, 7
    %v595 = vsub.s32 0, %v594
    %v596 = vrot.slane %v451, %v595
    %v597 = vlaneseq
    %v598 = vshrl.u32 %v597, 7
    %v599 = vsub.s32 0, %v598
    %v600 = vrot.slane %v475, %v599
    %v601 = vlaneseq
    %v602 = vshrl.u32 %v601, 7
    %v603 = vsub.s32 0, %v602
    %v604 = vrot.slane %v489, %v603
    %v605 = vlaneseq
    %v606 = vshrl.u32 %v605, 7
    %v607 = vsub.s32 0, %v606
    %v608 = vrot.slane %v497, %v607
    %v609 = vlaneseq
    %v610 = vshrl.u32 %v609, 7
    %v611 = vsub.s32 0, %v610
    %v612 = vrot.slane %v499, %v611
    %v613 = vlaneseq
    %v614 = vshrl.u32 %v613, 7
    %v615 = vsub.s32 0, %v614
    %v616 = vrot.slane %v482, %v615
    %v617 = vlaneseq
    %v618 = vshrl.u32 %v617, 7
    %v619 = vsub.s32 0, %v618
    %v620 = vrot.slane %v496, %v619
    %v621 = vlaneseq
    %v622 = vshrl.u32 %v621, 7
    %v623 = vsub.s32 0, %v622
    %v624 = vrot.slane %v498, %v623
    %v625 = vlaneseq
    %v626 = vshrl.u32 %v625, 7
    %v627 = vsub.s32 0, %v626
    %v628 = vrot.slane %v500, %v627
    %v661 = vadd.f32 %v504, %v176
    %v662 = vadd.f32 %v508, %v176
    %v663 = vadd.f32 %v512, %v176
    %v664 = vadd.f32 %v516, %v176
    %v665 = vadd.f32 %v520, %v176
    %v666 = vadd.f32 %v524, %v176
    %v667 = vadd.f32 %v528, %v176
    %v668 = vadd.f32 %v532, %v176
    %v669 = vadd.f32 %v536, %v181
    %v670 = vadd.f32 %v540, %v181
    %v671 = vadd.f32 %v544, %v181
    %v672 = vadd.f32 %v548, %v181
    %v673 = vadd.f32 %v552, %v181
    %v674 = vadd.f32 %v556, %v181
    %v675 = vadd.f32 %v560, %v181
    %v676 = vadd.f32 %v564, %v181
    %v677 = vadd.f32 %v568, %v186
    %v678 = vadd.f32 %v572, %v186
    %v679 = vadd.f32 %v576, %v186
    %v680 = vadd.f32 %v580, %v186
    %v681 = vadd.f32 %v584, %v186
    %v682 = vadd.f32 %v588, %v186
    %v683 = vadd.f32 %v592, %v186
    %v684 = vadd.f32 %v596, %v186
    %v685 = vadd.f32 %v600, %v191
    %v686 = vadd.f32 %v604, %v191
    %v687 = vadd.f32 %v608, %v191
    %v688 = vadd.f32 %v612, %v191
    %v689 = vadd.f32 %v616, %v191
    %v690 = vadd.f32 %v620, %v191
    %v691 = vadd.f32 %v624, %v191
    %v692 = vadd.f32 %v628, %v191
    %v693 = vtanh.pop %v661
    %v694 = vtanh.pop %v662
    %v695 = vtanh.pop %v663
    %v696 = vtanh.pop %v664
    %v697 = vtanh.pop %v665
    %v698 = vtanh.pop %v666
    %v699 = vtanh.pop %v667
    %v700 = vtanh.pop %v668
    %v701 = vtanh.pop %v669
    %v702 = vtanh.pop %v670
    %v703 = vtanh.pop %v671
    %v704 = vtanh.pop %v672
    %v705 = vtanh.pop %v673
    %v706 = vtanh.pop %v674
    %v707 = vtanh.pop %v675
    %v708 = vtanh.pop %v676
    %v709 = vtanh.pop %v677
    %v710 = vtanh.pop %v678
    %v711 = vtanh.pop %v679
    %v712 = vtanh.pop %v680
    %v713 = vtanh.pop %v681
    %v714 = vtanh.pop %v682
    %v715 = vtanh.pop %v683
    %v716 = vtanh.pop %v684
    %v717 = vtanh.pop %v685
    %v718 = vtanh.pop %v686
    %v719 = vtanh.pop %v687
    %v720 = vtanh.pop %v688
    %v721 = vtanh.pop %v689
    %v722 = vtanh.pop %v690
    %v723 = vtanh.pop %v691
    %v724 = vtanh.pop %v692
    %v726 = vlaneseq
    %v727 = vshrl.u32 %v726, 7
    %v728 = vsub.s32 0, %v727
    %v729 = vrot.slane %v300, %v728
    %v731 = vmul.f32 %v693, %v729
    %v732 = vmul.f32 %v694, %v729
    %v733 = vmul.f32 %v695, %v729
    %v734 = vmul.f32 %v696, %v729
    %v735 = vmul.f32 %v697, %v729
    %v736 = vmul.f32 %v698, %v729
    %v737 = vmul.f32 %v699, %v729
    %v738 = vmul.f32 %v700, %v729
    %v739 = vmul.f32 %v701, %v729
    %v740 = vmul.f32 %v702, %v729
    %v741 = vmul.f32 %v703, %v729
    %v742 = vmul.f32 %v704, %v729
    %v743 = vmul.f32 %v705, %v729
    %v744 = vmul.f32 %v706, %v729
    %v745 = vmul.f32 %v707, %v729
    %v746 = vmul.f32 %v708, %v729
    %v747 = vmul.f32 %v709, %v729
    %v748 = vmul.f32 %v710, %v729
    %v749 = vmul.f32 %v711, %v729
    %v750 = vmul.f32 %v712, %v729
    %v751 = vmul.f32 %v713, %v729
    %v752 = vmul.f32 %v714, %v729
    %v753 = vmul.f32 %v715, %v729
    %v754 = vmul.f32 %v716, %v729
    %v755 = vmul.f32 %v717, %v729
    %v756 = vmul.f32 %v718, %v729
    %v757 = vmul.f32 %v719, %v729
    %v758 = vmul.f32 %v720, %v729
    %v759 = vmul.f32 %v721, %v729
    %v760 = vmul.f32 %v722, %v729
    %v761 = vmul.f32 %v723, %v729
    %v762 = vmul.f32 %v724, %v729
    %v763 = vsel %vm96, %v731, 0.0
    %764 = vadd.xlane.f32.xlu0 %v763
    %v765 = vpop.xlane.xlu0 %764
    %v766 = vsel %vm96, %v732, 0.0
    %767 = vadd.xlane.f32.xlu0 %v766
    %v768 = vpop.xlane.xlu0 %767
    %v769 = vsel %vm96, %v733, 0.0
    %770 = vadd.xlane.f32.xlu0 %v769
    %v771 = vpop.xlane.xlu0 %770
    %v772 = vsel %vm96, %v734, 0.0
    %773 = vadd.xlane.f32.xlu0 %v772
    %v774 = vpop.xlane.xlu0 %773
    %v775 = vsel %vm96, %v735, 0.0
    %776 = vadd.xlane.f32.xlu0 %v775
    %v777 = vpop.xlane.xlu0 %776
    %v778 = vsel %vm96, %v736, 0.0
    %779 = vadd.xlane.f32.xlu0 %v778
    %v780 = vpop.xlane.xlu0 %779
    %v781 = vsel %vm96, %v737, 0.0
    %782 = vadd.xlane.f32.xlu0 %v781
    %v783 = vpop.xlane.xlu0 %782
    %v784 = vsel %vm96, %v738, 0.0
    %785 = vadd.xlane.f32.xlu0 %v784
    %v786 = vpop.xlane.xlu0 %785
    %v787 = vsel %vm96, %v739, 0.0
    %788 = vadd.xlane.f32.xlu0 %v787
    %v789 = vpop.xlane.xlu0 %788
    %v790 = vsel %vm96, %v740, 0.0
    %791 = vadd.xlane.f32.xlu0 %v790
    %v792 = vpop.xlane.xlu0 %791
    %v793 = vsel %vm96, %v741, 0.0
    %794 = vadd.xlane.f32.xlu0 %v793
    %v795 = vpop.xlane.xlu0 %794
    %v796 = vsel %vm96, %v742, 0.0
    %797 = vadd.xlane.f32.xlu0 %v796
    %v798 = vpop.xlane.xlu0 %797
    %v799 = vsel %vm96, %v743, 0.0
    %800 = vadd.xlane.f32.xlu0 %v799
    %v801 = vpop.xlane.xlu0 %800
    %v802 = vsel %vm96, %v744, 0.0
    %803 = vadd.xlane.f32.xlu0 %v802
    %v804 = vpop.xlane.xlu0 %803
    %v805 = vsel %vm96, %v745, 0.0
    %806 = vadd.xlane.f32.xlu0 %v805
    %v807 = vpop.xlane.xlu0 %806
    %v808 = vsel %vm96, %v746, 0.0
    %809 = vadd.xlane.f32.xlu0 %v808
    %v810 = vpop.xlane.xlu0 %809
    %v811 = vsel %vm96, %v747, 0.0
    %812 = vadd.xlane.f32.xlu0 %v811
    %v813 = vpop.xlane.xlu0 %812
    %v814 = vsel %vm96, %v748, 0.0
    %815 = vadd.xlane.f32.xlu0 %v814
    %v816 = vpop.xlane.xlu0 %815
    %v817 = vsel %vm96, %v749, 0.0
    %818 = vadd.xlane.f32.xlu0 %v817
    %v819 = vpop.xlane.xlu0 %818
    %v820 = vsel %vm96, %v750, 0.0
    %821 = vadd.xlane.f32.xlu0 %v820
    %v822 = vpop.xlane.xlu0 %821
    %v823 = vsel %vm96, %v751, 0.0
    %824 = vadd.xlane.f32.xlu0 %v823
    %v825 = vpop.xlane.xlu0 %824
    %v826 = vsel %vm96, %v752, 0.0
    %827 = vadd.xlane.f32.xlu0 %v826
    %v828 = vpop.xlane.xlu0 %827
    %v829 = vsel %vm96, %v753, 0.0
    %830 = vadd.xlane.f32.xlu0 %v829
    %v831 = vpop.xlane.xlu0 %830
    %v832 = vsel %vm96, %v754, 0.0
    %833 = vadd.xlane.f32.xlu0 %v832
    %v834 = vpop.xlane.xlu0 %833
    %v835 = vsel %vm96, %v755, 0.0
    %836 = vadd.xlane.f32.xlu0 %v835
    %v837 = vpop.xlane.xlu0 %836
    %v838 = vsel %vm96, %v756, 0.0
    %839 = vadd.xlane.f32.xlu0 %v838
    %v840 = vpop.xlane.xlu0 %839
    %v841 = vsel %vm96, %v757, 0.0
    %842 = vadd.xlane.f32.xlu0 %v841
    %v843 = vpop.xlane.xlu0 %842
    %v844 = vsel %vm96, %v758, 0.0
    %845 = vadd.xlane.f32.xlu0 %v844
    %v846 = vpop.xlane.xlu0 %845
    %v847 = vsel %vm96, %v759, 0.0
    %848 = vadd.xlane.f32.xlu0 %v847
    %v849 = vpop.xlane.xlu0 %848
    %v850 = vsel %vm96, %v760, 0.0
    %851 = vadd.xlane.f32.xlu0 %v850
    %v852 = vpop.xlane.xlu0 %851
    %v853 = vsel %vm96, %v761, 0.0
    %854 = vadd.xlane.f32.xlu0 %v853
    %v855 = vpop.xlane.xlu0 %854
    %v856 = vsel %vm96, %v762, 0.0
    %857 = vadd.xlane.f32.xlu0 %v856
    %v858 = vpop.xlane.xlu0 %857
    %v891 = vlaneseq
    %v892 = vand.u32 %v891, 127
    %v893 = vlaneseq
    %v894 = vshrl.u32 %v893, 7
    %v895 = vsub.s32 %v892, %v894
    %v896 = vrot.slane %v765, %v895
    %v897 = vlaneseq
    %v898 = vshrl.u32 %v897, 7
    %v899 = vsub.s32 %v892, %v898
    %v900 = vrot.slane %v768, %v899
    %v901 = vlaneseq
    %v902 = vshrl.u32 %v901, 7
    %v903 = vsub.s32 %v892, %v902
    %v904 = vrot.slane %v771, %v903
    %v905 = vlaneseq
    %v906 = vshrl.u32 %v905, 7
    %v907 = vsub.s32 %v892, %v906
    %v908 = vrot.slane %v774, %v907
    %v909 = vlaneseq
    %v910 = vshrl.u32 %v909, 7
    %v911 = vsub.s32 %v892, %v910
    %v912 = vrot.slane %v777, %v911
    %v913 = vlaneseq
    %v914 = vshrl.u32 %v913, 7
    %v915 = vsub.s32 %v892, %v914
    %v916 = vrot.slane %v780, %v915
    %v917 = vlaneseq
    %v918 = vshrl.u32 %v917, 7
    %v919 = vsub.s32 %v892, %v918
    %v920 = vrot.slane %v783, %v919
    %v921 = vlaneseq
    %v922 = vshrl.u32 %v921, 7
    %v923 = vsub.s32 %v892, %v922
    %v924 = vrot.slane %v786, %v923
    %v925 = vlaneseq
    %v926 = vshrl.u32 %v925, 7
    %v927 = vsub.s32 %v892, %v926
    %v928 = vrot.slane %v789, %v927
    %v929 = vlaneseq
    %v930 = vshrl.u32 %v929, 7
    %v931 = vsub.s32 %v892, %v930
    %v932 = vrot.slane %v792, %v931
    %v933 = vlaneseq
    %v934 = vshrl.u32 %v933, 7
    %v935 = vsub.s32 %v892, %v934
    %v936 = vrot.slane %v795, %v935
    %v937 = vlaneseq
    %v938 = vshrl.u32 %v937, 7
    %v939 = vsub.s32 %v892, %v938
    %v940 = vrot.slane %v798, %v939
    %v941 = vlaneseq
    %v942 = vshrl.u32 %v941, 7
    %v943 = vsub.s32 %v892, %v942
    %v944 = vrot.slane %v801, %v943
    %v945 = vlaneseq
    %v946 = vshrl.u32 %v945, 7
    %v947 = vsub.s32 %v892, %v946
    %v948 = vrot.slane %v804, %v947
    %v949 = vlaneseq
    %v950 = vshrl.u32 %v949, 7
    %v951 = vsub.s32 %v892, %v950
    %v952 = vrot.slane %v807, %v951
    %v953 = vlaneseq
    %v954 = vshrl.u32 %v953, 7
    %v955 = vsub.s32 %v892, %v954
    %v956 = vrot.slane %v810, %v955
    %v957 = vlaneseq
    %v958 = vshrl.u32 %v957, 7
    %v959 = vsub.s32 %v892, %v958
    %v960 = vrot.slane %v813, %v959
    %v961 = vlaneseq
    %v962 = vshrl.u32 %v961, 7
    %v963 = vsub.s32 %v892, %v962
    %v964 = vrot.slane %v816, %v963
    %v965 = vlaneseq
    %v966 = vshrl.u32 %v965, 7
    %v967 = vsub.s32 %v892, %v966
    %v968 = vrot.slane %v819, %v967
    %v969 = vlaneseq
    %v970 = vshrl.u32 %v969, 7
    %v971 = vsub.s32 %v892, %v970
    %v972 = vrot.slane %v822, %v971
    %v973 = vlaneseq
    %v974 = vshrl.u32 %v973, 7
    %v975 = vsub.s32 %v892, %v974
    %v976 = vrot.slane %v825, %v975
    %v977 = vlaneseq
    %v978 = vshrl.u32 %v977, 7
    %v979 = vsub.s32 %v892, %v978
    %v980 = vrot.slane %v828, %v979
    %v981 = vlaneseq
    %v982 = vshrl.u32 %v981, 7
    %v983 = vsub.s32 %v892, %v982
    %v984 = vrot.slane %v831, %v983
    %v985 = vlaneseq
    %v986 = vshrl.u32 %v985, 7
    %v987 = vsub.s32 %v892, %v986
    %v988 = vrot.slane %v834, %v987
    %v989 = vlaneseq
    %v990 = vshrl.u32 %v989, 7
    %v991 = vsub.s32 %v892, %v990
    %v992 = vrot.slane %v837, %v991
    %v993 = vlaneseq
    %v994 = vshrl.u32 %v993, 7
    %v995 = vsub.s32 %v892, %v994
    %v996 = vrot.slane %v840, %v995
    %v997 = vlaneseq
    %v998 = vshrl.u32 %v997, 7
    %v999 = vsub.s32 %v892, %v998
    %v1000 = vrot.slane %v843, %v999
    %v1001 = vlaneseq
    %v1002 = vshrl.u32 %v1001, 7
    %v1003 = vsub.s32 %v892, %v1002
    %v1004 = vrot.slane %v846, %v1003
    %v1005 = vlaneseq
    %v1006 = vshrl.u32 %v1005, 7
    %v1007 = vsub.s32 %v892, %v1006
    %v1008 = vrot.slane %v849, %v1007
    %v1009 = vlaneseq
    %v1010 = vshrl.u32 %v1009, 7
    %v1011 = vsub.s32 %v892, %v1010
    %v1012 = vrot.slane %v852, %v1011
    %v1013 = vlaneseq
    %v1014 = vshrl.u32 %v1013, 7
    %v1015 = vsub.s32 %v892, %v1014
    %v1016 = vrot.slane %v855, %v1015
    %v1017 = vlaneseq
    %v1018 = vshrl.u32 %v1017, 7
    %v1019 = vsub.s32 %v892, %v1018
    %v1020 = vrot.slane %v858, %v1019
    %vm1021 = vcmask 1041409
    %v1022 = vsel %vm1021, %v900, %v896
    %vm1023 = vcmask 1042434
    %v1024 = vsel %vm1023, %v904, %v1022
    %vm1025 = vcmask 1043459
    %v1026 = vsel %vm1025, %v908, %v1024
    %vm1027 = vcmask 1044484
    %v1028 = vsel %vm1027, %v912, %v1026
    %vm1029 = vcmask 1045509
    %v1030 = vsel %vm1029, %v916, %v1028
    %vm1031 = vcmask 1046534
    %v1032 = vsel %vm1031, %v920, %v1030
    %vm1033 = vcmask 1047559
    %v1034 = vsel %vm1033, %v924, %v1032
    %v1035 = vsel %vm1021, %v932, %v928
    %v1036 = vsel %vm1023, %v936, %v1035
    %v1037 = vsel %vm1025, %v940, %v1036
    %v1038 = vsel %vm1027, %v944, %v1037
    %v1039 = vsel %vm1029, %v948, %v1038
    %v1040 = vsel %vm1031, %v952, %v1039
    %v1041 = vsel %vm1033, %v956, %v1040
    %v1042 = vsel %vm1021, %v964, %v960
    %v1043 = vsel %vm1023, %v968, %v1042
    %v1044 = vsel %vm1025, %v972, %v1043
    %v1045 = vsel %vm1027, %v976, %v1044
    %v1046 = vsel %vm1029, %v980, %v1045
    %v1047 = vsel %vm1031, %v984, %v1046
    %v1048 = vsel %vm1033, %v988, %v1047
    %v1049 = vsel %vm1021, %v996, %v992
    %v1050 = vsel %vm1023, %v1000, %v1049
    %v1051 = vsel %vm1025, %v1004, %v1050
    %v1052 = vsel %vm1027, %v1008, %v1051
    %v1053 = vsel %vm1029, %v1012, %v1052
    %v1054 = vsel %vm1031, %v1016, %v1053
    %v1055 = vsel %vm1033, %v1020, %v1054
    %vm1060 = vcmask 64512
    %v1061 = vsel %vm1060, %v1034, -inf
    %1062 = vmax.xlane.f32.xlu0 %v1061
    %v1063 = vpop.xlane.xlu0 %1062
    %v1064 = vsel %vm1060, %v1041, -inf
    %1065 = vmax.xlane.f32.xlu0 %v1064
    %v1066 = vpop.xlane.xlu0 %1065
    %v1067 = vsel %vm1060, %v1048, -inf
    %1068 = vmax.xlane.f32.xlu0 %v1067
    %v1069 = vpop.xlane.xlu0 %1068
    %v1070 = vsel %vm1060, %v1055, -inf
    %1071 = vmax.xlane.f32.xlu0 %v1070
    %v1072 = vpop.xlane.xlu0 %1071
    %v1077 = vlaneseq
    %v1078 = vshrl.u32 %v1077, 7
    %v1079 = vsub.s32 0, %v1078
    %v1080 = vrot.slane %v1063, %v1079
    %v1081 = vlaneseq
    %v1082 = vshrl.u32 %v1081, 7
    %v1083 = vsub.s32 1, %v1082
    %v1084 = vrot.slane %v1063, %v1083
    %v1085 = vlaneseq
    %v1086 = vshrl.u32 %v1085, 7
    %v1087 = vsub.s32 2, %v1086
    %v1088 = vrot.slane %v1063, %v1087
    %v1089 = vlaneseq
    %v1090 = vshrl.u32 %v1089, 7
    %v1091 = vsub.s32 3, %v1090
    %v1092 = vrot.slane %v1063, %v1091
    %v1093 = vlaneseq
    %v1094 = vshrl.u32 %v1093, 7
    %v1095 = vsub.s32 4, %v1094
    %v1096 = vrot.slane %v1063, %v1095
    %v1097 = vlaneseq
    %v1098 = vshrl.u32 %v1097, 7
    %v1099 = vsub.s32 5, %v1098
    %v1100 = vrot.slane %v1063, %v1099
    %v1101 = vlaneseq
    %v1102 = vshrl.u32 %v1101, 7
    %v1103 = vsub.s32 6, %v1102
    %v1104 = vrot.slane %v1063, %v1103
    %v1105 = vlaneseq
    %v1106 = vshrl.u32 %v1105, 7
    %v1107 = vsub.s32 7, %v1106
    %v1108 = vrot.slane %v1063, %v1107
    %v1109 = vlaneseq
    %v1110 = vshrl.u32 %v1109, 7
    %v1111 = vsub.s32 0, %v1110
    %v1112 = vrot.slane %v1066, %v1111
    %v1113 = vlaneseq
    %v1114 = vshrl.u32 %v1113, 7
    %v1115 = vsub.s32 1, %v1114
    %v1116 = vrot.slane %v1066, %v1115
    %v1117 = vlaneseq
    %v1118 = vshrl.u32 %v1117, 7
    %v1119 = vsub.s32 2, %v1118
    %v1120 = vrot.slane %v1066, %v1119
    %v1121 = vlaneseq
    %v1122 = vshrl.u32 %v1121, 7
    %v1123 = vsub.s32 3, %v1122
    %v1124 = vrot.slane %v1066, %v1123
    %v1125 = vlaneseq
    %v1126 = vshrl.u32 %v1125, 7
    %v1127 = vsub.s32 4, %v1126
    %v1128 = vrot.slane %v1066, %v1127
    %v1129 = vlaneseq
    %v1130 = vshrl.u32 %v1129, 7
    %v1131 = vsub.s32 5, %v1130
    %v1132 = vrot.slane %v1066, %v1131
    %v1133 = vlaneseq
    %v1134 = vshrl.u32 %v1133, 7
    %v1135 = vsub.s32 6, %v1134
    %v1136 = vrot.slane %v1066, %v1135
    %v1137 = vlaneseq
    %v1138 = vshrl.u32 %v1137, 7
    %v1139 = vsub.s32 7, %v1138
    %v1140 = vrot.slane %v1066, %v1139
    %v1141 = vlaneseq
    %v1142 = vshrl.u32 %v1141, 7
    %v1143 = vsub.s32 0, %v1142
    %v1144 = vrot.slane %v1069, %v1143
    %v1145 = vlaneseq
    %v1146 = vshrl.u32 %v1145, 7
    %v1147 = vsub.s32 1, %v1146
    %v1148 = vrot.slane %v1069, %v1147
    %v1149 = vlaneseq
    %v1150 = vshrl.u32 %v1149, 7
    %v1151 = vsub.s32 2, %v1150
    %v1152 = vrot.slane %v1069, %v1151
    %v1153 = vlaneseq
    %v1154 = vshrl.u32 %v1153, 7
    %v1155 = vsub.s32 3, %v1154
    %v1156 = vrot.slane %v1069, %v1155
    %v1157 = vlaneseq
    %v1158 = vshrl.u32 %v1157, 7
    %v1159 = vsub.s32 4, %v1158
    %v1160 = vrot.slane %v1069, %v1159
    %v1161 = vlaneseq
    %v1162 = vshrl.u32 %v1161, 7
    %v1163 = vsub.s32 5, %v1162
    %v1164 = vrot.slane %v1069, %v1163
    %v1165 = vlaneseq
    %v1166 = vshrl.u32 %v1165, 7
    %v1167 = vsub.s32 6, %v1166
    %v1168 = vrot.slane %v1069, %v1167
    %v1169 = vlaneseq
    %v1170 = vshrl.u32 %v1169, 7
    %v1171 = vsub.s32 7, %v1170
    %v1172 = vrot.slane %v1069, %v1171
    %v1173 = vlaneseq
    %v1174 = vshrl.u32 %v1173, 7
    %v1175 = vsub.s32 0, %v1174
    %v1176 = vrot.slane %v1072, %v1175
    %v1177 = vlaneseq
    %v1178 = vshrl.u32 %v1177, 7
    %v1179 = vsub.s32 1, %v1178
    %v1180 = vrot.slane %v1072, %v1179
    %v1181 = vlaneseq
    %v1182 = vshrl.u32 %v1181, 7
    %v1183 = vsub.s32 2, %v1182
    %v1184 = vrot.slane %v1072, %v1183
    %v1185 = vlaneseq
    %v1186 = vshrl.u32 %v1185, 7
    %v1187 = vsub.s32 3, %v1186
    %v1188 = vrot.slane %v1072, %v1187
    %v1189 = vlaneseq
    %v1190 = vshrl.u32 %v1189, 7
    %v1191 = vsub.s32 4, %v1190
    %v1192 = vrot.slane %v1072, %v1191
    %v1193 = vlaneseq
    %v1194 = vshrl.u32 %v1193, 7
    %v1195 = vsub.s32 5, %v1194
    %v1196 = vrot.slane %v1072, %v1195
    %v1197 = vlaneseq
    %v1198 = vshrl.u32 %v1197, 7
    %v1199 = vsub.s32 6, %v1198
    %v1200 = vrot.slane %v1072, %v1199
    %v1201 = vlaneseq
    %v1202 = vshrl.u32 %v1201, 7
    %v1203 = vsub.s32 7, %v1202
    %v1204 = vrot.slane %v1072, %v1203
    %v1237 = vsub.f32 %v765, %v1080
    %v1238 = vsub.f32 %v768, %v1084
    %v1239 = vsub.f32 %v771, %v1088
    %v1240 = vsub.f32 %v774, %v1092
    %v1241 = vsub.f32 %v777, %v1096
    %v1242 = vsub.f32 %v780, %v1100
    %v1243 = vsub.f32 %v783, %v1104
    %v1244 = vsub.f32 %v786, %v1108
    %v1245 = vsub.f32 %v789, %v1112
    %v1246 = vsub.f32 %v792, %v1116
    %v1247 = vsub.f32 %v795, %v1120
    %v1248 = vsub.f32 %v798, %v1124
    %v1249 = vsub.f32 %v801, %v1128
    %v1250 = vsub.f32 %v804, %v1132
    %v1251 = vsub.f32 %v807, %v1136
    %v1252 = vsub.f32 %v810, %v1140
    %v1253 = vsub.f32 %v813, %v1144
    %v1254 = vsub.f32 %v816, %v1148
    %v1255 = vsub.f32 %v819, %v1152
    %v1256 = vsub.f32 %v822, %v1156
    %v1257 = vsub.f32 %v825, %v1160
    %v1258 = vsub.f32 %v828, %v1164
    %v1259 = vsub.f32 %v831, %v1168
    %v1260 = vsub.f32 %v834, %v1172
    %v1261 = vsub.f32 %v837, %v1176
    %v1262 = vsub.f32 %v840, %v1180
    %v1263 = vsub.f32 %v843, %v1184
    %v1264 = vsub.f32 %v846, %v1188
    %v1265 = vsub.f32 %v849, %v1192
    %v1266 = vsub.f32 %v852, %v1196
    %v1267 = vsub.f32 %v855, %v1200
    %v1268 = vsub.f32 %v858, %v1204
    %v1269 = vmul.f32 %v1237, 1.442695
    %v1270 = vpow.pop %v1269
    %v1271 = vmul.f32 %v1238, 1.442695
    %v1272 = vpow.pop %v1271
    %v1273 = vmul.f32 %v1239, 1.442695
    %v1274 = vpow.pop %v1273
    %v1275 = vmul.f32 %v1240, 1.442695
    %v1276 = vpow.pop %v1275
    %v1277 = vmul.f32 %v1241, 1.442695
    %v1278 = vpow.pop %v1277
    %v1279 = vmul.f32 %v1242, 1.442695
    %v1280 = vpow.pop %v1279
    %v1281 = vmul.f32 %v1243, 1.442695
    %v1282 = vpow.pop %v1281
    %v1283 = vmul.f32 %v1244, 1.442695
    %v1284 = vpow.pop %v1283
    %v1285 = vmul.f32 %v1245, 1.442695
    %v1286 = vpow.pop %v1285
    %v1287 = vmul.f32 %v1246, 1.442695
    %v1288 = vpow.pop %v1287
    %v1289 = vmul.f32 %v1247, 1.442695
    %v1290 = vpow.pop %v1289
    %v1291 = vmul.f32 %v1248, 1.442695
    %v1292 = vpow.pop %v1291
    %v1293 = vmul.f32 %v1249, 1.442695
    %v1294 = vpow.pop %v1293
    %v1295 = vmul.f32 %v1250, 1.442695
    %v1296 = vpow.pop %v1295
    %v1297 = vmul.f32 %v1251, 1.442695
    %v1298 = vpow.pop %v1297
    %v1299 = vmul.f32 %v1252, 1.442695
    %v1300 = vpow.pop %v1299
    %v1301 = vmul.f32 %v1253, 1.442695
    %v1302 = vpow.pop %v1301
    %v1303 = vmul.f32 %v1254, 1.442695
    %v1304 = vpow.pop %v1303
    %v1305 = vmul.f32 %v1255, 1.442695
    %v1306 = vpow.pop %v1305
    %v1307 = vmul.f32 %v1256, 1.442695
    %v1308 = vpow.pop %v1307
    %v1309 = vmul.f32 %v1257, 1.442695
    %v1310 = vpow.pop %v1309
    %v1311 = vmul.f32 %v1258, 1.442695
    %v1312 = vpow.pop %v1311
    %v1313 = vmul.f32 %v1259, 1.442695
    %v1314 = vpow.pop %v1313
    %v1315 = vmul.f32 %v1260, 1.442695
    %v1316 = vpow.pop %v1315
    %v1317 = vmul.f32 %v1261, 1.442695
    %v1318 = vpow.pop %v1317
    %v1319 = vmul.f32 %v1262, 1.442695
    %v1320 = vpow.pop %v1319
    %v1321 = vmul.f32 %v1263, 1.442695
    %v1322 = vpow.pop %v1321
    %v1323 = vmul.f32 %v1264, 1.442695
    %v1324 = vpow.pop %v1323
    %v1325 = vmul.f32 %v1265, 1.442695
    %v1326 = vpow.pop %v1325
    %v1327 = vmul.f32 %v1266, 1.442695
    %v1328 = vpow.pop %v1327
    %v1329 = vmul.f32 %v1267, 1.442695
    %v1330 = vpow.pop %v1329
    %v1331 = vmul.f32 %v1268, 1.442695
    %v1332 = vpow.pop %v1331
    %1365 = vset.pattern.permute.xlu0 0
    %1366 = vperm.xlu0 %1365, %v1270
    %v1367 = vpop.permute.xlu0 %1366
    %1368 = vset.pattern.permute.xlu0 0
    %1369 = vperm.xlu0 %1368, %v1272
    %v1370 = vpop.permute.xlu0 %1369
    %1371 = vset.pattern.permute.xlu0 0
    %1372 = vperm.xlu0 %1371, %v1274
    %v1373 = vpop.permute.xlu0 %1372
    %1374 = vset.pattern.permute.xlu0 0
    %1375 = vperm.xlu0 %1374, %v1276
    %v1376 = vpop.permute.xlu0 %1375
    %1377 = vset.pattern.permute.xlu0 0
    %1378 = vperm.xlu0 %1377, %v1278
    %v1379 = vpop.permute.xlu0 %1378
    %1380 = vset.pattern.permute.xlu0 0
    %1381 = vperm.xlu0 %1380, %v1280
    %v1382 = vpop.permute.xlu0 %1381
    %1383 = vset.pattern.permute.xlu0 0
    %1384 = vperm.xlu0 %1383, %v1282
    %v1385 = vpop.permute.xlu0 %1384
    %1386 = vset.pattern.permute.xlu0 0
    %1387 = vperm.xlu0 %1386, %v1284
    %v1388 = vpop.permute.xlu0 %1387
    %1389 = vset.pattern.permute.xlu0 0
    %1390 = vperm.xlu0 %1389, %v1286
    %v1391 = vpop.permute.xlu0 %1390
    %1392 = vset.pattern.permute.xlu0 0
    %1393 = vperm.xlu0 %1392, %v1288
    %v1394 = vpop.permute.xlu0 %1393
    %1395 = vset.pattern.permute.xlu0 0
    %1396 = vperm.xlu0 %1395, %v1290
    %v1397 = vpop.permute.xlu0 %1396
    %1398 = vset.pattern.permute.xlu0 0
    %1399 = vperm.xlu0 %1398, %v1292
    %v1400 = vpop.permute.xlu0 %1399
    %1401 = vset.pattern.permute.xlu0 0
    %1402 = vperm.xlu0 %1401, %v1294
    %v1403 = vpop.permute.xlu0 %1402
    %1404 = vset.pattern.permute.xlu0 0
    %1405 = vperm.xlu0 %1404, %v1296
    %v1406 = vpop.permute.xlu0 %1405
    %1407 = vset.pattern.permute.xlu0 0
    %1408 = vperm.xlu0 %1407, %v1298
    %v1409 = vpop.permute.xlu0 %1408
    %1410 = vset.pattern.permute.xlu0 0
    %1411 = vperm.xlu0 %1410, %v1300
    %v1412 = vpop.permute.xlu0 %1411
    %1413 = vset.pattern.permute.xlu0 0
    %1414 = vperm.xlu0 %1413, %v1302
    %v1415 = vpop.permute.xlu0 %1414
    %1416 = vset.pattern.permute.xlu0 0
    %1417 = vperm.xlu0 %1416, %v1304
    %v1418 = vpop.permute.xlu0 %1417
    %1419 = vset.pattern.permute.xlu0 0
    %1420 = vperm.xlu0 %1419, %v1306
    %v1421 = vpop.permute.xlu0 %1420
    %1422 = vset.pattern.permute.xlu0 0
    %1423 = vperm.xlu0 %1422, %v1308
    %v1424 = vpop.permute.xlu0 %1423
    %1425 = vset.pattern.permute.xlu0 0
    %1426 = vperm.xlu0 %1425, %v1310
    %v1427 = vpop.permute.xlu0 %1426
    %1428 = vset.pattern.permute.xlu0 0
    %1429 = vperm.xlu0 %1428, %v1312
    %v1430 = vpop.permute.xlu0 %1429
    %1431 = vset.pattern.permute.xlu0 0
    %1432 = vperm.xlu0 %1431, %v1314
    %v1433 = vpop.permute.xlu0 %1432
    %1434 = vset.pattern.permute.xlu0 0
    %1435 = vperm.xlu0 %1434, %v1316
    %v1436 = vpop.permute.xlu0 %1435
    %1437 = vset.pattern.permute.xlu0 0
    %1438 = vperm.xlu0 %1437, %v1318
    %v1439 = vpop.permute.xlu0 %1438
    %1440 = vset.pattern.permute.xlu0 0
    %1441 = vperm.xlu0 %1440, %v1320
    %v1442 = vpop.permute.xlu0 %1441
    %1443 = vset.pattern.permute.xlu0 0
    %1444 = vperm.xlu0 %1443, %v1322
    %v1445 = vpop.permute.xlu0 %1444
    %1446 = vset.pattern.permute.xlu0 0
    %1447 = vperm.xlu0 %1446, %v1324
    %v1448 = vpop.permute.xlu0 %1447
    %1449 = vset.pattern.permute.xlu0 0
    %1450 = vperm.xlu0 %1449, %v1326
    %v1451 = vpop.permute.xlu0 %1450
    %1452 = vset.pattern.permute.xlu0 0
    %1453 = vperm.xlu0 %1452, %v1328
    %v1454 = vpop.permute.xlu0 %1453
    %1455 = vset.pattern.permute.xlu0 0
    %1456 = vperm.xlu0 %1455, %v1330
    %v1457 = vpop.permute.xlu0 %1456
    %1458 = vset.pattern.permute.xlu0 0
    %1459 = vperm.xlu0 %1458, %v1332
    %v1460 = vpop.permute.xlu0 %1459
    %v1461 = vlaneseq
    %v1462 = vshrl.u32 %v1461, 7
    %v1463 = vsub.s32 %v892, %v1462
    %v1464 = vrot.slane %v1367, %v1463
    %v1465 = vlaneseq
    %v1466 = vshrl.u32 %v1465, 7
    %v1467 = vsub.s32 %v892, %v1466
    %v1468 = vrot.slane %v1370, %v1467
    %v1469 = vlaneseq
    %v1470 = vshrl.u32 %v1469, 7
    %v1471 = vsub.s32 %v892, %v1470
    %v1472 = vrot.slane %v1373, %v1471
    %v1473 = vlaneseq
    %v1474 = vshrl.u32 %v1473, 7
    %v1475 = vsub.s32 %v892, %v1474
    %v1476 = vrot.slane %v1376, %v1475
    %v1477 = vlaneseq
    %v1478 = vshrl.u32 %v1477, 7
    %v1479 = vsub.s32 %v892, %v1478
    %v1480 = vrot.slane %v1379, %v1479
    %v1481 = vlaneseq
    %v1482 = vshrl.u32 %v1481, 7
    %v1483 = vsub.s32 %v892, %v1482
    %v1484 = vrot.slane %v1382, %v1483
    %v1485 = vlaneseq
    %v1486 = vshrl.u32 %v1485, 7
    %v1487 = vsub.s32 %v892, %v1486
    %v1488 = vrot.slane %v1385, %v1487
    %v1489 = vlaneseq
    %v1490 = vshrl.u32 %v1489, 7
    %v1491 = vsub.s32 %v892, %v1490
    %v1492 = vrot.slane %v1388, %v1491
    %v1493 = vlaneseq
    %v1494 = vshrl.u32 %v1493, 7
    %v1495 = vsub.s32 %v892, %v1494
    %v1496 = vrot.slane %v1391, %v1495
    %v1497 = vlaneseq
    %v1498 = vshrl.u32 %v1497, 7
    %v1499 = vsub.s32 %v892, %v1498
    %v1500 = vrot.slane %v1394, %v1499
    %v1501 = vlaneseq
    %v1502 = vshrl.u32 %v1501, 7
    %v1503 = vsub.s32 %v892, %v1502
    %v1504 = vrot.slane %v1397, %v1503
    %v1505 = vlaneseq
    %v1506 = vshrl.u32 %v1505, 7
    %v1507 = vsub.s32 %v892, %v1506
    %v1508 = vrot.slane %v1400, %v1507
    %v1509 = vlaneseq
    %v1510 = vshrl.u32 %v1509, 7
    %v1511 = vsub.s32 %v892, %v1510
    %v1512 = vrot.slane %v1403, %v1511
    %v1513 = vlaneseq
    %v1514 = vshrl.u32 %v1513, 7
    %v1515 = vsub.s32 %v892, %v1514
    %v1516 = vrot.slane %v1406, %v1515
    %v1517 = vlaneseq
    %v1518 = vshrl.u32 %v1517, 7
    %v1519 = vsub.s32 %v892, %v1518
    %v1520 = vrot.slane %v1409, %v1519
    %v1521 = vlaneseq
    %v1522 = vshrl.u32 %v1521, 7
    %v1523 = vsub.s32 %v892, %v1522
    %v1524 = vrot.slane %v1412, %v1523
    %v1525 = vlaneseq
    %v1526 = vshrl.u32 %v1525, 7
    %v1527 = vsub.s32 %v892, %v1526
    %v1528 = vrot.slane %v1415, %v1527
    %v1529 = vlaneseq
    %v1530 = vshrl.u32 %v1529, 7
    %v1531 = vsub.s32 %v892, %v1530
    %v1532 = vrot.slane %v1418, %v1531
    %v1533 = vlaneseq
    %v1534 = vshrl.u32 %v1533, 7
    %v1535 = vsub.s32 %v892, %v1534
    %v1536 = vrot.slane %v1421, %v1535
    %v1537 = vlaneseq
    %v1538 = vshrl.u32 %v1537, 7
    %v1539 = vsub.s32 %v892, %v1538
    %v1540 = vrot.slane %v1424, %v1539
    %v1541 = vlaneseq
    %v1542 = vshrl.u32 %v1541, 7
    %v1543 = vsub.s32 %v892, %v1542
    %v1544 = vrot.slane %v1427, %v1543
    %v1545 = vlaneseq
    %v1546 = vshrl.u32 %v1545, 7
    %v1547 = vsub.s32 %v892, %v1546
    %v1548 = vrot.slane %v1430, %v1547
    %v1549 = vlaneseq
    %v1550 = vshrl.u32 %v1549, 7
    %v1551 = vsub.s32 %v892, %v1550
    %v1552 = vrot.slane %v1433, %v1551
    %v1553 = vlaneseq
    %v1554 = vshrl.u32 %v1553, 7
    %v1555 = vsub.s32 %v892, %v1554
    %v1556 = vrot.slane %v1436, %v1555
    %v1557 = vlaneseq
    %v1558 = vshrl.u32 %v1557, 7
    %v1559 = vsub.s32 %v892, %v1558
    %v1560 = vrot.slane %v1439, %v1559
    %v1561 = vlaneseq
    %v1562 = vshrl.u32 %v1561, 7
    %v1563 = vsub.s32 %v892, %v1562
    %v1564 = vrot.slane %v1442, %v1563
    %v1565 = vlaneseq
    %v1566 = vshrl.u32 %v1565, 7
    %v1567 = vsub.s32 %v892, %v1566
    %v1568 = vrot.slane %v1445, %v1567
    %v1569 = vlaneseq
    %v1570 = vshrl.u32 %v1569, 7
    %v1571 = vsub.s32 %v892, %v1570
    %v1572 = vrot.slane %v1448, %v1571
    %v1573 = vlaneseq
    %v1574 = vshrl.u32 %v1573, 7
    %v1575 = vsub.s32 %v892, %v1574
    %v1576 = vrot.slane %v1451, %v1575
    %v1577 = vlaneseq
    %v1578 = vshrl.u32 %v1577, 7
    %v1579 = vsub.s32 %v892, %v1578
    %v1580 = vrot.slane %v1454, %v1579
    %v1581 = vlaneseq
    %v1582 = vshrl.u32 %v1581, 7
    %v1583 = vsub.s32 %v892, %v1582
    %v1584 = vrot.slane %v1457, %v1583
    %v1585 = vlaneseq
    %v1586 = vshrl.u32 %v1585, 7
    %v1587 = vsub.s32 %v892, %v1586
    %v1588 = vrot.slane %v1460, %v1587
    %v1589 = vsel %vm1021, %v1468, %v1464
    %v1590 = vsel %vm1023, %v1472, %v1589
    %v1591 = vsel %vm1025, %v1476, %v1590
    %v1592 = vsel %vm1027, %v1480, %v1591
    %v1593 = vsel %vm1029, %v1484, %v1592
    %v1594 = vsel %vm1031, %v1488, %v1593
    %v1595 = vsel %vm1033, %v1492, %v1594
    %v1596 = vsel %vm1021, %v1500, %v1496
    %v1597 = vsel %vm1023, %v1504, %v1596
    %v1598 = vsel %vm1025, %v1508, %v1597
    %v1599 = vsel %vm1027, %v1512, %v1598
    %v1600 = vsel %vm1029, %v1516, %v1599
    %v1601 = vsel %vm1031, %v1520, %v1600
    %v1602 = vsel %vm1033, %v1524, %v1601
    %v1603 = vsel %vm1021, %v1532, %v1528
    %v1604 = vsel %vm1023, %v1536, %v1603
    %v1605 = vsel %vm1025, %v1540, %v1604
    %v1606 = vsel %vm1027, %v1544, %v1605
    %v1607 = vsel %vm1029, %v1548, %v1606
    %v1608 = vsel %vm1031, %v1552, %v1607
    %v1609 = vsel %vm1033, %v1556, %v1608
    %v1610 = vsel %vm1021, %v1564, %v1560
    %v1611 = vsel %vm1023, %v1568, %v1610
    %v1612 = vsel %vm1025, %v1572, %v1611
    %v1613 = vsel %vm1027, %v1576, %v1612
    %v1614 = vsel %vm1029, %v1580, %v1613
    %v1615 = vsel %vm1031, %v1584, %v1614
    %v1616 = vsel %vm1033, %v1588, %v1615
    %v1621 = vsel %vm1060, %v1595, 0.0
    %1622 = vadd.xlane.f32.xlu0 %v1621
    %v1623 = vpop.xlane.xlu0 %1622
    %v1624 = vsel %vm1060, %v1602, 0.0
    %1625 = vadd.xlane.f32.xlu0 %v1624
    %v1626 = vpop.xlane.xlu0 %1625
    %v1627 = vsel %vm1060, %v1609, 0.0
    %1628 = vadd.xlane.f32.xlu0 %v1627
    %v1629 = vpop.xlane.xlu0 %1628
    %v1630 = vsel %vm1060, %v1616, 0.0
    %1631 = vadd.xlane.f32.xlu0 %v1630
    %v1632 = vpop.xlane.xlu0 %1631
    %v1633 = vrcp.pop %v1623
    %v1634 = vrcp.pop %v1626
    %v1635 = vrcp.pop %v1629
    %v1636 = vrcp.pop %v1632
    %v1641 = vlaneseq
    %v1642 = vshrl.u32 %v1641, 7
    %v1643 = vsub.s32 0, %v1642
    %v1644 = vrot.slane %v1633, %v1643
    %v1645 = vlaneseq
    %v1646 = vshrl.u32 %v1645, 7
    %v1647 = vsub.s32 1, %v1646
    %v1648 = vrot.slane %v1633, %v1647
    %v1649 = vlaneseq
    %v1650 = vshrl.u32 %v1649, 7
    %v1651 = vsub.s32 2, %v1650
    %v1652 = vrot.slane %v1633, %v1651
    %v1653 = vlaneseq
    %v1654 = vshrl.u32 %v1653, 7
    %v1655 = vsub.s32 3, %v1654
    %v1656 = vrot.slane %v1633, %v1655
    %v1657 = vlaneseq
    %v1658 = vshrl.u32 %v1657, 7
    %v1659 = vsub.s32 4, %v1658
    %v1660 = vrot.slane %v1633, %v1659
    %v1661 = vlaneseq
    %v1662 = vshrl.u32 %v1661, 7
    %v1663 = vsub.s32 5, %v1662
    %v1664 = vrot.slane %v1633, %v1663
    %v1665 = vlaneseq
    %v1666 = vshrl.u32 %v1665, 7
    %v1667 = vsub.s32 6, %v1666
    %v1668 = vrot.slane %v1633, %v1667
    %v1669 = vlaneseq
    %v1670 = vshrl.u32 %v1669, 7
    %v1671 = vsub.s32 7, %v1670
    %v1672 = vrot.slane %v1633, %v1671
    %v1673 = vlaneseq
    %v1674 = vshrl.u32 %v1673, 7
    %v1675 = vsub.s32 0, %v1674
    %v1676 = vrot.slane %v1634, %v1675
    %v1677 = vlaneseq
    %v1678 = vshrl.u32 %v1677, 7
    %v1679 = vsub.s32 1, %v1678
    %v1680 = vrot.slane %v1634, %v1679
    %v1681 = vlaneseq
    %v1682 = vshrl.u32 %v1681, 7
    %v1683 = vsub.s32 2, %v1682
    %v1684 = vrot.slane %v1634, %v1683
    %v1685 = vlaneseq
    %v1686 = vshrl.u32 %v1685, 7
    %v1687 = vsub.s32 3, %v1686
    %v1688 = vrot.slane %v1634, %v1687
    %v1689 = vlaneseq
    %v1690 = vshrl.u32 %v1689, 7
    %v1691 = vsub.s32 4, %v1690
    %v1692 = vrot.slane %v1634, %v1691
    %v1693 = vlaneseq
    %v1694 = vshrl.u32 %v1693, 7
    %v1695 = vsub.s32 5, %v1694
    %v1696 = vrot.slane %v1634, %v1695
    %v1697 = vlaneseq
    %v1698 = vshrl.u32 %v1697, 7
    %v1699 = vsub.s32 6, %v1698
    %v1700 = vrot.slane %v1634, %v1699
    %v1701 = vlaneseq
    %v1702 = vshrl.u32 %v1701, 7
    %v1703 = vsub.s32 7, %v1702
    %v1704 = vrot.slane %v1634, %v1703
    %v1705 = vlaneseq
    %v1706 = vshrl.u32 %v1705, 7
    %v1707 = vsub.s32 0, %v1706
    %v1708 = vrot.slane %v1635, %v1707
    %v1709 = vlaneseq
    %v1710 = vshrl.u32 %v1709, 7
    %v1711 = vsub.s32 1, %v1710
    %v1712 = vrot.slane %v1635, %v1711
    %v1713 = vlaneseq
    %v1714 = vshrl.u32 %v1713, 7
    %v1715 = vsub.s32 2, %v1714
    %v1716 = vrot.slane %v1635, %v1715
    %v1717 = vlaneseq
    %v1718 = vshrl.u32 %v1717, 7
    %v1719 = vsub.s32 3, %v1718
    %v1720 = vrot.slane %v1635, %v1719
    %v1721 = vlaneseq
    %v1722 = vshrl.u32 %v1721, 7
    %v1723 = vsub.s32 4, %v1722
    %v1724 = vrot.slane %v1635, %v1723
    %v1725 = vlaneseq
    %v1726 = vshrl.u32 %v1725, 7
    %v1727 = vsub.s32 5, %v1726
    %v1728 = vrot.slane %v1635, %v1727
    %v1729 = vlaneseq
    %v1730 = vshrl.u32 %v1729, 7
    %v1731 = vsub.s32 6, %v1730
    %v1732 = vrot.slane %v1635, %v1731
    %v1733 = vlaneseq
    %v1734 = vshrl.u32 %v1733, 7
    %v1735 = vsub.s32 7, %v1734
    %v1736 = vrot.slane %v1635, %v1735
    %v1737 = vlaneseq
    %v1738 = vshrl.u32 %v1737, 7
    %v1739 = vsub.s32 0, %v1738
    %v1740 = vrot.slane %v1636, %v1739
    %v1741 = vlaneseq
    %v1742 = vshrl.u32 %v1741, 7
    %v1743 = vsub.s32 1, %v1742
    %v1744 = vrot.slane %v1636, %v1743
    %v1745 = vlaneseq
    %v1746 = vshrl.u32 %v1745, 7
    %v1747 = vsub.s32 2, %v1746
    %v1748 = vrot.slane %v1636, %v1747
    %v1749 = vlaneseq
    %v1750 = vshrl.u32 %v1749, 7
    %v1751 = vsub.s32 3, %v1750
    %v1752 = vrot.slane %v1636, %v1751
    %v1753 = vlaneseq
    %v1754 = vshrl.u32 %v1753, 7
    %v1755 = vsub.s32 4, %v1754
    %v1756 = vrot.slane %v1636, %v1755
    %v1757 = vlaneseq
    %v1758 = vshrl.u32 %v1757, 7
    %v1759 = vsub.s32 5, %v1758
    %v1760 = vrot.slane %v1636, %v1759
    %v1761 = vlaneseq
    %v1762 = vshrl.u32 %v1761, 7
    %v1763 = vsub.s32 6, %v1762
    %v1764 = vrot.slane %v1636, %v1763
    %v1765 = vlaneseq
    %v1766 = vshrl.u32 %v1765, 7
    %v1767 = vsub.s32 7, %v1766
    %v1768 = vrot.slane %v1636, %v1767
    %v1801 = vmul.f32 %v1270, %v1644
    %v1802 = vmul.f32 %v1272, %v1648
    %v1803 = vmul.f32 %v1274, %v1652
    %v1804 = vmul.f32 %v1276, %v1656
    %v1805 = vmul.f32 %v1278, %v1660
    %v1806 = vmul.f32 %v1280, %v1664
    %v1807 = vmul.f32 %v1282, %v1668
    %v1808 = vmul.f32 %v1284, %v1672
    %v1809 = vmul.f32 %v1286, %v1676
    %v1810 = vmul.f32 %v1288, %v1680
    %v1811 = vmul.f32 %v1290, %v1684
    %v1812 = vmul.f32 %v1292, %v1688
    %v1813 = vmul.f32 %v1294, %v1692
    %v1814 = vmul.f32 %v1296, %v1696
    %v1815 = vmul.f32 %v1298, %v1700
    %v1816 = vmul.f32 %v1300, %v1704
    %v1817 = vmul.f32 %v1302, %v1708
    %v1818 = vmul.f32 %v1304, %v1712
    %v1819 = vmul.f32 %v1306, %v1716
    %v1820 = vmul.f32 %v1308, %v1720
    %v1821 = vmul.f32 %v1310, %v1724
    %v1822 = vmul.f32 %v1312, %v1728
    %v1823 = vmul.f32 %v1314, %v1732
    %v1824 = vmul.f32 %v1316, %v1736
    %v1825 = vmul.f32 %v1318, %v1740
    %v1826 = vmul.f32 %v1320, %v1744
    %v1827 = vmul.f32 %v1322, %v1748
    %v1828 = vmul.f32 %v1324, %v1752
    %v1829 = vmul.f32 %v1326, %v1756
    %v1830 = vmul.f32 %v1328, %v1760
    %v1831 = vmul.f32 %v1330, %v1764
    %v1832 = vmul.f32 %v1332, %v1768
    %v1865 = vcombine.high %v1801, %v1801
    %v1867 = vunpack.c.l.s4 1966171168
    %v1868 = vunpack.c.0.s8 %v1867
    %v1869 = vlaneseq
    %v1870 = vshrl.u32 %v1869, 7
    %v1871 = vsub.s32 %v1868, %v1870
    %v1872 = vrot.slane %v1801, %v1871
    %v1874 = vunpack.c.l.s4 1966171168
    %v1875 = vunpack.c.0.s8 %v1874
    %v1876 = vlaneseq
    %v1877 = vshrl.u32 %v1876, 7
    %v1878 = vsub.s32 %v1875, %v1877
    %v1879 = vrot.slane %v1865, %v1878
    %v1880 = vcombine.high %v1872, %v1872
    %v1881 = vcombine.high %v1879, %v1879
    %v1883 = vunpack.c.l.s4 1966171168
    %v1884 = vunpack.c.0.s8 %v1883
    %v1885 = vlaneseq
    %v1886 = vshrl.u32 %v1885, 7
    %v1887 = vsub.s32 %v1884, %v1886
    %v1888 = vrot.slane %v1872, %v1887
    %v1890 = vunpack.c.l.s4 1966171168
    %v1891 = vunpack.c.0.s8 %v1890
    %v1892 = vlaneseq
    %v1893 = vshrl.u32 %v1892, 7
    %v1894 = vsub.s32 %v1891, %v1893
    %v1895 = vrot.slane %v1879, %v1894
    %v1897 = vunpack.c.l.s4 1966171168
    %v1898 = vunpack.c.0.s8 %v1897
    %v1899 = vlaneseq
    %v1900 = vshrl.u32 %v1899, 7
    %v1901 = vsub.s32 %v1898, %v1900
    %v1902 = vrot.slane %v1880, %v1901
    %v1904 = vunpack.c.l.s4 1966171168
    %v1905 = vunpack.c.0.s8 %v1904
    %v1906 = vlaneseq
    %v1907 = vshrl.u32 %v1906, 7
    %v1908 = vsub.s32 %v1905, %v1907
    %v1909 = vrot.slane %v1881, %v1908
    %v1910 = vcombine.high %v1888, %v1888
    %v1911 = vcombine.high %v1895, %v1895
    %v1912 = vcombine.high %v1902, %v1902
    %v1913 = vcombine.high %v1909, %v1909
    %v1914 = vcombine.high %v1802, %v1802
    %v1916 = vunpack.c.l.s4 1966171168
    %v1917 = vunpack.c.0.s8 %v1916
    %v1918 = vlaneseq
    %v1919 = vshrl.u32 %v1918, 7
    %v1920 = vsub.s32 %v1917, %v1919
    %v1921 = vrot.slane %v1802, %v1920
    %v1923 = vunpack.c.l.s4 1966171168
    %v1924 = vunpack.c.0.s8 %v1923
    %v1925 = vlaneseq
    %v1926 = vshrl.u32 %v1925, 7
    %v1927 = vsub.s32 %v1924, %v1926
    %v1928 = vrot.slane %v1914, %v1927
    %v1929 = vcombine.high %v1921, %v1921
    %v1930 = vcombine.high %v1928, %v1928
    %v1932 = vunpack.c.l.s4 1966171168
    %v1933 = vunpack.c.0.s8 %v1932
    %v1934 = vlaneseq
    %v1935 = vshrl.u32 %v1934, 7
    %v1936 = vsub.s32 %v1933, %v1935
    %v1937 = vrot.slane %v1921, %v1936
    %v1939 = vunpack.c.l.s4 1966171168
    %v1940 = vunpack.c.0.s8 %v1939
    %v1941 = vlaneseq
    %v1942 = vshrl.u32 %v1941, 7
    %v1943 = vsub.s32 %v1940, %v1942
    %v1944 = vrot.slane %v1928, %v1943
    %v1946 = vunpack.c.l.s4 1966171168
    %v1947 = vunpack.c.0.s8 %v1946
    %v1948 = vlaneseq
    %v1949 = vshrl.u32 %v1948, 7
    %v1950 = vsub.s32 %v1947, %v1949
    %v1951 = vrot.slane %v1929, %v1950
    %v1953 = vunpack.c.l.s4 1966171168
    %v1954 = vunpack.c.0.s8 %v1953
    %v1955 = vlaneseq
    %v1956 = vshrl.u32 %v1955, 7
    %v1957 = vsub.s32 %v1954, %v1956
    %v1958 = vrot.slane %v1930, %v1957
    %v1959 = vcombine.high %v1937, %v1937
    %v1960 = vcombine.high %v1944, %v1944
    %v1961 = vcombine.high %v1951, %v1951
    %v1962 = vcombine.high %v1958, %v1958
    %v1963 = vcombine.high %v1803, %v1803
    %v1965 = vunpack.c.l.s4 1966171168
    %v1966 = vunpack.c.0.s8 %v1965
    %v1967 = vlaneseq
    %v1968 = vshrl.u32 %v1967, 7
    %v1969 = vsub.s32 %v1966, %v1968
    %v1970 = vrot.slane %v1803, %v1969
    %v1972 = vunpack.c.l.s4 1966171168
    %v1973 = vunpack.c.0.s8 %v1972
    %v1974 = vlaneseq
    %v1975 = vshrl.u32 %v1974, 7
    %v1976 = vsub.s32 %v1973, %v1975
    %v1977 = vrot.slane %v1963, %v1976
    %v1978 = vcombine.high %v1970, %v1970
    %v1979 = vcombine.high %v1977, %v1977
    %v1981 = vunpack.c.l.s4 1966171168
    %v1982 = vunpack.c.0.s8 %v1981
    %v1983 = vlaneseq
    %v1984 = vshrl.u32 %v1983, 7
    %v1985 = vsub.s32 %v1982, %v1984
    %v1986 = vrot.slane %v1970, %v1985
    %v1988 = vunpack.c.l.s4 1966171168
    %v1989 = vunpack.c.0.s8 %v1988
    %v1990 = vlaneseq
    %v1991 = vshrl.u32 %v1990, 7
    %v1992 = vsub.s32 %v1989, %v1991
    %v1993 = vrot.slane %v1977, %v1992
    %v1995 = vunpack.c.l.s4 1966171168
    %v1996 = vunpack.c.0.s8 %v1995
    %v1997 = vlaneseq
    %v1998 = vshrl.u32 %v1997, 7
    %v1999 = vsub.s32 %v1996, %v1998
    %v2000 = vrot.slane %v1978, %v1999
    %v2002 = vunpack.c.l.s4 1966171168
    %v2003 = vunpack.c.0.s8 %v2002
    %v2004 = vlaneseq
    %v2005 = vshrl.u32 %v2004, 7
    %v2006 = vsub.s32 %v2003, %v2005
    %v2007 = vrot.slane %v1979, %v2006
    %v2008 = vcombine.high %v1986, %v1986
    %v2009 = vcombine.high %v1993, %v1993
    %v2010 = vcombine.high %v2000, %v2000
    %v2011 = vcombine.high %v2007, %v2007
    %v2012 = vcombine.high %v1804, %v1804
    %v2014 = vunpack.c.l.s4 1966171168
    %v2015 = vunpack.c.0.s8 %v2014
    %v2016 = vlaneseq
    %v2017 = vshrl.u32 %v2016, 7
    %v2018 = vsub.s32 %v2015, %v2017
    %v2019 = vrot.slane %v1804, %v2018
    %v2021 = vunpack.c.l.s4 1966171168
    %v2022 = vunpack.c.0.s8 %v2021
    %v2023 = vlaneseq
    %v2024 = vshrl.u32 %v2023, 7
    %v2025 = vsub.s32 %v2022, %v2024
    %v2026 = vrot.slane %v2012, %v2025
    %v2027 = vcombine.high %v2019, %v2019
    %v2028 = vcombine.high %v2026, %v2026
    %v2030 = vunpack.c.l.s4 1966171168
    %v2031 = vunpack.c.0.s8 %v2030
    %v2032 = vlaneseq
    %v2033 = vshrl.u32 %v2032, 7
    %v2034 = vsub.s32 %v2031, %v2033
    %v2035 = vrot.slane %v2019, %v2034
    %v2037 = vunpack.c.l.s4 1966171168
    %v2038 = vunpack.c.0.s8 %v2037
    %v2039 = vlaneseq
    %v2040 = vshrl.u32 %v2039, 7
    %v2041 = vsub.s32 %v2038, %v2040
    %v2042 = vrot.slane %v2026, %v2041
    %v2044 = vunpack.c.l.s4 1966171168
    %v2045 = vunpack.c.0.s8 %v2044
    %v2046 = vlaneseq
    %v2047 = vshrl.u32 %v2046, 7
    %v2048 = vsub.s32 %v2045, %v2047
    %v2049 = vrot.slane %v2027, %v2048
    %v2051 = vunpack.c.l.s4 1966171168
    %v2052 = vunpack.c.0.s8 %v2051
    %v2053 = vlaneseq
    %v2054 = vshrl.u32 %v2053, 7
    %v2055 = vsub.s32 %v2052, %v2054
    %v2056 = vrot.slane %v2028, %v2055
    %v2057 = vcombine.high %v2035, %v2035
    %v2058 = vcombine.high %v2042, %v2042
    %v2059 = vcombine.high %v2049, %v2049
    %v2060 = vcombine.high %v2056, %v2056
    %v2061 = vcombine.high %v1805, %v1805
    %v2063 = vunpack.c.l.s4 1966171168
    %v2064 = vunpack.c.0.s8 %v2063
    %v2065 = vlaneseq
    %v2066 = vshrl.u32 %v2065, 7
    %v2067 = vsub.s32 %v2064, %v2066
    %v2068 = vrot.slane %v1805, %v2067
    %v2070 = vunpack.c.l.s4 1966171168
    %v2071 = vunpack.c.0.s8 %v2070
    %v2072 = vlaneseq
    %v2073 = vshrl.u32 %v2072, 7
    %v2074 = vsub.s32 %v2071, %v2073
    %v2075 = vrot.slane %v2061, %v2074
    %v2076 = vcombine.high %v2068, %v2068
    %v2077 = vcombine.high %v2075, %v2075
    %v2079 = vunpack.c.l.s4 1966171168
    %v2080 = vunpack.c.0.s8 %v2079
    %v2081 = vlaneseq
    %v2082 = vshrl.u32 %v2081, 7
    %v2083 = vsub.s32 %v2080, %v2082
    %v2084 = vrot.slane %v2068, %v2083
    %v2086 = vunpack.c.l.s4 1966171168
    %v2087 = vunpack.c.0.s8 %v2086
    %v2088 = vlaneseq
    %v2089 = vshrl.u32 %v2088, 7
    %v2090 = vsub.s32 %v2087, %v2089
    %v2091 = vrot.slane %v2075, %v2090
    %v2093 = vunpack.c.l.s4 1966171168
    %v2094 = vunpack.c.0.s8 %v2093
    %v2095 = vlaneseq
    %v2096 = vshrl.u32 %v2095, 7
    %v2097 = vsub.s32 %v2094, %v2096
    %v2098 = vrot.slane %v2076, %v2097
    %v2100 = vunpack.c.l.s4 1966171168
    %v2101 = vunpack.c.0.s8 %v2100
    %v2102 = vlaneseq
    %v2103 = vshrl.u32 %v2102, 7
    %v2104 = vsub.s32 %v2101, %v2103
    %v2105 = vrot.slane %v2077, %v2104
    %v2106 = vcombine.high %v2084, %v2084
    %v2107 = vcombine.high %v2091, %v2091
    %v2108 = vcombine.high %v2098, %v2098
    %v2109 = vcombine.high %v2105, %v2105
    %v2110 = vcombine.high %v1806, %v1806
    %v2112 = vunpack.c.l.s4 1966171168
    %v2113 = vunpack.c.0.s8 %v2112
    %v2114 = vlaneseq
    %v2115 = vshrl.u32 %v2114, 7
    %v2116 = vsub.s32 %v2113, %v2115
    %v2117 = vrot.slane %v1806, %v2116
    %v2119 = vunpack.c.l.s4 1966171168
    %v2120 = vunpack.c.0.s8 %v2119
    %v2121 = vlaneseq
    %v2122 = vshrl.u32 %v2121, 7
    %v2123 = vsub.s32 %v2120, %v2122
    %v2124 = vrot.slane %v2110, %v2123
    %v2125 = vcombine.high %v2117, %v2117
    %v2126 = vcombine.high %v2124, %v2124
    %v2128 = vunpack.c.l.s4 1966171168
    %v2129 = vunpack.c.0.s8 %v2128
    %v2130 = vlaneseq
    %v2131 = vshrl.u32 %v2130, 7
    %v2132 = vsub.s32 %v2129, %v2131
    %v2133 = vrot.slane %v2117, %v2132
    %v2135 = vunpack.c.l.s4 1966171168
    %v2136 = vunpack.c.0.s8 %v2135
    %v2137 = vlaneseq
    %v2138 = vshrl.u32 %v2137, 7
    %v2139 = vsub.s32 %v2136, %v2138
    %v2140 = vrot.slane %v2124, %v2139
    %v2142 = vunpack.c.l.s4 1966171168
    %v2143 = vunpack.c.0.s8 %v2142
    %v2144 = vlaneseq
    %v2145 = vshrl.u32 %v2144, 7
    %v2146 = vsub.s32 %v2143, %v2145
    %v2147 = vrot.slane %v2125, %v2146
    %v2149 = vunpack.c.l.s4 1966171168
    %v2150 = vunpack.c.0.s8 %v2149
    %v2151 = vlaneseq
    %v2152 = vshrl.u32 %v2151, 7
    %v2153 = vsub.s32 %v2150, %v2152
    %v2154 = vrot.slane %v2126, %v2153
    %v2155 = vcombine.high %v2133, %v2133
    %v2156 = vcombine.high %v2140, %v2140
    %v2157 = vcombine.high %v2147, %v2147
    %v2158 = vcombine.high %v2154, %v2154
    %v2159 = vcombine.high %v1807, %v1807
    %v2161 = vunpack.c.l.s4 1966171168
    %v2162 = vunpack.c.0.s8 %v2161
    %v2163 = vlaneseq
    %v2164 = vshrl.u32 %v2163, 7
    %v2165 = vsub.s32 %v2162, %v2164
    %v2166 = vrot.slane %v1807, %v2165
    %v2168 = vunpack.c.l.s4 1966171168
    %v2169 = vunpack.c.0.s8 %v2168
    %v2170 = vlaneseq
    %v2171 = vshrl.u32 %v2170, 7
    %v2172 = vsub.s32 %v2169, %v2171
    %v2173 = vrot.slane %v2159, %v2172
    %v2174 = vcombine.high %v2166, %v2166
    %v2175 = vcombine.high %v2173, %v2173
    %v2177 = vunpack.c.l.s4 1966171168
    %v2178 = vunpack.c.0.s8 %v2177
    %v2179 = vlaneseq
    %v2180 = vshrl.u32 %v2179, 7
    %v2181 = vsub.s32 %v2178, %v2180
    %v2182 = vrot.slane %v2166, %v2181
    %v2184 = vunpack.c.l.s4 1966171168
    %v2185 = vunpack.c.0.s8 %v2184
    %v2186 = vlaneseq
    %v2187 = vshrl.u32 %v2186, 7
    %v2188 = vsub.s32 %v2185, %v2187
    %v2189 = vrot.slane %v2173, %v2188
    %v2191 = vunpack.c.l.s4 1966171168
    %v2192 = vunpack.c.0.s8 %v2191
    %v2193 = vlaneseq
    %v2194 = vshrl.u32 %v2193, 7
    %v2195 = vsub.s32 %v2192, %v2194
    %v2196 = vrot.slane %v2174, %v2195
    %v2198 = vunpack.c.l.s4 1966171168
    %v2199 = vunpack.c.0.s8 %v2198
    %v2200 = vlaneseq
    %v2201 = vshrl.u32 %v2200, 7
    %v2202 = vsub.s32 %v2199, %v2201
    %v2203 = vrot.slane %v2175, %v2202
    %v2204 = vcombine.high %v2182, %v2182
    %v2205 = vcombine.high %v2189, %v2189
    %v2206 = vcombine.high %v2196, %v2196
    %v2207 = vcombine.high %v2203, %v2203
    %v2208 = vcombine.high %v1808, %v1808
    %v2210 = vunpack.c.l.s4 1966171168
    %v2211 = vunpack.c.0.s8 %v2210
    %v2212 = vlaneseq
    %v2213 = vshrl.u32 %v2212, 7
    %v2214 = vsub.s32 %v2211, %v2213
    %v2215 = vrot.slane %v1808, %v2214
    %v2217 = vunpack.c.l.s4 1966171168
    %v2218 = vunpack.c.0.s8 %v2217
    %v2219 = vlaneseq
    %v2220 = vshrl.u32 %v2219, 7
    %v2221 = vsub.s32 %v2218, %v2220
    %v2222 = vrot.slane %v2208, %v2221
    %v2223 = vcombine.high %v2215, %v2215
    %v2224 = vcombine.high %v2222, %v2222
    %v2226 = vunpack.c.l.s4 1966171168
    %v2227 = vunpack.c.0.s8 %v2226
    %v2228 = vlaneseq
    %v2229 = vshrl.u32 %v2228, 7
    %v2230 = vsub.s32 %v2227, %v2229
    %v2231 = vrot.slane %v2215, %v2230
    %v2233 = vunpack.c.l.s4 1966171168
    %v2234 = vunpack.c.0.s8 %v2233
    %v2235 = vlaneseq
    %v2236 = vshrl.u32 %v2235, 7
    %v2237 = vsub.s32 %v2234, %v2236
    %v2238 = vrot.slane %v2222, %v2237
    %v2240 = vunpack.c.l.s4 1966171168
    %v2241 = vunpack.c.0.s8 %v2240
    %v2242 = vlaneseq
    %v2243 = vshrl.u32 %v2242, 7
    %v2244 = vsub.s32 %v2241, %v2243
    %v2245 = vrot.slane %v2223, %v2244
    %v2247 = vunpack.c.l.s4 1966171168
    %v2248 = vunpack.c.0.s8 %v2247
    %v2249 = vlaneseq
    %v2250 = vshrl.u32 %v2249, 7
    %v2251 = vsub.s32 %v2248, %v2250
    %v2252 = vrot.slane %v2224, %v2251
    %v2253 = vcombine.high %v2231, %v2231
    %v2254 = vcombine.high %v2238, %v2238
    %v2255 = vcombine.high %v2245, %v2245
    %v2256 = vcombine.high %v2252, %v2252
    %v2257 = vcombine.high %v1809, %v1809
    %v2259 = vunpack.c.l.s4 1966171168
    %v2260 = vunpack.c.0.s8 %v2259
    %v2261 = vlaneseq
    %v2262 = vshrl.u32 %v2261, 7
    %v2263 = vsub.s32 %v2260, %v2262
    %v2264 = vrot.slane %v1809, %v2263
    %v2266 = vunpack.c.l.s4 1966171168
    %v2267 = vunpack.c.0.s8 %v2266
    %v2268 = vlaneseq
    %v2269 = vshrl.u32 %v2268, 7
    %v2270 = vsub.s32 %v2267, %v2269
    %v2271 = vrot.slane %v2257, %v2270
    %v2272 = vcombine.high %v2264, %v2264
    %v2273 = vcombine.high %v2271, %v2271
    %v2275 = vunpack.c.l.s4 1966171168
    %v2276 = vunpack.c.0.s8 %v2275
    %v2277 = vlaneseq
    %v2278 = vshrl.u32 %v2277, 7
    %v2279 = vsub.s32 %v2276, %v2278
    %v2280 = vrot.slane %v2264, %v2279
    %v2282 = vunpack.c.l.s4 1966171168
    %v2283 = vunpack.c.0.s8 %v2282
    %v2284 = vlaneseq
    %v2285 = vshrl.u32 %v2284, 7
    %v2286 = vsub.s32 %v2283, %v2285
    %v2287 = vrot.slane %v2271, %v2286
    %v2289 = vunpack.c.l.s4 1966171168
    %v2290 = vunpack.c.0.s8 %v2289
    %v2291 = vlaneseq
    %v2292 = vshrl.u32 %v2291, 7
    %v2293 = vsub.s32 %v2290, %v2292
    %v2294 = vrot.slane %v2272, %v2293
    %v2296 = vunpack.c.l.s4 1966171168
    %v2297 = vunpack.c.0.s8 %v2296
    %v2298 = vlaneseq
    %v2299 = vshrl.u32 %v2298, 7
    %v2300 = vsub.s32 %v2297, %v2299
    %v2301 = vrot.slane %v2273, %v2300
    %v2302 = vcombine.high %v2280, %v2280
    %v2303 = vcombine.high %v2287, %v2287
    %v2304 = vcombine.high %v2294, %v2294
    %v2305 = vcombine.high %v2301, %v2301
    %v2306 = vcombine.high %v1810, %v1810
    %v2308 = vunpack.c.l.s4 1966171168
    %v2309 = vunpack.c.0.s8 %v2308
    %v2310 = vlaneseq
    %v2311 = vshrl.u32 %v2310, 7
    %v2312 = vsub.s32 %v2309, %v2311
    %v2313 = vrot.slane %v1810, %v2312
    %v2315 = vunpack.c.l.s4 1966171168
    %v2316 = vunpack.c.0.s8 %v2315
    %v2317 = vlaneseq
    %v2318 = vshrl.u32 %v2317, 7
    %v2319 = vsub.s32 %v2316, %v2318
    %v2320 = vrot.slane %v2306, %v2319
    %v2321 = vcombine.high %v2313, %v2313
    %v2322 = vcombine.high %v2320, %v2320
    %v2324 = vunpack.c.l.s4 1966171168
    %v2325 = vunpack.c.0.s8 %v2324
    %v2326 = vlaneseq
    %v2327 = vshrl.u32 %v2326, 7
    %v2328 = vsub.s32 %v2325, %v2327
    %v2329 = vrot.slane %v2313, %v2328
    %v2331 = vunpack.c.l.s4 1966171168
    %v2332 = vunpack.c.0.s8 %v2331
    %v2333 = vlaneseq
    %v2334 = vshrl.u32 %v2333, 7
    %v2335 = vsub.s32 %v2332, %v2334
    %v2336 = vrot.slane %v2320, %v2335
    %v2338 = vunpack.c.l.s4 1966171168
    %v2339 = vunpack.c.0.s8 %v2338
    %v2340 = vlaneseq
    %v2341 = vshrl.u32 %v2340, 7
    %v2342 = vsub.s32 %v2339, %v2341
    %v2343 = vrot.slane %v2321, %v2342
    %v2345 = vunpack.c.l.s4 1966171168
    %v2346 = vunpack.c.0.s8 %v2345
    %v2347 = vlaneseq
    %v2348 = vshrl.u32 %v2347, 7
    %v2349 = vsub.s32 %v2346, %v2348
    %v2350 = vrot.slane %v2322, %v2349
    %v2351 = vcombine.high %v2329, %v2329
    %v2352 = vcombine.high %v2336, %v2336
    %v2353 = vcombine.high %v2343, %v2343
    %v2354 = vcombine.high %v2350, %v2350
    %v2355 = vcombine.high %v1811, %v1811
    %v2357 = vunpack.c.l.s4 1966171168
    %v2358 = vunpack.c.0.s8 %v2357
    %v2359 = vlaneseq
    %v2360 = vshrl.u32 %v2359, 7
    %v2361 = vsub.s32 %v2358, %v2360
    %v2362 = vrot.slane %v1811, %v2361
    %v2364 = vunpack.c.l.s4 1966171168
    %v2365 = vunpack.c.0.s8 %v2364
    %v2366 = vlaneseq
    %v2367 = vshrl.u32 %v2366, 7
    %v2368 = vsub.s32 %v2365, %v2367
    %v2369 = vrot.slane %v2355, %v2368
    %v2370 = vcombine.high %v2362, %v2362
    %v2371 = vcombine.high %v2369, %v2369
    %v2373 = vunpack.c.l.s4 1966171168
    %v2374 = vunpack.c.0.s8 %v2373
    %v2375 = vlaneseq
    %v2376 = vshrl.u32 %v2375, 7
    %v2377 = vsub.s32 %v2374, %v2376
    %v2378 = vrot.slane %v2362, %v2377
    %v2380 = vunpack.c.l.s4 1966171168
    %v2381 = vunpack.c.0.s8 %v2380
    %v2382 = vlaneseq
    %v2383 = vshrl.u32 %v2382, 7
    %v2384 = vsub.s32 %v2381, %v2383
    %v2385 = vrot.slane %v2369, %v2384
    %v2387 = vunpack.c.l.s4 1966171168
    %v2388 = vunpack.c.0.s8 %v2387
    %v2389 = vlaneseq
    %v2390 = vshrl.u32 %v2389, 7
    %v2391 = vsub.s32 %v2388, %v2390
    %v2392 = vrot.slane %v2370, %v2391
    %v2394 = vunpack.c.l.s4 1966171168
    %v2395 = vunpack.c.0.s8 %v2394
    %v2396 = vlaneseq
    %v2397 = vshrl.u32 %v2396, 7
    %v2398 = vsub.s32 %v2395, %v2397
    %v2399 = vrot.slane %v2371, %v2398
    %v2400 = vcombine.high %v2378, %v2378
    %v2401 = vcombine.high %v2385, %v2385
    %v2402 = vcombine.high %v2392, %v2392
    %v2403 = vcombine.high %v2399, %v2399
    %v2404 = vcombine.high %v1812, %v1812
    %v2406 = vunpack.c.l.s4 1966171168
    %v2407 = vunpack.c.0.s8 %v2406
    %v2408 = vlaneseq
    %v2409 = vshrl.u32 %v2408, 7
    %v2410 = vsub.s32 %v2407, %v2409
    %v2411 = vrot.slane %v1812, %v2410
    %v2413 = vunpack.c.l.s4 1966171168
    %v2414 = vunpack.c.0.s8 %v2413
    %v2415 = vlaneseq
    %v2416 = vshrl.u32 %v2415, 7
    %v2417 = vsub.s32 %v2414, %v2416
    %v2418 = vrot.slane %v2404, %v2417
    %v2419 = vcombine.high %v2411, %v2411
    %v2420 = vcombine.high %v2418, %v2418
    %v2422 = vunpack.c.l.s4 1966171168
    %v2423 = vunpack.c.0.s8 %v2422
    %v2424 = vlaneseq
    %v2425 = vshrl.u32 %v2424, 7
    %v2426 = vsub.s32 %v2423, %v2425
    %v2427 = vrot.slane %v2411, %v2426
    %v2429 = vunpack.c.l.s4 1966171168
    %v2430 = vunpack.c.0.s8 %v2429
    %v2431 = vlaneseq
    %v2432 = vshrl.u32 %v2431, 7
    %v2433 = vsub.s32 %v2430, %v2432
    %v2434 = vrot.slane %v2418, %v2433
    %v2436 = vunpack.c.l.s4 1966171168
    %v2437 = vunpack.c.0.s8 %v2436
    %v2438 = vlaneseq
    %v2439 = vshrl.u32 %v2438, 7
    %v2440 = vsub.s32 %v2437, %v2439
    %v2441 = vrot.slane %v2419, %v2440
    %v2443 = vunpack.c.l.s4 1966171168
    %v2444 = vunpack.c.0.s8 %v2443
    %v2445 = vlaneseq
    %v2446 = vshrl.u32 %v2445, 7
    %v2447 = vsub.s32 %v2444, %v2446
    %v2448 = vrot.slane %v2420, %v2447
    %v2449 = vcombine.high %v2427, %v2427
    %v2450 = vcombine.high %v2434, %v2434
    %v2451 = vcombine.high %v2441, %v2441
    %v2452 = vcombine.high %v2448, %v2448
    %v2453 = vcombine.high %v1813, %v1813
    %v2455 = vunpack.c.l.s4 1966171168
    %v2456 = vunpack.c.0.s8 %v2455
    %v2457 = vlaneseq
    %v2458 = vshrl.u32 %v2457, 7
    %v2459 = vsub.s32 %v2456, %v2458
    %v2460 = vrot.slane %v1813, %v2459
    %v2462 = vunpack.c.l.s4 1966171168
    %v2463 = vunpack.c.0.s8 %v2462
    %v2464 = vlaneseq
    %v2465 = vshrl.u32 %v2464, 7
    %v2466 = vsub.s32 %v2463, %v2465
    %v2467 = vrot.slane %v2453, %v2466
    %v2468 = vcombine.high %v2460, %v2460
    %v2469 = vcombine.high %v2467, %v2467
    %v2471 = vunpack.c.l.s4 1966171168
    %v2472 = vunpack.c.0.s8 %v2471
    %v2473 = vlaneseq
    %v2474 = vshrl.u32 %v2473, 7
    %v2475 = vsub.s32 %v2472, %v2474
    %v2476 = vrot.slane %v2460, %v2475
    %v2478 = vunpack.c.l.s4 1966171168
    %v2479 = vunpack.c.0.s8 %v2478
    %v2480 = vlaneseq
    %v2481 = vshrl.u32 %v2480, 7
    %v2482 = vsub.s32 %v2479, %v2481
    %v2483 = vrot.slane %v2467, %v2482
    %v2485 = vunpack.c.l.s4 1966171168
    %v2486 = vunpack.c.0.s8 %v2485
    %v2487 = vlaneseq
    %v2488 = vshrl.u32 %v2487, 7
    %v2489 = vsub.s32 %v2486, %v2488
    %v2490 = vrot.slane %v2468, %v2489
    %v2492 = vunpack.c.l.s4 1966171168
    %v2493 = vunpack.c.0.s8 %v2492
    %v2494 = vlaneseq
    %v2495 = vshrl.u32 %v2494, 7
    %v2496 = vsub.s32 %v2493, %v2495
    %v2497 = vrot.slane %v2469, %v2496
    %v2498 = vcombine.high %v2476, %v2476
    %v2499 = vcombine.high %v2483, %v2483
    %v2500 = vcombine.high %v2490, %v2490
    %v2501 = vcombine.high %v2497, %v2497
    %v2502 = vcombine.high %v1814, %v1814
    %v2504 = vunpack.c.l.s4 1966171168
    %v2505 = vunpack.c.0.s8 %v2504
    %v2506 = vlaneseq
    %v2507 = vshrl.u32 %v2506, 7
    %v2508 = vsub.s32 %v2505, %v2507
    %v2509 = vrot.slane %v1814, %v2508
    %v2511 = vunpack.c.l.s4 1966171168
    %v2512 = vunpack.c.0.s8 %v2511
    %v2513 = vlaneseq
    %v2514 = vshrl.u32 %v2513, 7
    %v2515 = vsub.s32 %v2512, %v2514
    %v2516 = vrot.slane %v2502, %v2515
    %v2517 = vcombine.high %v2509, %v2509
    %v2518 = vcombine.high %v2516, %v2516
    %v2520 = vunpack.c.l.s4 1966171168
    %v2521 = vunpack.c.0.s8 %v2520
    %v2522 = vlaneseq
    %v2523 = vshrl.u32 %v2522, 7
    %v2524 = vsub.s32 %v2521, %v2523
    %v2525 = vrot.slane %v2509, %v2524
    %v2527 = vunpack.c.l.s4 1966171168
    %v2528 = vunpack.c.0.s8 %v2527
    %v2529 = vlaneseq
    %v2530 = vshrl.u32 %v2529, 7
    %v2531 = vsub.s32 %v2528, %v2530
    %v2532 = vrot.slane %v2516, %v2531
    %v2534 = vunpack.c.l.s4 1966171168
    %v2535 = vunpack.c.0.s8 %v2534
    %v2536 = vlaneseq
    %v2537 = vshrl.u32 %v2536, 7
    %v2538 = vsub.s32 %v2535, %v2537
    %v2539 = vrot.slane %v2517, %v2538
    %v2541 = vunpack.c.l.s4 1966171168
    %v2542 = vunpack.c.0.s8 %v2541
    %v2543 = vlaneseq
    %v2544 = vshrl.u32 %v2543, 7
    %v2545 = vsub.s32 %v2542, %v2544
    %v2546 = vrot.slane %v2518, %v2545
    %v2547 = vcombine.high %v2525, %v2525
    %v2548 = vcombine.high %v2532, %v2532
    %v2549 = vcombine.high %v2539, %v2539
    %v2550 = vcombine.high %v2546, %v2546
    %v2551 = vcombine.high %v1815, %v1815
    %v2553 = vunpack.c.l.s4 1966171168
    %v2554 = vunpack.c.0.s8 %v2553
    %v2555 = vlaneseq
    %v2556 = vshrl.u32 %v2555, 7
    %v2557 = vsub.s32 %v2554, %v2556
    %v2558 = vrot.slane %v1815, %v2557
    %v2560 = vunpack.c.l.s4 1966171168
    %v2561 = vunpack.c.0.s8 %v2560
    %v2562 = vlaneseq
    %v2563 = vshrl.u32 %v2562, 7
    %v2564 = vsub.s32 %v2561, %v2563
    %v2565 = vrot.slane %v2551, %v2564
    %v2566 = vcombine.high %v2558, %v2558
    %v2567 = vcombine.high %v2565, %v2565
    %v2569 = vunpack.c.l.s4 1966171168
    %v2570 = vunpack.c.0.s8 %v2569
    %v2571 = vlaneseq
    %v2572 = vshrl.u32 %v2571, 7
    %v2573 = vsub.s32 %v2570, %v2572
    %v2574 = vrot.slane %v2558, %v2573
    %v2576 = vunpack.c.l.s4 1966171168
    %v2577 = vunpack.c.0.s8 %v2576
    %v2578 = vlaneseq
    %v2579 = vshrl.u32 %v2578, 7
    %v2580 = vsub.s32 %v2577, %v2579
    %v2581 = vrot.slane %v2565, %v2580
    %v2583 = vunpack.c.l.s4 1966171168
    %v2584 = vunpack.c.0.s8 %v2583
    %v2585 = vlaneseq
    %v2586 = vshrl.u32 %v2585, 7
    %v2587 = vsub.s32 %v2584, %v2586
    %v2588 = vrot.slane %v2566, %v2587
    %v2590 = vunpack.c.l.s4 1966171168
    %v2591 = vunpack.c.0.s8 %v2590
    %v2592 = vlaneseq
    %v2593 = vshrl.u32 %v2592, 7
    %v2594 = vsub.s32 %v2591, %v2593
    %v2595 = vrot.slane %v2567, %v2594
    %v2596 = vcombine.high %v2574, %v2574
    %v2597 = vcombine.high %v2581, %v2581
    %v2598 = vcombine.high %v2588, %v2588
    %v2599 = vcombine.high %v2595, %v2595
    %v2600 = vcombine.high %v1816, %v1816
    %v2602 = vunpack.c.l.s4 1966171168
    %v2603 = vunpack.c.0.s8 %v2602
    %v2604 = vlaneseq
    %v2605 = vshrl.u32 %v2604, 7
    %v2606 = vsub.s32 %v2603, %v2605
    %v2607 = vrot.slane %v1816, %v2606
    %v2609 = vunpack.c.l.s4 1966171168
    %v2610 = vunpack.c.0.s8 %v2609
    %v2611 = vlaneseq
    %v2612 = vshrl.u32 %v2611, 7
    %v2613 = vsub.s32 %v2610, %v2612
    %v2614 = vrot.slane %v2600, %v2613
    %v2615 = vcombine.high %v2607, %v2607
    %v2616 = vcombine.high %v2614, %v2614
    %v2618 = vunpack.c.l.s4 1966171168
    %v2619 = vunpack.c.0.s8 %v2618
    %v2620 = vlaneseq
    %v2621 = vshrl.u32 %v2620, 7
    %v2622 = vsub.s32 %v2619, %v2621
    %v2623 = vrot.slane %v2607, %v2622
    %v2625 = vunpack.c.l.s4 1966171168
    %v2626 = vunpack.c.0.s8 %v2625
    %v2627 = vlaneseq
    %v2628 = vshrl.u32 %v2627, 7
    %v2629 = vsub.s32 %v2626, %v2628
    %v2630 = vrot.slane %v2614, %v2629
    %v2632 = vunpack.c.l.s4 1966171168
    %v2633 = vunpack.c.0.s8 %v2632
    %v2634 = vlaneseq
    %v2635 = vshrl.u32 %v2634, 7
    %v2636 = vsub.s32 %v2633, %v2635
    %v2637 = vrot.slane %v2615, %v2636
    %v2639 = vunpack.c.l.s4 1966171168
    %v2640 = vunpack.c.0.s8 %v2639
    %v2641 = vlaneseq
    %v2642 = vshrl.u32 %v2641, 7
    %v2643 = vsub.s32 %v2640, %v2642
    %v2644 = vrot.slane %v2616, %v2643
    %v2645 = vcombine.high %v2623, %v2623
    %v2646 = vcombine.high %v2630, %v2630
    %v2647 = vcombine.high %v2637, %v2637
    %v2648 = vcombine.high %v2644, %v2644
    %v2649 = vcombine.high %v1817, %v1817
    %v2651 = vunpack.c.l.s4 1966171168
    %v2652 = vunpack.c.0.s8 %v2651
    %v2653 = vlaneseq
    %v2654 = vshrl.u32 %v2653, 7
    %v2655 = vsub.s32 %v2652, %v2654
    %v2656 = vrot.slane %v1817, %v2655
    %v2658 = vunpack.c.l.s4 1966171168
    %v2659 = vunpack.c.0.s8 %v2658
    %v2660 = vlaneseq
    %v2661 = vshrl.u32 %v2660, 7
    %v2662 = vsub.s32 %v2659, %v2661
    %v2663 = vrot.slane %v2649, %v2662
    %v2664 = vcombine.high %v2656, %v2656
    %v2665 = vcombine.high %v2663, %v2663
    %v2667 = vunpack.c.l.s4 1966171168
    %v2668 = vunpack.c.0.s8 %v2667
    %v2669 = vlaneseq
    %v2670 = vshrl.u32 %v2669, 7
    %v2671 = vsub.s32 %v2668, %v2670
    %v2672 = vrot.slane %v2656, %v2671
    %v2674 = vunpack.c.l.s4 1966171168
    %v2675 = vunpack.c.0.s8 %v2674
    %v2676 = vlaneseq
    %v2677 = vshrl.u32 %v2676, 7
    %v2678 = vsub.s32 %v2675, %v2677
    %v2679 = vrot.slane %v2663, %v2678
    %v2681 = vunpack.c.l.s4 1966171168
    %v2682 = vunpack.c.0.s8 %v2681
    %v2683 = vlaneseq
    %v2684 = vshrl.u32 %v2683, 7
    %v2685 = vsub.s32 %v2682, %v2684
    %v2686 = vrot.slane %v2664, %v2685
    %v2688 = vunpack.c.l.s4 1966171168
    %v2689 = vunpack.c.0.s8 %v2688
    %v2690 = vlaneseq
    %v2691 = vshrl.u32 %v2690, 7
    %v2692 = vsub.s32 %v2689, %v2691
    %v2693 = vrot.slane %v2665, %v2692
    %v2694 = vcombine.high %v2672, %v2672
    %v2695 = vcombine.high %v2679, %v2679
    %v2696 = vcombine.high %v2686, %v2686
    %v2697 = vcombine.high %v2693, %v2693
    %v2698 = vcombine.high %v1818, %v1818
    %v2700 = vunpack.c.l.s4 1966171168
    %v2701 = vunpack.c.0.s8 %v2700
    %v2702 = vlaneseq
    %v2703 = vshrl.u32 %v2702, 7
    %v2704 = vsub.s32 %v2701, %v2703
    %v2705 = vrot.slane %v1818, %v2704
    %v2707 = vunpack.c.l.s4 1966171168
    %v2708 = vunpack.c.0.s8 %v2707
    %v2709 = vlaneseq
    %v2710 = vshrl.u32 %v2709, 7
    %v2711 = vsub.s32 %v2708, %v2710
    %v2712 = vrot.slane %v2698, %v2711
    %v2713 = vcombine.high %v2705, %v2705
    %v2714 = vcombine.high %v2712, %v2712
    %v2716 = vunpack.c.l.s4 1966171168
    %v2717 = vunpack.c.0.s8 %v2716
    %v2718 = vlaneseq
    %v2719 = vshrl.u32 %v2718, 7
    %v2720 = vsub.s32 %v2717, %v2719
    %v2721 = vrot.slane %v2705, %v2720
    %v2723 = vunpack.c.l.s4 1966171168
    %v2724 = vunpack.c.0.s8 %v2723
    %v2725 = vlaneseq
    %v2726 = vshrl.u32 %v2725, 7
    %v2727 = vsub.s32 %v2724, %v2726
    %v2728 = vrot.slane %v2712, %v2727
    %v2730 = vunpack.c.l.s4 1966171168
    %v2731 = vunpack.c.0.s8 %v2730
    %v2732 = vlaneseq
    %v2733 = vshrl.u32 %v2732, 7
    %v2734 = vsub.s32 %v2731, %v2733
    %v2735 = vrot.slane %v2713, %v2734
    %v2737 = vunpack.c.l.s4 1966171168
    %v2738 = vunpack.c.0.s8 %v2737
    %v2739 = vlaneseq
    %v2740 = vshrl.u32 %v2739, 7
    %v2741 = vsub.s32 %v2738, %v2740
    %v2742 = vrot.slane %v2714, %v2741
    %v2743 = vcombine.high %v2721, %v2721
    %v2744 = vcombine.high %v2728, %v2728
    %v2745 = vcombine.high %v2735, %v2735
    %v2746 = vcombine.high %v2742, %v2742
    %v2747 = vcombine.high %v1819, %v1819
    %v2749 = vunpack.c.l.s4 1966171168
    %v2750 = vunpack.c.0.s8 %v2749
    %v2751 = vlaneseq
    %v2752 = vshrl.u32 %v2751, 7
    %v2753 = vsub.s32 %v2750, %v2752
    %v2754 = vrot.slane %v1819, %v2753
    %v2756 = vunpack.c.l.s4 1966171168
    %v2757 = vunpack.c.0.s8 %v2756
    %v2758 = vlaneseq
    %v2759 = vshrl.u32 %v2758, 7
    %v2760 = vsub.s32 %v2757, %v2759
    %v2761 = vrot.slane %v2747, %v2760
    %v2762 = vcombine.high %v2754, %v2754
    %v2763 = vcombine.high %v2761, %v2761
    %v2765 = vunpack.c.l.s4 1966171168
    %v2766 = vunpack.c.0.s8 %v2765
    %v2767 = vlaneseq
    %v2768 = vshrl.u32 %v2767, 7
    %v2769 = vsub.s32 %v2766, %v2768
    %v2770 = vrot.slane %v2754, %v2769
    %v2772 = vunpack.c.l.s4 1966171168
    %v2773 = vunpack.c.0.s8 %v2772
    %v2774 = vlaneseq
    %v2775 = vshrl.u32 %v2774, 7
    %v2776 = vsub.s32 %v2773, %v2775
    %v2777 = vrot.slane %v2761, %v2776
    %v2779 = vunpack.c.l.s4 1966171168
    %v2780 = vunpack.c.0.s8 %v2779
    %v2781 = vlaneseq
    %v2782 = vshrl.u32 %v2781, 7
    %v2783 = vsub.s32 %v2780, %v2782
    %v2784 = vrot.slane %v2762, %v2783
    %v2786 = vunpack.c.l.s4 1966171168
    %v2787 = vunpack.c.0.s8 %v2786
    %v2788 = vlaneseq
    %v2789 = vshrl.u32 %v2788, 7
    %v2790 = vsub.s32 %v2787, %v2789
    %v2791 = vrot.slane %v2763, %v2790
    %v2792 = vcombine.high %v2770, %v2770
    %v2793 = vcombine.high %v2777, %v2777
    %v2794 = vcombine.high %v2784, %v2784
    %v2795 = vcombine.high %v2791, %v2791
    %v2796 = vcombine.high %v1820, %v1820
    %v2798 = vunpack.c.l.s4 1966171168
    %v2799 = vunpack.c.0.s8 %v2798
    %v2800 = vlaneseq
    %v2801 = vshrl.u32 %v2800, 7
    %v2802 = vsub.s32 %v2799, %v2801
    %v2803 = vrot.slane %v1820, %v2802
    %v2805 = vunpack.c.l.s4 1966171168
    %v2806 = vunpack.c.0.s8 %v2805
    %v2807 = vlaneseq
    %v2808 = vshrl.u32 %v2807, 7
    %v2809 = vsub.s32 %v2806, %v2808
    %v2810 = vrot.slane %v2796, %v2809
    %v2811 = vcombine.high %v2803, %v2803
    %v2812 = vcombine.high %v2810, %v2810
    %v2814 = vunpack.c.l.s4 1966171168
    %v2815 = vunpack.c.0.s8 %v2814
    %v2816 = vlaneseq
    %v2817 = vshrl.u32 %v2816, 7
    %v2818 = vsub.s32 %v2815, %v2817
    %v2819 = vrot.slane %v2803, %v2818
    %v2821 = vunpack.c.l.s4 1966171168
    %v2822 = vunpack.c.0.s8 %v2821
    %v2823 = vlaneseq
    %v2824 = vshrl.u32 %v2823, 7
    %v2825 = vsub.s32 %v2822, %v2824
    %v2826 = vrot.slane %v2810, %v2825
    %v2828 = vunpack.c.l.s4 1966171168
    %v2829 = vunpack.c.0.s8 %v2828
    %v2830 = vlaneseq
    %v2831 = vshrl.u32 %v2830, 7
    %v2832 = vsub.s32 %v2829, %v2831
    %v2833 = vrot.slane %v2811, %v2832
    %v2835 = vunpack.c.l.s4 1966171168
    %v2836 = vunpack.c.0.s8 %v2835
    %v2837 = vlaneseq
    %v2838 = vshrl.u32 %v2837, 7
    %v2839 = vsub.s32 %v2836, %v2838
    %v2840 = vrot.slane %v2812, %v2839
    %v2841 = vcombine.high %v2819, %v2819
    %v2842 = vcombine.high %v2826, %v2826
    %v2843 = vcombine.high %v2833, %v2833
    %v2844 = vcombine.high %v2840, %v2840
    %v2845 = vcombine.high %v1821, %v1821
    %v2847 = vunpack.c.l.s4 1966171168
    %v2848 = vunpack.c.0.s8 %v2847
    %v2849 = vlaneseq
    %v2850 = vshrl.u32 %v2849, 7
    %v2851 = vsub.s32 %v2848, %v2850
    %v2852 = vrot.slane %v1821, %v2851
    %v2854 = vunpack.c.l.s4 1966171168
    %v2855 = vunpack.c.0.s8 %v2854
    %v2856 = vlaneseq
    %v2857 = vshrl.u32 %v2856, 7
    %v2858 = vsub.s32 %v2855, %v2857
    %v2859 = vrot.slane %v2845, %v2858
    %v2860 = vcombine.high %v2852, %v2852
    %v2861 = vcombine.high %v2859, %v2859
    %v2863 = vunpack.c.l.s4 1966171168
    %v2864 = vunpack.c.0.s8 %v2863
    %v2865 = vlaneseq
    %v2866 = vshrl.u32 %v2865, 7
    %v2867 = vsub.s32 %v2864, %v2866
    %v2868 = vrot.slane %v2852, %v2867
    %v2870 = vunpack.c.l.s4 1966171168
    %v2871 = vunpack.c.0.s8 %v2870
    %v2872 = vlaneseq
    %v2873 = vshrl.u32 %v2872, 7
    %v2874 = vsub.s32 %v2871, %v2873
    %v2875 = vrot.slane %v2859, %v2874
    %v2877 = vunpack.c.l.s4 1966171168
    %v2878 = vunpack.c.0.s8 %v2877
    %v2879 = vlaneseq
    %v2880 = vshrl.u32 %v2879, 7
    %v2881 = vsub.s32 %v2878, %v2880
    %v2882 = vrot.slane %v2860, %v2881
    %v2884 = vunpack.c.l.s4 1966171168
    %v2885 = vunpack.c.0.s8 %v2884
    %v2886 = vlaneseq
    %v2887 = vshrl.u32 %v2886, 7
    %v2888 = vsub.s32 %v2885, %v2887
    %v2889 = vrot.slane %v2861, %v2888
    %v2890 = vcombine.high %v2868, %v2868
    %v2891 = vcombine.high %v2875, %v2875
    %v2892 = vcombine.high %v2882, %v2882
    %v2893 = vcombine.high %v2889, %v2889
    %v2894 = vcombine.high %v1822, %v1822
    %v2896 = vunpack.c.l.s4 1966171168
    %v2897 = vunpack.c.0.s8 %v2896
    %v2898 = vlaneseq
    %v2899 = vshrl.u32 %v2898, 7
    %v2900 = vsub.s32 %v2897, %v2899
    %v2901 = vrot.slane %v1822, %v2900
    %v2903 = vunpack.c.l.s4 1966171168
    %v2904 = vunpack.c.0.s8 %v2903
    %v2905 = vlaneseq
    %v2906 = vshrl.u32 %v2905, 7
    %v2907 = vsub.s32 %v2904, %v2906
    %v2908 = vrot.slane %v2894, %v2907
    %v2909 = vcombine.high %v2901, %v2901
    %v2910 = vcombine.high %v2908, %v2908
    %v2912 = vunpack.c.l.s4 1966171168
    %v2913 = vunpack.c.0.s8 %v2912
    %v2914 = vlaneseq
    %v2915 = vshrl.u32 %v2914, 7
    %v2916 = vsub.s32 %v2913, %v2915
    %v2917 = vrot.slane %v2901, %v2916
    %v2919 = vunpack.c.l.s4 1966171168
    %v2920 = vunpack.c.0.s8 %v2919
    %v2921 = vlaneseq
    %v2922 = vshrl.u32 %v2921, 7
    %v2923 = vsub.s32 %v2920, %v2922
    %v2924 = vrot.slane %v2908, %v2923
    %v2926 = vunpack.c.l.s4 1966171168
    %v2927 = vunpack.c.0.s8 %v2926
    %v2928 = vlaneseq
    %v2929 = vshrl.u32 %v2928, 7
    %v2930 = vsub.s32 %v2927, %v2929
    %v2931 = vrot.slane %v2909, %v2930
    %v2933 = vunpack.c.l.s4 1966171168
    %v2934 = vunpack.c.0.s8 %v2933
    %v2935 = vlaneseq
    %v2936 = vshrl.u32 %v2935, 7
    %v2937 = vsub.s32 %v2934, %v2936
    %v2938 = vrot.slane %v2910, %v2937
    %v2939 = vcombine.high %v2917, %v2917
    %v2940 = vcombine.high %v2924, %v2924
    %v2941 = vcombine.high %v2931, %v2931
    %v2942 = vcombine.high %v2938, %v2938
    %v2943 = vcombine.high %v1823, %v1823
    %v2945 = vunpack.c.l.s4 1966171168
    %v2946 = vunpack.c.0.s8 %v2945
    %v2947 = vlaneseq
    %v2948 = vshrl.u32 %v2947, 7
    %v2949 = vsub.s32 %v2946, %v2948
    %v2950 = vrot.slane %v1823, %v2949
    %v2952 = vunpack.c.l.s4 1966171168
    %v2953 = vunpack.c.0.s8 %v2952
    %v2954 = vlaneseq
    %v2955 = vshrl.u32 %v2954, 7
    %v2956 = vsub.s32 %v2953, %v2955
    %v2957 = vrot.slane %v2943, %v2956
    %v2958 = vcombine.high %v2950, %v2950
    %v2959 = vcombine.high %v2957, %v2957
    %v2961 = vunpack.c.l.s4 1966171168
    %v2962 = vunpack.c.0.s8 %v2961
    %v2963 = vlaneseq
    %v2964 = vshrl.u32 %v2963, 7
    %v2965 = vsub.s32 %v2962, %v2964
    %v2966 = vrot.slane %v2950, %v2965
    %v2968 = vunpack.c.l.s4 1966171168
    %v2969 = vunpack.c.0.s8 %v2968
    %v2970 = vlaneseq
    %v2971 = vshrl.u32 %v2970, 7
    %v2972 = vsub.s32 %v2969, %v2971
    %v2973 = vrot.slane %v2957, %v2972
    %v2975 = vunpack.c.l.s4 1966171168
    %v2976 = vunpack.c.0.s8 %v2975
    %v2977 = vlaneseq
    %v2978 = vshrl.u32 %v2977, 7
    %v2979 = vsub.s32 %v2976, %v2978
    %v2980 = vrot.slane %v2958, %v2979
    %v2982 = vunpack.c.l.s4 1966171168
    %v2983 = vunpack.c.0.s8 %v2982
    %v2984 = vlaneseq
    %v2985 = vshrl.u32 %v2984, 7
    %v2986 = vsub.s32 %v2983, %v2985
    %v2987 = vrot.slane %v2959, %v2986
    %v2988 = vcombine.high %v2966, %v2966
    %v2989 = vcombine.high %v2973, %v2973
    %v2990 = vcombine.high %v2980, %v2980
    %v2991 = vcombine.high %v2987, %v2987
    %v2992 = vcombine.high %v1824, %v1824
    %v2994 = vunpack.c.l.s4 1966171168
    %v2995 = vunpack.c.0.s8 %v2994
    %v2996 = vlaneseq
    %v2997 = vshrl.u32 %v2996, 7
    %v2998 = vsub.s32 %v2995, %v2997
    %v2999 = vrot.slane %v1824, %v2998
    %v3001 = vunpack.c.l.s4 1966171168
    %v3002 = vunpack.c.0.s8 %v3001
    %v3003 = vlaneseq
    %v3004 = vshrl.u32 %v3003, 7
    %v3005 = vsub.s32 %v3002, %v3004
    %v3006 = vrot.slane %v2992, %v3005
    %v3007 = vcombine.high %v2999, %v2999
    %v3008 = vcombine.high %v3006, %v3006
    %v3010 = vunpack.c.l.s4 1966171168
    %v3011 = vunpack.c.0.s8 %v3010
    %v3012 = vlaneseq
    %v3013 = vshrl.u32 %v3012, 7
    %v3014 = vsub.s32 %v3011, %v3013
    %v3015 = vrot.slane %v2999, %v3014
    %v3017 = vunpack.c.l.s4 1966171168
    %v3018 = vunpack.c.0.s8 %v3017
    %v3019 = vlaneseq
    %v3020 = vshrl.u32 %v3019, 7
    %v3021 = vsub.s32 %v3018, %v3020
    %v3022 = vrot.slane %v3006, %v3021
    %v3024 = vunpack.c.l.s4 1966171168
    %v3025 = vunpack.c.0.s8 %v3024
    %v3026 = vlaneseq
    %v3027 = vshrl.u32 %v3026, 7
    %v3028 = vsub.s32 %v3025, %v3027
    %v3029 = vrot.slane %v3007, %v3028
    %v3031 = vunpack.c.l.s4 1966171168
    %v3032 = vunpack.c.0.s8 %v3031
    %v3033 = vlaneseq
    %v3034 = vshrl.u32 %v3033, 7
    %v3035 = vsub.s32 %v3032, %v3034
    %v3036 = vrot.slane %v3008, %v3035
    %v3037 = vcombine.high %v3015, %v3015
    %v3038 = vcombine.high %v3022, %v3022
    %v3039 = vcombine.high %v3029, %v3029
    %v3040 = vcombine.high %v3036, %v3036
    %v3041 = vcombine.high %v1825, %v1825
    %v3043 = vunpack.c.l.s4 1966171168
    %v3044 = vunpack.c.0.s8 %v3043
    %v3045 = vlaneseq
    %v3046 = vshrl.u32 %v3045, 7
    %v3047 = vsub.s32 %v3044, %v3046
    %v3048 = vrot.slane %v1825, %v3047
    %v3050 = vunpack.c.l.s4 1966171168
    %v3051 = vunpack.c.0.s8 %v3050
    %v3052 = vlaneseq
    %v3053 = vshrl.u32 %v3052, 7
    %v3054 = vsub.s32 %v3051, %v3053
    %v3055 = vrot.slane %v3041, %v3054
    %v3056 = vcombine.high %v3048, %v3048
    %v3057 = vcombine.high %v3055, %v3055
    %v3059 = vunpack.c.l.s4 1966171168
    %v3060 = vunpack.c.0.s8 %v3059
    %v3061 = vlaneseq
    %v3062 = vshrl.u32 %v3061, 7
    %v3063 = vsub.s32 %v3060, %v3062
    %v3064 = vrot.slane %v3048, %v3063
    %v3066 = vunpack.c.l.s4 1966171168
    %v3067 = vunpack.c.0.s8 %v3066
    %v3068 = vlaneseq
    %v3069 = vshrl.u32 %v3068, 7
    %v3070 = vsub.s32 %v3067, %v3069
    %v3071 = vrot.slane %v3055, %v3070
    %v3073 = vunpack.c.l.s4 1966171168
    %v3074 = vunpack.c.0.s8 %v3073
    %v3075 = vlaneseq
    %v3076 = vshrl.u32 %v3075, 7
    %v3077 = vsub.s32 %v3074, %v3076
    %v3078 = vrot.slane %v3056, %v3077
    %v3080 = vunpack.c.l.s4 1966171168
    %v3081 = vunpack.c.0.s8 %v3080
    %v3082 = vlaneseq
    %v3083 = vshrl.u32 %v3082, 7
    %v3084 = vsub.s32 %v3081, %v3083
    %v3085 = vrot.slane %v3057, %v3084
    %v3086 = vcombine.high %v3064, %v3064
    %v3087 = vcombine.high %v3071, %v3071
    %v3088 = vcombine.high %v3078, %v3078
    %v3089 = vcombine.high %v3085, %v3085
    %v3090 = vcombine.high %v1826, %v1826
    %v3092 = vunpack.c.l.s4 1966171168
    %v3093 = vunpack.c.0.s8 %v3092
    %v3094 = vlaneseq
    %v3095 = vshrl.u32 %v3094, 7
    %v3096 = vsub.s32 %v3093, %v3095
    %v3097 = vrot.slane %v1826, %v3096
    %v3099 = vunpack.c.l.s4 1966171168
    %v3100 = vunpack.c.0.s8 %v3099
    %v3101 = vlaneseq
    %v3102 = vshrl.u32 %v3101, 7
    %v3103 = vsub.s32 %v3100, %v3102
    %v3104 = vrot.slane %v3090, %v3103
    %v3105 = vcombine.high %v3097, %v3097
    %v3106 = vcombine.high %v3104, %v3104
    %v3108 = vunpack.c.l.s4 1966171168
    %v3109 = vunpack.c.0.s8 %v3108
    %v3110 = vlaneseq
    %v3111 = vshrl.u32 %v3110, 7
    %v3112 = vsub.s32 %v3109, %v3111
    %v3113 = vrot.slane %v3097, %v3112
    %v3115 = vunpack.c.l.s4 1966171168
    %v3116 = vunpack.c.0.s8 %v3115
    %v3117 = vlaneseq
    %v3118 = vshrl.u32 %v3117, 7
    %v3119 = vsub.s32 %v3116, %v3118
    %v3120 = vrot.slane %v3104, %v3119
    %v3122 = vunpack.c.l.s4 1966171168
    %v3123 = vunpack.c.0.s8 %v3122
    %v3124 = vlaneseq
    %v3125 = vshrl.u32 %v3124, 7
    %v3126 = vsub.s32 %v3123, %v3125
    %v3127 = vrot.slane %v3105, %v3126
    %v3129 = vunpack.c.l.s4 1966171168
    %v3130 = vunpack.c.0.s8 %v3129
    %v3131 = vlaneseq
    %v3132 = vshrl.u32 %v3131, 7
    %v3133 = vsub.s32 %v3130, %v3132
    %v3134 = vrot.slane %v3106, %v3133
    %v3135 = vcombine.high %v3113, %v3113
    %v3136 = vcombine.high %v3120, %v3120
    %v3137 = vcombine.high %v3127, %v3127
    %v3138 = vcombine.high %v3134, %v3134
    %v3139 = vcombine.high %v1827, %v1827
    %v3141 = vunpack.c.l.s4 1966171168
    %v3142 = vunpack.c.0.s8 %v3141
    %v3143 = vlaneseq
    %v3144 = vshrl.u32 %v3143, 7
    %v3145 = vsub.s32 %v3142, %v3144
    %v3146 = vrot.slane %v1827, %v3145
    %v3148 = vunpack.c.l.s4 1966171168
    %v3149 = vunpack.c.0.s8 %v3148
    %v3150 = vlaneseq
    %v3151 = vshrl.u32 %v3150, 7
    %v3152 = vsub.s32 %v3149, %v3151
    %v3153 = vrot.slane %v3139, %v3152
    %v3154 = vcombine.high %v3146, %v3146
    %v3155 = vcombine.high %v3153, %v3153
    %v3157 = vunpack.c.l.s4 1966171168
    %v3158 = vunpack.c.0.s8 %v3157
    %v3159 = vlaneseq
    %v3160 = vshrl.u32 %v3159, 7
    %v3161 = vsub.s32 %v3158, %v3160
    %v3162 = vrot.slane %v3146, %v3161
    %v3164 = vunpack.c.l.s4 1966171168
    %v3165 = vunpack.c.0.s8 %v3164
    %v3166 = vlaneseq
    %v3167 = vshrl.u32 %v3166, 7
    %v3168 = vsub.s32 %v3165, %v3167
    %v3169 = vrot.slane %v3153, %v3168
    %v3171 = vunpack.c.l.s4 1966171168
    %v3172 = vunpack.c.0.s8 %v3171
    %v3173 = vlaneseq
    %v3174 = vshrl.u32 %v3173, 7
    %v3175 = vsub.s32 %v3172, %v3174
    %v3176 = vrot.slane %v3154, %v3175
    %v3178 = vunpack.c.l.s4 1966171168
    %v3179 = vunpack.c.0.s8 %v3178
    %v3180 = vlaneseq
    %v3181 = vshrl.u32 %v3180, 7
    %v3182 = vsub.s32 %v3179, %v3181
    %v3183 = vrot.slane %v3155, %v3182
    %v3184 = vcombine.high %v3162, %v3162
    %v3185 = vcombine.high %v3169, %v3169
    %v3186 = vcombine.high %v3176, %v3176
    %v3187 = vcombine.high %v3183, %v3183
    %v3188 = vcombine.high %v1828, %v1828
    %v3190 = vunpack.c.l.s4 1966171168
    %v3191 = vunpack.c.0.s8 %v3190
    %v3192 = vlaneseq
    %v3193 = vshrl.u32 %v3192, 7
    %v3194 = vsub.s32 %v3191, %v3193
    %v3195 = vrot.slane %v1828, %v3194
    %v3197 = vunpack.c.l.s4 1966171168
    %v3198 = vunpack.c.0.s8 %v3197
    %v3199 = vlaneseq
    %v3200 = vshrl.u32 %v3199, 7
    %v3201 = vsub.s32 %v3198, %v3200
    %v3202 = vrot.slane %v3188, %v3201
    %v3203 = vcombine.high %v3195, %v3195
    %v3204 = vcombine.high %v3202, %v3202
    %v3206 = vunpack.c.l.s4 1966171168
    %v3207 = vunpack.c.0.s8 %v3206
    %v3208 = vlaneseq
    %v3209 = vshrl.u32 %v3208, 7
    %v3210 = vsub.s32 %v3207, %v3209
    %v3211 = vrot.slane %v3195, %v3210
    %v3213 = vunpack.c.l.s4 1966171168
    %v3214 = vunpack.c.0.s8 %v3213
    %v3215 = vlaneseq
    %v3216 = vshrl.u32 %v3215, 7
    %v3217 = vsub.s32 %v3214, %v3216
    %v3218 = vrot.slane %v3202, %v3217
    %v3220 = vunpack.c.l.s4 1966171168
    %v3221 = vunpack.c.0.s8 %v3220
    %v3222 = vlaneseq
    %v3223 = vshrl.u32 %v3222, 7
    %v3224 = vsub.s32 %v3221, %v3223
    %v3225 = vrot.slane %v3203, %v3224
    %v3227 = vunpack.c.l.s4 1966171168
    %v3228 = vunpack.c.0.s8 %v3227
    %v3229 = vlaneseq
    %v3230 = vshrl.u32 %v3229, 7
    %v3231 = vsub.s32 %v3228, %v3230
    %v3232 = vrot.slane %v3204, %v3231
    %v3233 = vcombine.high %v3211, %v3211
    %v3234 = vcombine.high %v3218, %v3218
    %v3235 = vcombine.high %v3225, %v3225
    %v3236 = vcombine.high %v3232, %v3232
    %v3237 = vcombine.high %v1829, %v1829
    %v3239 = vunpack.c.l.s4 1966171168
    %v3240 = vunpack.c.0.s8 %v3239
    %v3241 = vlaneseq
    %v3242 = vshrl.u32 %v3241, 7
    %v3243 = vsub.s32 %v3240, %v3242
    %v3244 = vrot.slane %v1829, %v3243
    %v3246 = vunpack.c.l.s4 1966171168
    %v3247 = vunpack.c.0.s8 %v3246
    %v3248 = vlaneseq
    %v3249 = vshrl.u32 %v3248, 7
    %v3250 = vsub.s32 %v3247, %v3249
    %v3251 = vrot.slane %v3237, %v3250
    %v3252 = vcombine.high %v3244, %v3244
    %v3253 = vcombine.high %v3251, %v3251
    %v3255 = vunpack.c.l.s4 1966171168
    %v3256 = vunpack.c.0.s8 %v3255
    %v3257 = vlaneseq
    %v3258 = vshrl.u32 %v3257, 7
    %v3259 = vsub.s32 %v3256, %v3258
    %v3260 = vrot.slane %v3244, %v3259
    %v3262 = vunpack.c.l.s4 1966171168
    %v3263 = vunpack.c.0.s8 %v3262
    %v3264 = vlaneseq
    %v3265 = vshrl.u32 %v3264, 7
    %v3266 = vsub.s32 %v3263, %v3265
    %v3267 = vrot.slane %v3251, %v3266
    %v3269 = vunpack.c.l.s4 1966171168
    %v3270 = vunpack.c.0.s8 %v3269
    %v3271 = vlaneseq
    %v3272 = vshrl.u32 %v3271, 7
    %v3273 = vsub.s32 %v3270, %v3272
    %v3274 = vrot.slane %v3252, %v3273
    %v3276 = vunpack.c.l.s4 1966171168
    %v3277 = vunpack.c.0.s8 %v3276
    %v3278 = vlaneseq
    %v3279 = vshrl.u32 %v3278, 7
    %v3280 = vsub.s32 %v3277, %v3279
    %v3281 = vrot.slane %v3253, %v3280
    %v3282 = vcombine.high %v3260, %v3260
    %v3283 = vcombine.high %v3267, %v3267
    %v3284 = vcombine.high %v3274, %v3274
    %v3285 = vcombine.high %v3281, %v3281
    %v3286 = vcombine.high %v1830, %v1830
    %v3288 = vunpack.c.l.s4 1966171168
    %v3289 = vunpack.c.0.s8 %v3288
    %v3290 = vlaneseq
    %v3291 = vshrl.u32 %v3290, 7
    %v3292 = vsub.s32 %v3289, %v3291
    %v3293 = vrot.slane %v1830, %v3292
    %v3295 = vunpack.c.l.s4 1966171168
    %v3296 = vunpack.c.0.s8 %v3295
    %v3297 = vlaneseq
    %v3298 = vshrl.u32 %v3297, 7
    %v3299 = vsub.s32 %v3296, %v3298
    %v3300 = vrot.slane %v3286, %v3299
    %v3301 = vcombine.high %v3293, %v3293
    %v3302 = vcombine.high %v3300, %v3300
    %v3304 = vunpack.c.l.s4 1966171168
    %v3305 = vunpack.c.0.s8 %v3304
    %v3306 = vlaneseq
    %v3307 = vshrl.u32 %v3306, 7
    %v3308 = vsub.s32 %v3305, %v3307
    %v3309 = vrot.slane %v3293, %v3308
    %v3311 = vunpack.c.l.s4 1966171168
    %v3312 = vunpack.c.0.s8 %v3311
    %v3313 = vlaneseq
    %v3314 = vshrl.u32 %v3313, 7
    %v3315 = vsub.s32 %v3312, %v3314
    %v3316 = vrot.slane %v3300, %v3315
    %v3318 = vunpack.c.l.s4 1966171168
    %v3319 = vunpack.c.0.s8 %v3318
    %v3320 = vlaneseq
    %v3321 = vshrl.u32 %v3320, 7
    %v3322 = vsub.s32 %v3319, %v3321
    %v3323 = vrot.slane %v3301, %v3322
    %v3325 = vunpack.c.l.s4 1966171168
    %v3326 = vunpack.c.0.s8 %v3325
    %v3327 = vlaneseq
    %v3328 = vshrl.u32 %v3327, 7
    %v3329 = vsub.s32 %v3326, %v3328
    %v3330 = vrot.slane %v3302, %v3329
    %v3331 = vcombine.high %v3309, %v3309
    %v3332 = vcombine.high %v3316, %v3316
    %v3333 = vcombine.high %v3323, %v3323
    %v3334 = vcombine.high %v3330, %v3330
    %v3335 = vcombine.high %v1831, %v1831
    %v3337 = vunpack.c.l.s4 1966171168
    %v3338 = vunpack.c.0.s8 %v3337
    %v3339 = vlaneseq
    %v3340 = vshrl.u32 %v3339, 7
    %v3341 = vsub.s32 %v3338, %v3340
    %v3342 = vrot.slane %v1831, %v3341
    %v3344 = vunpack.c.l.s4 1966171168
    %v3345 = vunpack.c.0.s8 %v3344
    %v3346 = vlaneseq
    %v3347 = vshrl.u32 %v3346, 7
    %v3348 = vsub.s32 %v3345, %v3347
    %v3349 = vrot.slane %v3335, %v3348
    %v3350 = vcombine.high %v3342, %v3342
    %v3351 = vcombine.high %v3349, %v3349
    %v3353 = vunpack.c.l.s4 1966171168
    %v3354 = vunpack.c.0.s8 %v3353
    %v3355 = vlaneseq
    %v3356 = vshrl.u32 %v3355, 7
    %v3357 = vsub.s32 %v3354, %v3356
    %v3358 = vrot.slane %v3342, %v3357
    %v3360 = vunpack.c.l.s4 1966171168
    %v3361 = vunpack.c.0.s8 %v3360
    %v3362 = vlaneseq
    %v3363 = vshrl.u32 %v3362, 7
    %v3364 = vsub.s32 %v3361, %v3363
    %v3365 = vrot.slane %v3349, %v3364
    %v3367 = vunpack.c.l.s4 1966171168
    %v3368 = vunpack.c.0.s8 %v3367
    %v3369 = vlaneseq
    %v3370 = vshrl.u32 %v3369, 7
    %v3371 = vsub.s32 %v3368, %v3370
    %v3372 = vrot.slane %v3350, %v3371
    %v3374 = vunpack.c.l.s4 1966171168
    %v3375 = vunpack.c.0.s8 %v3374
    %v3376 = vlaneseq
    %v3377 = vshrl.u32 %v3376, 7
    %v3378 = vsub.s32 %v3375, %v3377
    %v3379 = vrot.slane %v3351, %v3378
    %v3380 = vcombine.high %v3358, %v3358
    %v3381 = vcombine.high %v3365, %v3365
    %v3382 = vcombine.high %v3372, %v3372
    %v3383 = vcombine.high %v3379, %v3379
    %v3384 = vcombine.high %v1832, %v1832
    %v3386 = vunpack.c.l.s4 1966171168
    %v3387 = vunpack.c.0.s8 %v3386
    %v3388 = vlaneseq
    %v3389 = vshrl.u32 %v3388, 7
    %v3390 = vsub.s32 %v3387, %v3389
    %v3391 = vrot.slane %v1832, %v3390
    %v3393 = vunpack.c.l.s4 1966171168
    %v3394 = vunpack.c.0.s8 %v3393
    %v3395 = vlaneseq
    %v3396 = vshrl.u32 %v3395, 7
    %v3397 = vsub.s32 %v3394, %v3396
    %v3398 = vrot.slane %v3384, %v3397
    %v3399 = vcombine.high %v3391, %v3391
    %v3400 = vcombine.high %v3398, %v3398
    %v3402 = vunpack.c.l.s4 1966171168
    %v3403 = vunpack.c.0.s8 %v3402
    %v3404 = vlaneseq
    %v3405 = vshrl.u32 %v3404, 7
    %v3406 = vsub.s32 %v3403, %v3405
    %v3407 = vrot.slane %v3391, %v3406
    %v3409 = vunpack.c.l.s4 1966171168
    %v3410 = vunpack.c.0.s8 %v3409
    %v3411 = vlaneseq
    %v3412 = vshrl.u32 %v3411, 7
    %v3413 = vsub.s32 %v3410, %v3412
    %v3414 = vrot.slane %v3398, %v3413
    %v3416 = vunpack.c.l.s4 1966171168
    %v3417 = vunpack.c.0.s8 %v3416
    %v3418 = vlaneseq
    %v3419 = vshrl.u32 %v3418, 7
    %v3420 = vsub.s32 %v3417, %v3419
    %v3421 = vrot.slane %v3399, %v3420
    %v3423 = vunpack.c.l.s4 1966171168
    %v3424 = vunpack.c.0.s8 %v3423
    %v3425 = vlaneseq
    %v3426 = vshrl.u32 %v3425, 7
    %v3427 = vsub.s32 %v3424, %v3426
    %v3428 = vrot.slane %v3400, %v3427
    %v3429 = vcombine.high %v3407, %v3407
    %v3430 = vcombine.high %v3414, %v3414
    %v3431 = vcombine.high %v3421, %v3421
    %v3432 = vcombine.high %v3428, %v3428
    %v3433 = vcombine.low %v1888, %v1902
    %v3434 = vcombine.low %v1910, %v1912
    %v3435 = vcombine.low %v1895, %v1909
    %v3436 = vcombine.low %v1911, %v1913
    %v3438 = vunpack.c.l.s4 1966171168
    %v3439 = vunpack.c.0.s8 %v3438
    %v3440 = vlaneseq
    %v3441 = vshrl.u32 %v3440, 7
    %v3442 = vsub.s32 %v3439, %v3441
    %v3443 = vrot.slane %v3433, %v3442
    %v3445 = vunpack.c.l.s4 1966171168
    %v3446 = vunpack.c.0.s8 %v3445
    %v3447 = vlaneseq
    %v3448 = vshrl.u32 %v3447, 7
    %v3449 = vsub.s32 %v3446, %v3448
    %v3450 = vrot.slane %v3434, %v3449
    %v3452 = vunpack.c.l.s4 1966171168
    %v3453 = vunpack.c.0.s8 %v3452
    %v3454 = vlaneseq
    %v3455 = vshrl.u32 %v3454, 7
    %v3456 = vsub.s32 %v3453, %v3455
    %v3457 = vrot.slane %v3435, %v3456
    %v3459 = vunpack.c.l.s4 1966171168
    %v3460 = vunpack.c.0.s8 %v3459
    %v3461 = vlaneseq
    %v3462 = vshrl.u32 %v3461, 7
    %v3463 = vsub.s32 %v3460, %v3462
    %v3464 = vrot.slane %v3436, %v3463
    %v3465 = vcombine.low %v3443, %v3450
    %v3466 = vcombine.low %v3457, %v3464
    %v3468 = vunpack.c.l.s4 1966171168
    %v3469 = vunpack.c.0.s8 %v3468
    %v3470 = vlaneseq
    %v3471 = vshrl.u32 %v3470, 7
    %v3472 = vsub.s32 %v3469, %v3471
    %v3473 = vrot.slane %v3465, %v3472
    %v3475 = vunpack.c.l.s4 1966171168
    %v3476 = vunpack.c.0.s8 %v3475
    %v3477 = vlaneseq
    %v3478 = vshrl.u32 %v3477, 7
    %v3479 = vsub.s32 %v3476, %v3478
    %v3480 = vrot.slane %v3466, %v3479
    %v3481 = vcombine.low %v3473, %v3480
    %v3482 = vcombine.low %v1937, %v1951
    %v3483 = vcombine.low %v1959, %v1961
    %v3484 = vcombine.low %v1944, %v1958
    %v3485 = vcombine.low %v1960, %v1962
    %v3487 = vunpack.c.l.s4 1966171168
    %v3488 = vunpack.c.0.s8 %v3487
    %v3489 = vlaneseq
    %v3490 = vshrl.u32 %v3489, 7
    %v3491 = vsub.s32 %v3488, %v3490
    %v3492 = vrot.slane %v3482, %v3491
    %v3494 = vunpack.c.l.s4 1966171168
    %v3495 = vunpack.c.0.s8 %v3494
    %v3496 = vlaneseq
    %v3497 = vshrl.u32 %v3496, 7
    %v3498 = vsub.s32 %v3495, %v3497
    %v3499 = vrot.slane %v3483, %v3498
    %v3501 = vunpack.c.l.s4 1966171168
    %v3502 = vunpack.c.0.s8 %v3501
    %v3503 = vlaneseq
    %v3504 = vshrl.u32 %v3503, 7
    %v3505 = vsub.s32 %v3502, %v3504
    %v3506 = vrot.slane %v3484, %v3505
    %v3508 = vunpack.c.l.s4 1966171168
    %v3509 = vunpack.c.0.s8 %v3508
    %v3510 = vlaneseq
    %v3511 = vshrl.u32 %v3510, 7
    %v3512 = vsub.s32 %v3509, %v3511
    %v3513 = vrot.slane %v3485, %v3512
    %v3514 = vcombine.low %v3492, %v3499
    %v3515 = vcombine.low %v3506, %v3513
    %v3517 = vunpack.c.l.s4 1966171168
    %v3518 = vunpack.c.0.s8 %v3517
    %v3519 = vlaneseq
    %v3520 = vshrl.u32 %v3519, 7
    %v3521 = vsub.s32 %v3518, %v3520
    %v3522 = vrot.slane %v3514, %v3521
    %v3524 = vunpack.c.l.s4 1966171168
    %v3525 = vunpack.c.0.s8 %v3524
    %v3526 = vlaneseq
    %v3527 = vshrl.u32 %v3526, 7
    %v3528 = vsub.s32 %v3525, %v3527
    %v3529 = vrot.slane %v3515, %v3528
    %v3530 = vcombine.low %v3522, %v3529
    %v3531 = vcombine.low %v1986, %v2000
    %v3532 = vcombine.low %v2008, %v2010
    %v3533 = vcombine.low %v1993, %v2007
    %v3534 = vcombine.low %v2009, %v2011
    %v3536 = vunpack.c.l.s4 1966171168
    %v3537 = vunpack.c.0.s8 %v3536
    %v3538 = vlaneseq
    %v3539 = vshrl.u32 %v3538, 7
    %v3540 = vsub.s32 %v3537, %v3539
    %v3541 = vrot.slane %v3531, %v3540
    %v3543 = vunpack.c.l.s4 1966171168
    %v3544 = vunpack.c.0.s8 %v3543
    %v3545 = vlaneseq
    %v3546 = vshrl.u32 %v3545, 7
    %v3547 = vsub.s32 %v3544, %v3546
    %v3548 = vrot.slane %v3532, %v3547
    %v3550 = vunpack.c.l.s4 1966171168
    %v3551 = vunpack.c.0.s8 %v3550
    %v3552 = vlaneseq
    %v3553 = vshrl.u32 %v3552, 7
    %v3554 = vsub.s32 %v3551, %v3553
    %v3555 = vrot.slane %v3533, %v3554
    %v3557 = vunpack.c.l.s4 1966171168
    %v3558 = vunpack.c.0.s8 %v3557
    %v3559 = vlaneseq
    %v3560 = vshrl.u32 %v3559, 7
    %v3561 = vsub.s32 %v3558, %v3560
    %v3562 = vrot.slane %v3534, %v3561
    %v3563 = vcombine.low %v3541, %v3548
    %v3564 = vcombine.low %v3555, %v3562
    %v3566 = vunpack.c.l.s4 1966171168
    %v3567 = vunpack.c.0.s8 %v3566
    %v3568 = vlaneseq
    %v3569 = vshrl.u32 %v3568, 7
    %v3570 = vsub.s32 %v3567, %v3569
    %v3571 = vrot.slane %v3563, %v3570
    %v3573 = vunpack.c.l.s4 1966171168
    %v3574 = vunpack.c.0.s8 %v3573
    %v3575 = vlaneseq
    %v3576 = vshrl.u32 %v3575, 7
    %v3577 = vsub.s32 %v3574, %v3576
    %v3578 = vrot.slane %v3564, %v3577
    %v3579 = vcombine.low %v3571, %v3578
    %v3580 = vcombine.low %v2035, %v2049
    %v3581 = vcombine.low %v2057, %v2059
    %v3582 = vcombine.low %v2042, %v2056
    %v3583 = vcombine.low %v2058, %v2060
    %v3585 = vunpack.c.l.s4 1966171168
    %v3586 = vunpack.c.0.s8 %v3585
    %v3587 = vlaneseq
    %v3588 = vshrl.u32 %v3587, 7
    %v3589 = vsub.s32 %v3586, %v3588
    %v3590 = vrot.slane %v3580, %v3589
    %v3592 = vunpack.c.l.s4 1966171168
    %v3593 = vunpack.c.0.s8 %v3592
    %v3594 = vlaneseq
    %v3595 = vshrl.u32 %v3594, 7
    %v3596 = vsub.s32 %v3593, %v3595
    %v3597 = vrot.slane %v3581, %v3596
    %v3599 = vunpack.c.l.s4 1966171168
    %v3600 = vunpack.c.0.s8 %v3599
    %v3601 = vlaneseq
    %v3602 = vshrl.u32 %v3601, 7
    %v3603 = vsub.s32 %v3600, %v3602
    %v3604 = vrot.slane %v3582, %v3603
    %v3606 = vunpack.c.l.s4 1966171168
    %v3607 = vunpack.c.0.s8 %v3606
    %v3608 = vlaneseq
    %v3609 = vshrl.u32 %v3608, 7
    %v3610 = vsub.s32 %v3607, %v3609
    %v3611 = vrot.slane %v3583, %v3610
    %v3612 = vcombine.low %v3590, %v3597
    %v3613 = vcombine.low %v3604, %v3611
    %v3615 = vunpack.c.l.s4 1966171168
    %v3616 = vunpack.c.0.s8 %v3615
    %v3617 = vlaneseq
    %v3618 = vshrl.u32 %v3617, 7
    %v3619 = vsub.s32 %v3616, %v3618
    %v3620 = vrot.slane %v3612, %v3619
    %v3622 = vunpack.c.l.s4 1966171168
    %v3623 = vunpack.c.0.s8 %v3622
    %v3624 = vlaneseq
    %v3625 = vshrl.u32 %v3624, 7
    %v3626 = vsub.s32 %v3623, %v3625
    %v3627 = vrot.slane %v3613, %v3626
    %v3628 = vcombine.low %v3620, %v3627
    %v3629 = vcombine.low %v2084, %v2098
    %v3630 = vcombine.low %v2106, %v2108
    %v3631 = vcombine.low %v2091, %v2105
    %v3632 = vcombine.low %v2107, %v2109
    %v3634 = vunpack.c.l.s4 1966171168
    %v3635 = vunpack.c.0.s8 %v3634
    %v3636 = vlaneseq
    %v3637 = vshrl.u32 %v3636, 7
    %v3638 = vsub.s32 %v3635, %v3637
    %v3639 = vrot.slane %v3629, %v3638
    %v3641 = vunpack.c.l.s4 1966171168
    %v3642 = vunpack.c.0.s8 %v3641
    %v3643 = vlaneseq
    %v3644 = vshrl.u32 %v3643, 7
    %v3645 = vsub.s32 %v3642, %v3644
    %v3646 = vrot.slane %v3630, %v3645
    %v3648 = vunpack.c.l.s4 1966171168
    %v3649 = vunpack.c.0.s8 %v3648
    %v3650 = vlaneseq
    %v3651 = vshrl.u32 %v3650, 7
    %v3652 = vsub.s32 %v3649, %v3651
    %v3653 = vrot.slane %v3631, %v3652
    %v3655 = vunpack.c.l.s4 1966171168
    %v3656 = vunpack.c.0.s8 %v3655
    %v3657 = vlaneseq
    %v3658 = vshrl.u32 %v3657, 7
    %v3659 = vsub.s32 %v3656, %v3658
    %v3660 = vrot.slane %v3632, %v3659
    %v3661 = vcombine.low %v3639, %v3646
    %v3662 = vcombine.low %v3653, %v3660
    %v3664 = vunpack.c.l.s4 1966171168
    %v3665 = vunpack.c.0.s8 %v3664
    %v3666 = vlaneseq
    %v3667 = vshrl.u32 %v3666, 7
    %v3668 = vsub.s32 %v3665, %v3667
    %v3669 = vrot.slane %v3661, %v3668
    %v3671 = vunpack.c.l.s4 1966171168
    %v3672 = vunpack.c.0.s8 %v3671
    %v3673 = vlaneseq
    %v3674 = vshrl.u32 %v3673, 7
    %v3675 = vsub.s32 %v3672, %v3674
    %v3676 = vrot.slane %v3662, %v3675
    %v3677 = vcombine.low %v3669, %v3676
    %v3678 = vcombine.low %v2133, %v2147
    %v3679 = vcombine.low %v2155, %v2157
    %v3680 = vcombine.low %v2140, %v2154
    %v3681 = vcombine.low %v2156, %v2158
    %v3683 = vunpack.c.l.s4 1966171168
    %v3684 = vunpack.c.0.s8 %v3683
    %v3685 = vlaneseq
    %v3686 = vshrl.u32 %v3685, 7
    %v3687 = vsub.s32 %v3684, %v3686
    %v3688 = vrot.slane %v3678, %v3687
    %v3690 = vunpack.c.l.s4 1966171168
    %v3691 = vunpack.c.0.s8 %v3690
    %v3692 = vlaneseq
    %v3693 = vshrl.u32 %v3692, 7
    %v3694 = vsub.s32 %v3691, %v3693
    %v3695 = vrot.slane %v3679, %v3694
    %v3697 = vunpack.c.l.s4 1966171168
    %v3698 = vunpack.c.0.s8 %v3697
    %v3699 = vlaneseq
    %v3700 = vshrl.u32 %v3699, 7
    %v3701 = vsub.s32 %v3698, %v3700
    %v3702 = vrot.slane %v3680, %v3701
    %v3704 = vunpack.c.l.s4 1966171168
    %v3705 = vunpack.c.0.s8 %v3704
    %v3706 = vlaneseq
    %v3707 = vshrl.u32 %v3706, 7
    %v3708 = vsub.s32 %v3705, %v3707
    %v3709 = vrot.slane %v3681, %v3708
    %v3710 = vcombine.low %v3688, %v3695
    %v3711 = vcombine.low %v3702, %v3709
    %v3713 = vunpack.c.l.s4 1966171168
    %v3714 = vunpack.c.0.s8 %v3713
    %v3715 = vlaneseq
    %v3716 = vshrl.u32 %v3715, 7
    %v3717 = vsub.s32 %v3714, %v3716
    %v3718 = vrot.slane %v3710, %v3717
    %v3720 = vunpack.c.l.s4 1966171168
    %v3721 = vunpack.c.0.s8 %v3720
    %v3722 = vlaneseq
    %v3723 = vshrl.u32 %v3722, 7
    %v3724 = vsub.s32 %v3721, %v3723
    %v3725 = vrot.slane %v3711, %v3724
    %v3726 = vcombine.low %v3718, %v3725
    %v3727 = vcombine.low %v2182, %v2196
    %v3728 = vcombine.low %v2204, %v2206
    %v3729 = vcombine.low %v2189, %v2203
    %v3730 = vcombine.low %v2205, %v2207
    %v3732 = vunpack.c.l.s4 1966171168
    %v3733 = vunpack.c.0.s8 %v3732
    %v3734 = vlaneseq
    %v3735 = vshrl.u32 %v3734, 7
    %v3736 = vsub.s32 %v3733, %v3735
    %v3737 = vrot.slane %v3727, %v3736
    %v3739 = vunpack.c.l.s4 1966171168
    %v3740 = vunpack.c.0.s8 %v3739
    %v3741 = vlaneseq
    %v3742 = vshrl.u32 %v3741, 7
    %v3743 = vsub.s32 %v3740, %v3742
    %v3744 = vrot.slane %v3728, %v3743
    %v3746 = vunpack.c.l.s4 1966171168
    %v3747 = vunpack.c.0.s8 %v3746
    %v3748 = vlaneseq
    %v3749 = vshrl.u32 %v3748, 7
    %v3750 = vsub.s32 %v3747, %v3749
    %v3751 = vrot.slane %v3729, %v3750
    %v3753 = vunpack.c.l.s4 1966171168
    %v3754 = vunpack.c.0.s8 %v3753
    %v3755 = vlaneseq
    %v3756 = vshrl.u32 %v3755, 7
    %v3757 = vsub.s32 %v3754, %v3756
    %v3758 = vrot.slane %v3730, %v3757
    %v3759 = vcombine.low %v3737, %v3744
    %v3760 = vcombine.low %v3751, %v3758
    %v3762 = vunpack.c.l.s4 1966171168
    %v3763 = vunpack.c.0.s8 %v3762
    %v3764 = vlaneseq
    %v3765 = vshrl.u32 %v3764, 7
    %v3766 = vsub.s32 %v3763, %v3765
    %v3767 = vrot.slane %v3759, %v3766
    %v3769 = vunpack.c.l.s4 1966171168
    %v3770 = vunpack.c.0.s8 %v3769
    %v3771 = vlaneseq
    %v3772 = vshrl.u32 %v3771, 7
    %v3773 = vsub.s32 %v3770, %v3772
    %v3774 = vrot.slane %v3760, %v3773
    %v3775 = vcombine.low %v3767, %v3774
    %v3776 = vcombine.low %v2231, %v2245
    %v3777 = vcombine.low %v2253, %v2255
    %v3778 = vcombine.low %v2238, %v2252
    %v3779 = vcombine.low %v2254, %v2256
    %v3781 = vunpack.c.l.s4 1966171168
    %v3782 = vunpack.c.0.s8 %v3781
    %v3783 = vlaneseq
    %v3784 = vshrl.u32 %v3783, 7
    %v3785 = vsub.s32 %v3782, %v3784
    %v3786 = vrot.slane %v3776, %v3785
    %v3788 = vunpack.c.l.s4 1966171168
    %v3789 = vunpack.c.0.s8 %v3788
    %v3790 = vlaneseq
    %v3791 = vshrl.u32 %v3790, 7
    %v3792 = vsub.s32 %v3789, %v3791
    %v3793 = vrot.slane %v3777, %v3792
    %v3795 = vunpack.c.l.s4 1966171168
    %v3796 = vunpack.c.0.s8 %v3795
    %v3797 = vlaneseq
    %v3798 = vshrl.u32 %v3797, 7
    %v3799 = vsub.s32 %v3796, %v3798
    %v3800 = vrot.slane %v3778, %v3799
    %v3802 = vunpack.c.l.s4 1966171168
    %v3803 = vunpack.c.0.s8 %v3802
    %v3804 = vlaneseq
    %v3805 = vshrl.u32 %v3804, 7
    %v3806 = vsub.s32 %v3803, %v3805
    %v3807 = vrot.slane %v3779, %v3806
    %v3808 = vcombine.low %v3786, %v3793
    %v3809 = vcombine.low %v3800, %v3807
    %v3811 = vunpack.c.l.s4 1966171168
    %v3812 = vunpack.c.0.s8 %v3811
    %v3813 = vlaneseq
    %v3814 = vshrl.u32 %v3813, 7
    %v3815 = vsub.s32 %v3812, %v3814
    %v3816 = vrot.slane %v3808, %v3815
    %v3818 = vunpack.c.l.s4 1966171168
    %v3819 = vunpack.c.0.s8 %v3818
    %v3820 = vlaneseq
    %v3821 = vshrl.u32 %v3820, 7
    %v3822 = vsub.s32 %v3819, %v3821
    %v3823 = vrot.slane %v3809, %v3822
    %v3824 = vcombine.low %v3816, %v3823
    %v3825 = vcombine.low %v2280, %v2294
    %v3826 = vcombine.low %v2302, %v2304
    %v3827 = vcombine.low %v2287, %v2301
    %v3828 = vcombine.low %v2303, %v2305
    %v3830 = vunpack.c.l.s4 1966171168
    %v3831 = vunpack.c.0.s8 %v3830
    %v3832 = vlaneseq
    %v3833 = vshrl.u32 %v3832, 7
    %v3834 = vsub.s32 %v3831, %v3833
    %v3835 = vrot.slane %v3825, %v3834
    %v3837 = vunpack.c.l.s4 1966171168
    %v3838 = vunpack.c.0.s8 %v3837
    %v3839 = vlaneseq
    %v3840 = vshrl.u32 %v3839, 7
    %v3841 = vsub.s32 %v3838, %v3840
    %v3842 = vrot.slane %v3826, %v3841
    %v3844 = vunpack.c.l.s4 1966171168
    %v3845 = vunpack.c.0.s8 %v3844
    %v3846 = vlaneseq
    %v3847 = vshrl.u32 %v3846, 7
    %v3848 = vsub.s32 %v3845, %v3847
    %v3849 = vrot.slane %v3827, %v3848
    %v3851 = vunpack.c.l.s4 1966171168
    %v3852 = vunpack.c.0.s8 %v3851
    %v3853 = vlaneseq
    %v3854 = vshrl.u32 %v3853, 7
    %v3855 = vsub.s32 %v3852, %v3854
    %v3856 = vrot.slane %v3828, %v3855
    %v3857 = vcombine.low %v3835, %v3842
    %v3858 = vcombine.low %v3849, %v3856
    %v3860 = vunpack.c.l.s4 1966171168
    %v3861 = vunpack.c.0.s8 %v3860
    %v3862 = vlaneseq
    %v3863 = vshrl.u32 %v3862, 7
    %v3864 = vsub.s32 %v3861, %v3863
    %v3865 = vrot.slane %v3857, %v3864
    %v3867 = vunpack.c.l.s4 1966171168
    %v3868 = vunpack.c.0.s8 %v3867
    %v3869 = vlaneseq
    %v3870 = vshrl.u32 %v3869, 7
    %v3871 = vsub.s32 %v3868, %v3870
    %v3872 = vrot.slane %v3858, %v3871
    %v3873 = vcombine.low %v3865, %v3872
    %v3874 = vcombine.low %v2329, %v2343
    %v3875 = vcombine.low %v2351, %v2353
    %v3876 = vcombine.low %v2336, %v2350
    %v3877 = vcombine.low %v2352, %v2354
    %v3879 = vunpack.c.l.s4 1966171168
    %v3880 = vunpack.c.0.s8 %v3879
    %v3881 = vlaneseq
    %v3882 = vshrl.u32 %v3881, 7
    %v3883 = vsub.s32 %v3880, %v3882
    %v3884 = vrot.slane %v3874, %v3883
    %v3886 = vunpack.c.l.s4 1966171168
    %v3887 = vunpack.c.0.s8 %v3886
    %v3888 = vlaneseq
    %v3889 = vshrl.u32 %v3888, 7
    %v3890 = vsub.s32 %v3887, %v3889
    %v3891 = vrot.slane %v3875, %v3890
    %v3893 = vunpack.c.l.s4 1966171168
    %v3894 = vunpack.c.0.s8 %v3893
    %v3895 = vlaneseq
    %v3896 = vshrl.u32 %v3895, 7
    %v3897 = vsub.s32 %v3894, %v3896
    %v3898 = vrot.slane %v3876, %v3897
    %v3900 = vunpack.c.l.s4 1966171168
    %v3901 = vunpack.c.0.s8 %v3900
    %v3902 = vlaneseq
    %v3903 = vshrl.u32 %v3902, 7
    %v3904 = vsub.s32 %v3901, %v3903
    %v3905 = vrot.slane %v3877, %v3904
    %v3906 = vcombine.low %v3884, %v3891
    %v3907 = vcombine.low %v3898, %v3905
    %v3909 = vunpack.c.l.s4 1966171168
    %v3910 = vunpack.c.0.s8 %v3909
    %v3911 = vlaneseq
    %v3912 = vshrl.u32 %v3911, 7
    %v3913 = vsub.s32 %v3910, %v3912
    %v3914 = vrot.slane %v3906, %v3913
    %v3916 = vunpack.c.l.s4 1966171168
    %v3917 = vunpack.c.0.s8 %v3916
    %v3918 = vlaneseq
    %v3919 = vshrl.u32 %v3918, 7
    %v3920 = vsub.s32 %v3917, %v3919
    %v3921 = vrot.slane %v3907, %v3920
    %v3922 = vcombine.low %v3914, %v3921
    %v3923 = vcombine.low %v2378, %v2392
    %v3924 = vcombine.low %v2400, %v2402
    %v3925 = vcombine.low %v2385, %v2399
    %v3926 = vcombine.low %v2401, %v2403
    %v3928 = vunpack.c.l.s4 1966171168
    %v3929 = vunpack.c.0.s8 %v3928
    %v3930 = vlaneseq
    %v3931 = vshrl.u32 %v3930, 7
    %v3932 = vsub.s32 %v3929, %v3931
    %v3933 = vrot.slane %v3923, %v3932
    %v3935 = vunpack.c.l.s4 1966171168
    %v3936 = vunpack.c.0.s8 %v3935
    %v3937 = vlaneseq
    %v3938 = vshrl.u32 %v3937, 7
    %v3939 = vsub.s32 %v3936, %v3938
    %v3940 = vrot.slane %v3924, %v3939
    %v3942 = vunpack.c.l.s4 1966171168
    %v3943 = vunpack.c.0.s8 %v3942
    %v3944 = vlaneseq
    %v3945 = vshrl.u32 %v3944, 7
    %v3946 = vsub.s32 %v3943, %v3945
    %v3947 = vrot.slane %v3925, %v3946
    %v3949 = vunpack.c.l.s4 1966171168
    %v3950 = vunpack.c.0.s8 %v3949
    %v3951 = vlaneseq
    %v3952 = vshrl.u32 %v3951, 7
    %v3953 = vsub.s32 %v3950, %v3952
    %v3954 = vrot.slane %v3926, %v3953
    %v3955 = vcombine.low %v3933, %v3940
    %v3956 = vcombine.low %v3947, %v3954
    %v3958 = vunpack.c.l.s4 1966171168
    %v3959 = vunpack.c.0.s8 %v3958
    %v3960 = vlaneseq
    %v3961 = vshrl.u32 %v3960, 7
    %v3962 = vsub.s32 %v3959, %v3961
    %v3963 = vrot.slane %v3955, %v3962
    %v3965 = vunpack.c.l.s4 1966171168
    %v3966 = vunpack.c.0.s8 %v3965
    %v3967 = vlaneseq
    %v3968 = vshrl.u32 %v3967, 7
    %v3969 = vsub.s32 %v3966, %v3968
    %v3970 = vrot.slane %v3956, %v3969
    %v3971 = vcombine.low %v3963, %v3970
    %v3972 = vcombine.low %v2427, %v2441
    %v3973 = vcombine.low %v2449, %v2451
    %v3974 = vcombine.low %v2434, %v2448
    %v3975 = vcombine.low %v2450, %v2452
    %v3977 = vunpack.c.l.s4 1966171168
    %v3978 = vunpack.c.0.s8 %v3977
    %v3979 = vlaneseq
    %v3980 = vshrl.u32 %v3979, 7
    %v3981 = vsub.s32 %v3978, %v3980
    %v3982 = vrot.slane %v3972, %v3981
    %v3984 = vunpack.c.l.s4 1966171168
    %v3985 = vunpack.c.0.s8 %v3984
    %v3986 = vlaneseq
    %v3987 = vshrl.u32 %v3986, 7
    %v3988 = vsub.s32 %v3985, %v3987
    %v3989 = vrot.slane %v3973, %v3988
    %v3991 = vunpack.c.l.s4 1966171168
    %v3992 = vunpack.c.0.s8 %v3991
    %v3993 = vlaneseq
    %v3994 = vshrl.u32 %v3993, 7
    %v3995 = vsub.s32 %v3992, %v3994
    %v3996 = vrot.slane %v3974, %v3995
    %v3998 = vunpack.c.l.s4 1966171168
    %v3999 = vunpack.c.0.s8 %v3998
    %v4000 = vlaneseq
    %v4001 = vshrl.u32 %v4000, 7
    %v4002 = vsub.s32 %v3999, %v4001
    %v4003 = vrot.slane %v3975, %v4002
    %v4004 = vcombine.low %v3982, %v3989
    %v4005 = vcombine.low %v3996, %v4003
    %v4007 = vunpack.c.l.s4 1966171168
    %v4008 = vunpack.c.0.s8 %v4007
    %v4009 = vlaneseq
    %v4010 = vshrl.u32 %v4009, 7
    %v4011 = vsub.s32 %v4008, %v4010
    %v4012 = vrot.slane %v4004, %v4011
    %v4014 = vunpack.c.l.s4 1966171168
    %v4015 = vunpack.c.0.s8 %v4014
    %v4016 = vlaneseq
    %v4017 = vshrl.u32 %v4016, 7
    %v4018 = vsub.s32 %v4015, %v4017
    %v4019 = vrot.slane %v4005, %v4018
    %v4020 = vcombine.low %v4012, %v4019
    %v4021 = vcombine.low %v2476, %v2490
    %v4022 = vcombine.low %v2498, %v2500
    %v4023 = vcombine.low %v2483, %v2497
    %v4024 = vcombine.low %v2499, %v2501
    %v4026 = vunpack.c.l.s4 1966171168
    %v4027 = vunpack.c.0.s8 %v4026
    %v4028 = vlaneseq
    %v4029 = vshrl.u32 %v4028, 7
    %v4030 = vsub.s32 %v4027, %v4029
    %v4031 = vrot.slane %v4021, %v4030
    %v4033 = vunpack.c.l.s4 1966171168
    %v4034 = vunpack.c.0.s8 %v4033
    %v4035 = vlaneseq
    %v4036 = vshrl.u32 %v4035, 7
    %v4037 = vsub.s32 %v4034, %v4036
    %v4038 = vrot.slane %v4022, %v4037
    %v4040 = vunpack.c.l.s4 1966171168
    %v4041 = vunpack.c.0.s8 %v4040
    %v4042 = vlaneseq
    %v4043 = vshrl.u32 %v4042, 7
    %v4044 = vsub.s32 %v4041, %v4043
    %v4045 = vrot.slane %v4023, %v4044
    %v4047 = vunpack.c.l.s4 1966171168
    %v4048 = vunpack.c.0.s8 %v4047
    %v4049 = vlaneseq
    %v4050 = vshrl.u32 %v4049, 7
    %v4051 = vsub.s32 %v4048, %v4050
    %v4052 = vrot.slane %v4024, %v4051
    %v4053 = vcombine.low %v4031, %v4038
    %v4054 = vcombine.low %v4045, %v4052
    %v4056 = vunpack.c.l.s4 1966171168
    %v4057 = vunpack.c.0.s8 %v4056
    %v4058 = vlaneseq
    %v4059 = vshrl.u32 %v4058, 7
    %v4060 = vsub.s32 %v4057, %v4059
    %v4061 = vrot.slane %v4053, %v4060
    %v4063 = vunpack.c.l.s4 1966171168
    %v4064 = vunpack.c.0.s8 %v4063
    %v4065 = vlaneseq
    %v4066 = vshrl.u32 %v4065, 7
    %v4067 = vsub.s32 %v4064, %v4066
    %v4068 = vrot.slane %v4054, %v4067
    %v4069 = vcombine.low %v4061, %v4068
    %v4070 = vcombine.low %v2525, %v2539
    %v4071 = vcombine.low %v2547, %v2549
    %v4072 = vcombine.low %v2532, %v2546
    %v4073 = vcombine.low %v2548, %v2550
    %v4075 = vunpack.c.l.s4 1966171168
    %v4076 = vunpack.c.0.s8 %v4075
    %v4077 = vlaneseq
    %v4078 = vshrl.u32 %v4077, 7
    %v4079 = vsub.s32 %v4076, %v4078
    %v4080 = vrot.slane %v4070, %v4079
    %v4082 = vunpack.c.l.s4 1966171168
    %v4083 = vunpack.c.0.s8 %v4082
    %v4084 = vlaneseq
    %v4085 = vshrl.u32 %v4084, 7
    %v4086 = vsub.s32 %v4083, %v4085
    %v4087 = vrot.slane %v4071, %v4086
    %v4089 = vunpack.c.l.s4 1966171168
    %v4090 = vunpack.c.0.s8 %v4089
    %v4091 = vlaneseq
    %v4092 = vshrl.u32 %v4091, 7
    %v4093 = vsub.s32 %v4090, %v4092
    %v4094 = vrot.slane %v4072, %v4093
    %v4096 = vunpack.c.l.s4 1966171168
    %v4097 = vunpack.c.0.s8 %v4096
    %v4098 = vlaneseq
    %v4099 = vshrl.u32 %v4098, 7
    %v4100 = vsub.s32 %v4097, %v4099
    %v4101 = vrot.slane %v4073, %v4100
    %v4102 = vcombine.low %v4080, %v4087
    %v4103 = vcombine.low %v4094, %v4101
    %v4105 = vunpack.c.l.s4 1966171168
    %v4106 = vunpack.c.0.s8 %v4105
    %v4107 = vlaneseq
    %v4108 = vshrl.u32 %v4107, 7
    %v4109 = vsub.s32 %v4106, %v4108
    %v4110 = vrot.slane %v4102, %v4109
    %v4112 = vunpack.c.l.s4 1966171168
    %v4113 = vunpack.c.0.s8 %v4112
    %v4114 = vlaneseq
    %v4115 = vshrl.u32 %v4114, 7
    %v4116 = vsub.s32 %v4113, %v4115
    %v4117 = vrot.slane %v4103, %v4116
    %v4118 = vcombine.low %v4110, %v4117
    %v4119 = vcombine.low %v2574, %v2588
    %v4120 = vcombine.low %v2596, %v2598
    %v4121 = vcombine.low %v2581, %v2595
    %v4122 = vcombine.low %v2597, %v2599
    %v4124 = vunpack.c.l.s4 1966171168
    %v4125 = vunpack.c.0.s8 %v4124
    %v4126 = vlaneseq
    %v4127 = vshrl.u32 %v4126, 7
    %v4128 = vsub.s32 %v4125, %v4127
    %v4129 = vrot.slane %v4119, %v4128
    %v4131 = vunpack.c.l.s4 1966171168
    %v4132 = vunpack.c.0.s8 %v4131
    %v4133 = vlaneseq
    %v4134 = vshrl.u32 %v4133, 7
    %v4135 = vsub.s32 %v4132, %v4134
    %v4136 = vrot.slane %v4120, %v4135
    %v4138 = vunpack.c.l.s4 1966171168
    %v4139 = vunpack.c.0.s8 %v4138
    %v4140 = vlaneseq
    %v4141 = vshrl.u32 %v4140, 7
    %v4142 = vsub.s32 %v4139, %v4141
    %v4143 = vrot.slane %v4121, %v4142
    %v4145 = vunpack.c.l.s4 1966171168
    %v4146 = vunpack.c.0.s8 %v4145
    %v4147 = vlaneseq
    %v4148 = vshrl.u32 %v4147, 7
    %v4149 = vsub.s32 %v4146, %v4148
    %v4150 = vrot.slane %v4122, %v4149
    %v4151 = vcombine.low %v4129, %v4136
    %v4152 = vcombine.low %v4143, %v4150
    %v4154 = vunpack.c.l.s4 1966171168
    %v4155 = vunpack.c.0.s8 %v4154
    %v4156 = vlaneseq
    %v4157 = vshrl.u32 %v4156, 7
    %v4158 = vsub.s32 %v4155, %v4157
    %v4159 = vrot.slane %v4151, %v4158
    %v4161 = vunpack.c.l.s4 1966171168
    %v4162 = vunpack.c.0.s8 %v4161
    %v4163 = vlaneseq
    %v4164 = vshrl.u32 %v4163, 7
    %v4165 = vsub.s32 %v4162, %v4164
    %v4166 = vrot.slane %v4152, %v4165
    %v4167 = vcombine.low %v4159, %v4166
    %v4168 = vcombine.low %v2623, %v2637
    %v4169 = vcombine.low %v2645, %v2647
    %v4170 = vcombine.low %v2630, %v2644
    %v4171 = vcombine.low %v2646, %v2648
    %v4173 = vunpack.c.l.s4 1966171168
    %v4174 = vunpack.c.0.s8 %v4173
    %v4175 = vlaneseq
    %v4176 = vshrl.u32 %v4175, 7
    %v4177 = vsub.s32 %v4174, %v4176
    %v4178 = vrot.slane %v4168, %v4177
    %v4180 = vunpack.c.l.s4 1966171168
    %v4181 = vunpack.c.0.s8 %v4180
    %v4182 = vlaneseq
    %v4183 = vshrl.u32 %v4182, 7
    %v4184 = vsub.s32 %v4181, %v4183
    %v4185 = vrot.slane %v4169, %v4184
    %v4187 = vunpack.c.l.s4 1966171168
    %v4188 = vunpack.c.0.s8 %v4187
    %v4189 = vlaneseq
    %v4190 = vshrl.u32 %v4189, 7
    %v4191 = vsub.s32 %v4188, %v4190
    %v4192 = vrot.slane %v4170, %v4191
    %v4194 = vunpack.c.l.s4 1966171168
    %v4195 = vunpack.c.0.s8 %v4194
    %v4196 = vlaneseq
    %v4197 = vshrl.u32 %v4196, 7
    %v4198 = vsub.s32 %v4195, %v4197
    %v4199 = vrot.slane %v4171, %v4198
    %v4200 = vcombine.low %v4178, %v4185
    %v4201 = vcombine.low %v4192, %v4199
    %v4203 = vunpack.c.l.s4 1966171168
    %v4204 = vunpack.c.0.s8 %v4203
    %v4205 = vlaneseq
    %v4206 = vshrl.u32 %v4205, 7
    %v4207 = vsub.s32 %v4204, %v4206
    %v4208 = vrot.slane %v4200, %v4207
    %v4210 = vunpack.c.l.s4 1966171168
    %v4211 = vunpack.c.0.s8 %v4210
    %v4212 = vlaneseq
    %v4213 = vshrl.u32 %v4212, 7
    %v4214 = vsub.s32 %v4211, %v4213
    %v4215 = vrot.slane %v4201, %v4214
    %v4216 = vcombine.low %v4208, %v4215
    %v4217 = vcombine.low %v2672, %v2686
    %v4218 = vcombine.low %v2694, %v2696
    %v4219 = vcombine.low %v2679, %v2693
    %v4220 = vcombine.low %v2695, %v2697
    %v4222 = vunpack.c.l.s4 1966171168
    %v4223 = vunpack.c.0.s8 %v4222
    %v4224 = vlaneseq
    %v4225 = vshrl.u32 %v4224, 7
    %v4226 = vsub.s32 %v4223, %v4225
    %v4227 = vrot.slane %v4217, %v4226
    %v4229 = vunpack.c.l.s4 1966171168
    %v4230 = vunpack.c.0.s8 %v4229
    %v4231 = vlaneseq
    %v4232 = vshrl.u32 %v4231, 7
    %v4233 = vsub.s32 %v4230, %v4232
    %v4234 = vrot.slane %v4218, %v4233
    %v4236 = vunpack.c.l.s4 1966171168
    %v4237 = vunpack.c.0.s8 %v4236
    %v4238 = vlaneseq
    %v4239 = vshrl.u32 %v4238, 7
    %v4240 = vsub.s32 %v4237, %v4239
    %v4241 = vrot.slane %v4219, %v4240
    %v4243 = vunpack.c.l.s4 1966171168
    %v4244 = vunpack.c.0.s8 %v4243
    %v4245 = vlaneseq
    %v4246 = vshrl.u32 %v4245, 7
    %v4247 = vsub.s32 %v4244, %v4246
    %v4248 = vrot.slane %v4220, %v4247
    %v4249 = vcombine.low %v4227, %v4234
    %v4250 = vcombine.low %v4241, %v4248
    %v4252 = vunpack.c.l.s4 1966171168
    %v4253 = vunpack.c.0.s8 %v4252
    %v4254 = vlaneseq
    %v4255 = vshrl.u32 %v4254, 7
    %v4256 = vsub.s32 %v4253, %v4255
    %v4257 = vrot.slane %v4249, %v4256
    %v4259 = vunpack.c.l.s4 1966171168
    %v4260 = vunpack.c.0.s8 %v4259
    %v4261 = vlaneseq
    %v4262 = vshrl.u32 %v4261, 7
    %v4263 = vsub.s32 %v4260, %v4262
    %v4264 = vrot.slane %v4250, %v4263
    %v4265 = vcombine.low %v4257, %v4264
    %v4266 = vcombine.low %v2721, %v2735
    %v4267 = vcombine.low %v2743, %v2745
    %v4268 = vcombine.low %v2728, %v2742
    %v4269 = vcombine.low %v2744, %v2746
    %v4271 = vunpack.c.l.s4 1966171168
    %v4272 = vunpack.c.0.s8 %v4271
    %v4273 = vlaneseq
    %v4274 = vshrl.u32 %v4273, 7
    %v4275 = vsub.s32 %v4272, %v4274
    %v4276 = vrot.slane %v4266, %v4275
    %v4278 = vunpack.c.l.s4 1966171168
    %v4279 = vunpack.c.0.s8 %v4278
    %v4280 = vlaneseq
    %v4281 = vshrl.u32 %v4280, 7
    %v4282 = vsub.s32 %v4279, %v4281
    %v4283 = vrot.slane %v4267, %v4282
    %v4285 = vunpack.c.l.s4 1966171168
    %v4286 = vunpack.c.0.s8 %v4285
    %v4287 = vlaneseq
    %v4288 = vshrl.u32 %v4287, 7
    %v4289 = vsub.s32 %v4286, %v4288
    %v4290 = vrot.slane %v4268, %v4289
    %v4292 = vunpack.c.l.s4 1966171168
    %v4293 = vunpack.c.0.s8 %v4292
    %v4294 = vlaneseq
    %v4295 = vshrl.u32 %v4294, 7
    %v4296 = vsub.s32 %v4293, %v4295
    %v4297 = vrot.slane %v4269, %v4296
    %v4298 = vcombine.low %v4276, %v4283
    %v4299 = vcombine.low %v4290, %v4297
    %v4301 = vunpack.c.l.s4 1966171168
    %v4302 = vunpack.c.0.s8 %v4301
    %v4303 = vlaneseq
    %v4304 = vshrl.u32 %v4303, 7
    %v4305 = vsub.s32 %v4302, %v4304
    %v4306 = vrot.slane %v4298, %v4305
    %v4308 = vunpack.c.l.s4 1966171168
    %v4309 = vunpack.c.0.s8 %v4308
    %v4310 = vlaneseq
    %v4311 = vshrl.u32 %v4310, 7
    %v4312 = vsub.s32 %v4309, %v4311
    %v4313 = vrot.slane %v4299, %v4312
    %v4314 = vcombine.low %v4306, %v4313
    %v4315 = vcombine.low %v2770, %v2784
    %v4316 = vcombine.low %v2792, %v2794
    %v4317 = vcombine.low %v2777, %v2791
    %v4318 = vcombine.low %v2793, %v2795
    %v4320 = vunpack.c.l.s4 1966171168
    %v4321 = vunpack.c.0.s8 %v4320
    %v4322 = vlaneseq
    %v4323 = vshrl.u32 %v4322, 7
    %v4324 = vsub.s32 %v4321, %v4323
    %v4325 = vrot.slane %v4315, %v4324
    %v4327 = vunpack.c.l.s4 1966171168
    %v4328 = vunpack.c.0.s8 %v4327
    %v4329 = vlaneseq
    %v4330 = vshrl.u32 %v4329, 7
    %v4331 = vsub.s32 %v4328, %v4330
    %v4332 = vrot.slane %v4316, %v4331
    %v4334 = vunpack.c.l.s4 1966171168
    %v4335 = vunpack.c.0.s8 %v4334
    %v4336 = vlaneseq
    %v4337 = vshrl.u32 %v4336, 7
    %v4338 = vsub.s32 %v4335, %v4337
    %v4339 = vrot.slane %v4317, %v4338
    %v4341 = vunpack.c.l.s4 1966171168
    %v4342 = vunpack.c.0.s8 %v4341
    %v4343 = vlaneseq
    %v4344 = vshrl.u32 %v4343, 7
    %v4345 = vsub.s32 %v4342, %v4344
    %v4346 = vrot.slane %v4318, %v4345
    %v4347 = vcombine.low %v4325, %v4332
    %v4348 = vcombine.low %v4339, %v4346
    %v4350 = vunpack.c.l.s4 1966171168
    %v4351 = vunpack.c.0.s8 %v4350
    %v4352 = vlaneseq
    %v4353 = vshrl.u32 %v4352, 7
    %v4354 = vsub.s32 %v4351, %v4353
    %v4355 = vrot.slane %v4347, %v4354
    %v4357 = vunpack.c.l.s4 1966171168
    %v4358 = vunpack.c.0.s8 %v4357
    %v4359 = vlaneseq
    %v4360 = vshrl.u32 %v4359, 7
    %v4361 = vsub.s32 %v4358, %v4360
    %v4362 = vrot.slane %v4348, %v4361
    %v4363 = vcombine.low %v4355, %v4362
    %v4364 = vcombine.low %v2819, %v2833
    %v4365 = vcombine.low %v2841, %v2843
    %v4366 = vcombine.low %v2826, %v2840
    %v4367 = vcombine.low %v2842, %v2844
    %v4369 = vunpack.c.l.s4 1966171168
    %v4370 = vunpack.c.0.s8 %v4369
    %v4371 = vlaneseq
    %v4372 = vshrl.u32 %v4371, 7
    %v4373 = vsub.s32 %v4370, %v4372
    %v4374 = vrot.slane %v4364, %v4373
    %v4376 = vunpack.c.l.s4 1966171168
    %v4377 = vunpack.c.0.s8 %v4376
    %v4378 = vlaneseq
    %v4379 = vshrl.u32 %v4378, 7
    %v4380 = vsub.s32 %v4377, %v4379
    %v4381 = vrot.slane %v4365, %v4380
    %v4383 = vunpack.c.l.s4 1966171168
    %v4384 = vunpack.c.0.s8 %v4383
    %v4385 = vlaneseq
    %v4386 = vshrl.u32 %v4385, 7
    %v4387 = vsub.s32 %v4384, %v4386
    %v4388 = vrot.slane %v4366, %v4387
    %v4390 = vunpack.c.l.s4 1966171168
    %v4391 = vunpack.c.0.s8 %v4390
    %v4392 = vlaneseq
    %v4393 = vshrl.u32 %v4392, 7
    %v4394 = vsub.s32 %v4391, %v4393
    %v4395 = vrot.slane %v4367, %v4394
    %v4396 = vcombine.low %v4374, %v4381
    %v4397 = vcombine.low %v4388, %v4395
    %v4399 = vunpack.c.l.s4 1966171168
    %v4400 = vunpack.c.0.s8 %v4399
    %v4401 = vlaneseq
    %v4402 = vshrl.u32 %v4401, 7
    %v4403 = vsub.s32 %v4400, %v4402
    %v4404 = vrot.slane %v4396, %v4403
    %v4406 = vunpack.c.l.s4 1966171168
    %v4407 = vunpack.c.0.s8 %v4406
    %v4408 = vlaneseq
    %v4409 = vshrl.u32 %v4408, 7
    %v4410 = vsub.s32 %v4407, %v4409
    %v4411 = vrot.slane %v4397, %v4410
    %v4412 = vcombine.low %v4404, %v4411
    %v4413 = vcombine.low %v2868, %v2882
    %v4414 = vcombine.low %v2890, %v2892
    %v4415 = vcombine.low %v2875, %v2889
    %v4416 = vcombine.low %v2891, %v2893
    %v4418 = vunpack.c.l.s4 1966171168
    %v4419 = vunpack.c.0.s8 %v4418
    %v4420 = vlaneseq
    %v4421 = vshrl.u32 %v4420, 7
    %v4422 = vsub.s32 %v4419, %v4421
    %v4423 = vrot.slane %v4413, %v4422
    %v4425 = vunpack.c.l.s4 1966171168
    %v4426 = vunpack.c.0.s8 %v4425
    %v4427 = vlaneseq
    %v4428 = vshrl.u32 %v4427, 7
    %v4429 = vsub.s32 %v4426, %v4428
    %v4430 = vrot.slane %v4414, %v4429
    %v4432 = vunpack.c.l.s4 1966171168
    %v4433 = vunpack.c.0.s8 %v4432
    %v4434 = vlaneseq
    %v4435 = vshrl.u32 %v4434, 7
    %v4436 = vsub.s32 %v4433, %v4435
    %v4437 = vrot.slane %v4415, %v4436
    %v4439 = vunpack.c.l.s4 1966171168
    %v4440 = vunpack.c.0.s8 %v4439
    %v4441 = vlaneseq
    %v4442 = vshrl.u32 %v4441, 7
    %v4443 = vsub.s32 %v4440, %v4442
    %v4444 = vrot.slane %v4416, %v4443
    %v4445 = vcombine.low %v4423, %v4430
    %v4446 = vcombine.low %v4437, %v4444
    %v4448 = vunpack.c.l.s4 1966171168
    %v4449 = vunpack.c.0.s8 %v4448
    %v4450 = vlaneseq
    %v4451 = vshrl.u32 %v4450, 7
    %v4452 = vsub.s32 %v4449, %v4451
    %v4453 = vrot.slane %v4445, %v4452
    %v4455 = vunpack.c.l.s4 1966171168
    %v4456 = vunpack.c.0.s8 %v4455
    %v4457 = vlaneseq
    %v4458 = vshrl.u32 %v4457, 7
    %v4459 = vsub.s32 %v4456, %v4458
    %v4460 = vrot.slane %v4446, %v4459
    %v4461 = vcombine.low %v4453, %v4460
    %v4462 = vcombine.low %v2917, %v2931
    %v4463 = vcombine.low %v2939, %v2941
    %v4464 = vcombine.low %v2924, %v2938
    %v4465 = vcombine.low %v2940, %v2942
    %v4467 = vunpack.c.l.s4 1966171168
    %v4468 = vunpack.c.0.s8 %v4467
    %v4469 = vlaneseq
    %v4470 = vshrl.u32 %v4469, 7
    %v4471 = vsub.s32 %v4468, %v4470
    %v4472 = vrot.slane %v4462, %v4471
    %v4474 = vunpack.c.l.s4 1966171168
    %v4475 = vunpack.c.0.s8 %v4474
    %v4476 = vlaneseq
    %v4477 = vshrl.u32 %v4476, 7
    %v4478 = vsub.s32 %v4475, %v4477
    %v4479 = vrot.slane %v4463, %v4478
    %v4481 = vunpack.c.l.s4 1966171168
    %v4482 = vunpack.c.0.s8 %v4481
    %v4483 = vlaneseq
    %v4484 = vshrl.u32 %v4483, 7
    %v4485 = vsub.s32 %v4482, %v4484
    %v4486 = vrot.slane %v4464, %v4485
    %v4488 = vunpack.c.l.s4 1966171168
    %v4489 = vunpack.c.0.s8 %v4488
    %v4490 = vlaneseq
    %v4491 = vshrl.u32 %v4490, 7
    %v4492 = vsub.s32 %v4489, %v4491
    %v4493 = vrot.slane %v4465, %v4492
    %v4494 = vcombine.low %v4472, %v4479
    %v4495 = vcombine.low %v4486, %v4493
    %v4497 = vunpack.c.l.s4 1966171168
    %v4498 = vunpack.c.0.s8 %v4497
    %v4499 = vlaneseq
    %v4500 = vshrl.u32 %v4499, 7
    %v4501 = vsub.s32 %v4498, %v4500
    %v4502 = vrot.slane %v4494, %v4501
    %v4504 = vunpack.c.l.s4 1966171168
    %v4505 = vunpack.c.0.s8 %v4504
    %v4506 = vlaneseq
    %v4507 = vshrl.u32 %v4506, 7
    %v4508 = vsub.s32 %v4505, %v4507
    %v4509 = vrot.slane %v4495, %v4508
    %v4510 = vcombine.low %v4502, %v4509
    %v4511 = vcombine.low %v2966, %v2980
    %v4512 = vcombine.low %v2988, %v2990
    %v4513 = vcombine.low %v2973, %v2987
    %v4514 = vcombine.low %v2989, %v2991
    %v4516 = vunpack.c.l.s4 1966171168
    %v4517 = vunpack.c.0.s8 %v4516
    %v4518 = vlaneseq
    %v4519 = vshrl.u32 %v4518, 7
    %v4520 = vsub.s32 %v4517, %v4519
    %v4521 = vrot.slane %v4511, %v4520
    %v4523 = vunpack.c.l.s4 1966171168
    %v4524 = vunpack.c.0.s8 %v4523
    %v4525 = vlaneseq
    %v4526 = vshrl.u32 %v4525, 7
    %v4527 = vsub.s32 %v4524, %v4526
    %v4528 = vrot.slane %v4512, %v4527
    %v4530 = vunpack.c.l.s4 1966171168
    %v4531 = vunpack.c.0.s8 %v4530
    %v4532 = vlaneseq
    %v4533 = vshrl.u32 %v4532, 7
    %v4534 = vsub.s32 %v4531, %v4533
    %v4535 = vrot.slane %v4513, %v4534
    %v4537 = vunpack.c.l.s4 1966171168
    %v4538 = vunpack.c.0.s8 %v4537
    %v4539 = vlaneseq
    %v4540 = vshrl.u32 %v4539, 7
    %v4541 = vsub.s32 %v4538, %v4540
    %v4542 = vrot.slane %v4514, %v4541
    %v4543 = vcombine.low %v4521, %v4528
    %v4544 = vcombine.low %v4535, %v4542
    %v4546 = vunpack.c.l.s4 1966171168
    %v4547 = vunpack.c.0.s8 %v4546
    %v4548 = vlaneseq
    %v4549 = vshrl.u32 %v4548, 7
    %v4550 = vsub.s32 %v4547, %v4549
    %v4551 = vrot.slane %v4543, %v4550
    %v4553 = vunpack.c.l.s4 1966171168
    %v4554 = vunpack.c.0.s8 %v4553
    %v4555 = vlaneseq
    %v4556 = vshrl.u32 %v4555, 7
    %v4557 = vsub.s32 %v4554, %v4556
    %v4558 = vrot.slane %v4544, %v4557
    %v4559 = vcombine.low %v4551, %v4558
    %v4560 = vcombine.low %v3015, %v3029
    %v4561 = vcombine.low %v3037, %v3039
    %v4562 = vcombine.low %v3022, %v3036
    %v4563 = vcombine.low %v3038, %v3040
    %v4565 = vunpack.c.l.s4 1966171168
    %v4566 = vunpack.c.0.s8 %v4565
    %v4567 = vlaneseq
    %v4568 = vshrl.u32 %v4567, 7
    %v4569 = vsub.s32 %v4566, %v4568
    %v4570 = vrot.slane %v4560, %v4569
    %v4572 = vunpack.c.l.s4 1966171168
    %v4573 = vunpack.c.0.s8 %v4572
    %v4574 = vlaneseq
    %v4575 = vshrl.u32 %v4574, 7
    %v4576 = vsub.s32 %v4573, %v4575
    %v4577 = vrot.slane %v4561, %v4576
    %v4579 = vunpack.c.l.s4 1966171168
    %v4580 = vunpack.c.0.s8 %v4579
    %v4581 = vlaneseq
    %v4582 = vshrl.u32 %v4581, 7
    %v4583 = vsub.s32 %v4580, %v4582
    %v4584 = vrot.slane %v4562, %v4583
    %v4586 = vunpack.c.l.s4 1966171168
    %v4587 = vunpack.c.0.s8 %v4586
    %v4588 = vlaneseq
    %v4589 = vshrl.u32 %v4588, 7
    %v4590 = vsub.s32 %v4587, %v4589
    %v4591 = vrot.slane %v4563, %v4590
    %v4592 = vcombine.low %v4570, %v4577
    %v4593 = vcombine.low %v4584, %v4591
    %v4595 = vunpack.c.l.s4 1966171168
    %v4596 = vunpack.c.0.s8 %v4595
    %v4597 = vlaneseq
    %v4598 = vshrl.u32 %v4597, 7
    %v4599 = vsub.s32 %v4596, %v4598
    %v4600 = vrot.slane %v4592, %v4599
    %v4602 = vunpack.c.l.s4 1966171168
    %v4603 = vunpack.c.0.s8 %v4602
    %v4604 = vlaneseq
    %v4605 = vshrl.u32 %v4604, 7
    %v4606 = vsub.s32 %v4603, %v4605
    %v4607 = vrot.slane %v4593, %v4606
    %v4608 = vcombine.low %v4600, %v4607
    %v4609 = vcombine.low %v3064, %v3078
    %v4610 = vcombine.low %v3086, %v3088
    %v4611 = vcombine.low %v3071, %v3085
    %v4612 = vcombine.low %v3087, %v3089
    %v4614 = vunpack.c.l.s4 1966171168
    %v4615 = vunpack.c.0.s8 %v4614
    %v4616 = vlaneseq
    %v4617 = vshrl.u32 %v4616, 7
    %v4618 = vsub.s32 %v4615, %v4617
    %v4619 = vrot.slane %v4609, %v4618
    %v4621 = vunpack.c.l.s4 1966171168
    %v4622 = vunpack.c.0.s8 %v4621
    %v4623 = vlaneseq
    %v4624 = vshrl.u32 %v4623, 7
    %v4625 = vsub.s32 %v4622, %v4624
    %v4626 = vrot.slane %v4610, %v4625
    %v4628 = vunpack.c.l.s4 1966171168
    %v4629 = vunpack.c.0.s8 %v4628
    %v4630 = vlaneseq
    %v4631 = vshrl.u32 %v4630, 7
    %v4632 = vsub.s32 %v4629, %v4631
    %v4633 = vrot.slane %v4611, %v4632
    %v4635 = vunpack.c.l.s4 1966171168
    %v4636 = vunpack.c.0.s8 %v4635
    %v4637 = vlaneseq
    %v4638 = vshrl.u32 %v4637, 7
    %v4639 = vsub.s32 %v4636, %v4638
    %v4640 = vrot.slane %v4612, %v4639
    %v4641 = vcombine.low %v4619, %v4626
    %v4642 = vcombine.low %v4633, %v4640
    %v4644 = vunpack.c.l.s4 1966171168
    %v4645 = vunpack.c.0.s8 %v4644
    %v4646 = vlaneseq
    %v4647 = vshrl.u32 %v4646, 7
    %v4648 = vsub.s32 %v4645, %v4647
    %v4649 = vrot.slane %v4641, %v4648
    %v4651 = vunpack.c.l.s4 1966171168
    %v4652 = vunpack.c.0.s8 %v4651
    %v4653 = vlaneseq
    %v4654 = vshrl.u32 %v4653, 7
    %v4655 = vsub.s32 %v4652, %v4654
    %v4656 = vrot.slane %v4642, %v4655
    %v4657 = vcombine.low %v4649, %v4656
    %v4658 = vcombine.low %v3113, %v3127
    %v4659 = vcombine.low %v3135, %v3137
    %v4660 = vcombine.low %v3120, %v3134
    %v4661 = vcombine.low %v3136, %v3138
    %v4663 = vunpack.c.l.s4 1966171168
    %v4664 = vunpack.c.0.s8 %v4663
    %v4665 = vlaneseq
    %v4666 = vshrl.u32 %v4665, 7
    %v4667 = vsub.s32 %v4664, %v4666
    %v4668 = vrot.slane %v4658, %v4667
    %v4670 = vunpack.c.l.s4 1966171168
    %v4671 = vunpack.c.0.s8 %v4670
    %v4672 = vlaneseq
    %v4673 = vshrl.u32 %v4672, 7
    %v4674 = vsub.s32 %v4671, %v4673
    %v4675 = vrot.slane %v4659, %v4674
    %v4677 = vunpack.c.l.s4 1966171168
    %v4678 = vunpack.c.0.s8 %v4677
    %v4679 = vlaneseq
    %v4680 = vshrl.u32 %v4679, 7
    %v4681 = vsub.s32 %v4678, %v4680
    %v4682 = vrot.slane %v4660, %v4681
    %v4684 = vunpack.c.l.s4 1966171168
    %v4685 = vunpack.c.0.s8 %v4684
    %v4686 = vlaneseq
    %v4687 = vshrl.u32 %v4686, 7
    %v4688 = vsub.s32 %v4685, %v4687
    %v4689 = vrot.slane %v4661, %v4688
    %v4690 = vcombine.low %v4668, %v4675
    %v4691 = vcombine.low %v4682, %v4689
    %v4693 = vunpack.c.l.s4 1966171168
    %v4694 = vunpack.c.0.s8 %v4693
    %v4695 = vlaneseq
    %v4696 = vshrl.u32 %v4695, 7
    %v4697 = vsub.s32 %v4694, %v4696
    %v4698 = vrot.slane %v4690, %v4697
    %v4700 = vunpack.c.l.s4 1966171168
    %v4701 = vunpack.c.0.s8 %v4700
    %v4702 = vlaneseq
    %v4703 = vshrl.u32 %v4702, 7
    %v4704 = vsub.s32 %v4701, %v4703
    %v4705 = vrot.slane %v4691, %v4704
    %v4706 = vcombine.low %v4698, %v4705
    %v4707 = vcombine.low %v3162, %v3176
    %v4708 = vcombine.low %v3184, %v3186
    %v4709 = vcombine.low %v3169, %v3183
    %v4710 = vcombine.low %v3185, %v3187
    %v4712 = vunpack.c.l.s4 1966171168
    %v4713 = vunpack.c.0.s8 %v4712
    %v4714 = vlaneseq
    %v4715 = vshrl.u32 %v4714, 7
    %v4716 = vsub.s32 %v4713, %v4715
    %v4717 = vrot.slane %v4707, %v4716
    %v4719 = vunpack.c.l.s4 1966171168
    %v4720 = vunpack.c.0.s8 %v4719
    %v4721 = vlaneseq
    %v4722 = vshrl.u32 %v4721, 7
    %v4723 = vsub.s32 %v4720, %v4722
    %v4724 = vrot.slane %v4708, %v4723
    %v4726 = vunpack.c.l.s4 1966171168
    %v4727 = vunpack.c.0.s8 %v4726
    %v4728 = vlaneseq
    %v4729 = vshrl.u32 %v4728, 7
    %v4730 = vsub.s32 %v4727, %v4729
    %v4731 = vrot.slane %v4709, %v4730
    %v4733 = vunpack.c.l.s4 1966171168
    %v4734 = vunpack.c.0.s8 %v4733
    %v4735 = vlaneseq
    %v4736 = vshrl.u32 %v4735, 7
    %v4737 = vsub.s32 %v4734, %v4736
    %v4738 = vrot.slane %v4710, %v4737
    %v4739 = vcombine.low %v4717, %v4724
    %v4740 = vcombine.low %v4731, %v4738
    %v4742 = vunpack.c.l.s4 1966171168
    %v4743 = vunpack.c.0.s8 %v4742
    %v4744 = vlaneseq
    %v4745 = vshrl.u32 %v4744, 7
    %v4746 = vsub.s32 %v4743, %v4745
    %v4747 = vrot.slane %v4739, %v4746
    %v4749 = vunpack.c.l.s4 1966171168
    %v4750 = vunpack.c.0.s8 %v4749
    %v4751 = vlaneseq
    %v4752 = vshrl.u32 %v4751, 7
    %v4753 = vsub.s32 %v4750, %v4752
    %v4754 = vrot.slane %v4740, %v4753
    %v4755 = vcombine.low %v4747, %v4754
    %v4756 = vcombine.low %v3211, %v3225
    %v4757 = vcombine.low %v3233, %v3235
    %v4758 = vcombine.low %v3218, %v3232
    %v4759 = vcombine.low %v3234, %v3236
    %v4761 = vunpack.c.l.s4 1966171168
    %v4762 = vunpack.c.0.s8 %v4761
    %v4763 = vlaneseq
    %v4764 = vshrl.u32 %v4763, 7
    %v4765 = vsub.s32 %v4762, %v4764
    %v4766 = vrot.slane %v4756, %v4765
    %v4768 = vunpack.c.l.s4 1966171168
    %v4769 = vunpack.c.0.s8 %v4768
    %v4770 = vlaneseq
    %v4771 = vshrl.u32 %v4770, 7
    %v4772 = vsub.s32 %v4769, %v4771
    %v4773 = vrot.slane %v4757, %v4772
    %v4775 = vunpack.c.l.s4 1966171168
    %v4776 = vunpack.c.0.s8 %v4775
    %v4777 = vlaneseq
    %v4778 = vshrl.u32 %v4777, 7
    %v4779 = vsub.s32 %v4776, %v4778
    %v4780 = vrot.slane %v4758, %v4779
    %v4782 = vunpack.c.l.s4 1966171168
    %v4783 = vunpack.c.0.s8 %v4782
    %v4784 = vlaneseq
    %v4785 = vshrl.u32 %v4784, 7
    %v4786 = vsub.s32 %v4783, %v4785
    %v4787 = vrot.slane %v4759, %v4786
    %v4788 = vcombine.low %v4766, %v4773
    %v4789 = vcombine.low %v4780, %v4787
    %v4791 = vunpack.c.l.s4 1966171168
    %v4792 = vunpack.c.0.s8 %v4791
    %v4793 = vlaneseq
    %v4794 = vshrl.u32 %v4793, 7
    %v4795 = vsub.s32 %v4792, %v4794
    %v4796 = vrot.slane %v4788, %v4795
    %v4798 = vunpack.c.l.s4 1966171168
    %v4799 = vunpack.c.0.s8 %v4798
    %v4800 = vlaneseq
    %v4801 = vshrl.u32 %v4800, 7
    %v4802 = vsub.s32 %v4799, %v4801
    %v4803 = vrot.slane %v4789, %v4802
    %v4804 = vcombine.low %v4796, %v4803
    %v4805 = vcombine.low %v3260, %v3274
    %v4806 = vcombine.low %v3282, %v3284
    %v4807 = vcombine.low %v3267, %v3281
    %v4808 = vcombine.low %v3283, %v3285
    %v4810 = vunpack.c.l.s4 1966171168
    %v4811 = vunpack.c.0.s8 %v4810
    %v4812 = vlaneseq
    %v4813 = vshrl.u32 %v4812, 7
    %v4814 = vsub.s32 %v4811, %v4813
    %v4815 = vrot.slane %v4805, %v4814
    %v4817 = vunpack.c.l.s4 1966171168
    %v4818 = vunpack.c.0.s8 %v4817
    %v4819 = vlaneseq
    %v4820 = vshrl.u32 %v4819, 7
    %v4821 = vsub.s32 %v4818, %v4820
    %v4822 = vrot.slane %v4806, %v4821
    %v4824 = vunpack.c.l.s4 1966171168
    %v4825 = vunpack.c.0.s8 %v4824
    %v4826 = vlaneseq
    %v4827 = vshrl.u32 %v4826, 7
    %v4828 = vsub.s32 %v4825, %v4827
    %v4829 = vrot.slane %v4807, %v4828
    %v4831 = vunpack.c.l.s4 1966171168
    %v4832 = vunpack.c.0.s8 %v4831
    %v4833 = vlaneseq
    %v4834 = vshrl.u32 %v4833, 7
    %v4835 = vsub.s32 %v4832, %v4834
    %v4836 = vrot.slane %v4808, %v4835
    %v4837 = vcombine.low %v4815, %v4822
    %v4838 = vcombine.low %v4829, %v4836
    %v4840 = vunpack.c.l.s4 1966171168
    %v4841 = vunpack.c.0.s8 %v4840
    %v4842 = vlaneseq
    %v4843 = vshrl.u32 %v4842, 7
    %v4844 = vsub.s32 %v4841, %v4843
    %v4845 = vrot.slane %v4837, %v4844
    %v4847 = vunpack.c.l.s4 1966171168
    %v4848 = vunpack.c.0.s8 %v4847
    %v4849 = vlaneseq
    %v4850 = vshrl.u32 %v4849, 7
    %v4851 = vsub.s32 %v4848, %v4850
    %v4852 = vrot.slane %v4838, %v4851
    %v4853 = vcombine.low %v4845, %v4852
    %v4854 = vcombine.low %v3309, %v3323
    %v4855 = vcombine.low %v3331, %v3333
    %v4856 = vcombine.low %v3316, %v3330
    %v4857 = vcombine.low %v3332, %v3334
    %v4859 = vunpack.c.l.s4 1966171168
    %v4860 = vunpack.c.0.s8 %v4859
    %v4861 = vlaneseq
    %v4862 = vshrl.u32 %v4861, 7
    %v4863 = vsub.s32 %v4860, %v4862
    %v4864 = vrot.slane %v4854, %v4863
    %v4866 = vunpack.c.l.s4 1966171168
    %v4867 = vunpack.c.0.s8 %v4866
    %v4868 = vlaneseq
    %v4869 = vshrl.u32 %v4868, 7
    %v4870 = vsub.s32 %v4867, %v4869
    %v4871 = vrot.slane %v4855, %v4870
    %v4873 = vunpack.c.l.s4 1966171168
    %v4874 = vunpack.c.0.s8 %v4873
    %v4875 = vlaneseq
    %v4876 = vshrl.u32 %v4875, 7
    %v4877 = vsub.s32 %v4874, %v4876
    %v4878 = vrot.slane %v4856, %v4877
    %v4880 = vunpack.c.l.s4 1966171168
    %v4881 = vunpack.c.0.s8 %v4880
    %v4882 = vlaneseq
    %v4883 = vshrl.u32 %v4882, 7
    %v4884 = vsub.s32 %v4881, %v4883
    %v4885 = vrot.slane %v4857, %v4884
    %v4886 = vcombine.low %v4864, %v4871
    %v4887 = vcombine.low %v4878, %v4885
    %v4889 = vunpack.c.l.s4 1966171168
    %v4890 = vunpack.c.0.s8 %v4889
    %v4891 = vlaneseq
    %v4892 = vshrl.u32 %v4891, 7
    %v4893 = vsub.s32 %v4890, %v4892
    %v4894 = vrot.slane %v4886, %v4893
    %v4896 = vunpack.c.l.s4 1966171168
    %v4897 = vunpack.c.0.s8 %v4896
    %v4898 = vlaneseq
    %v4899 = vshrl.u32 %v4898, 7
    %v4900 = vsub.s32 %v4897, %v4899
    %v4901 = vrot.slane %v4887, %v4900
    %v4902 = vcombine.low %v4894, %v4901
    %v4903 = vcombine.low %v3358, %v3372
    %v4904 = vcombine.low %v3380, %v3382
    %v4905 = vcombine.low %v3365, %v3379
    %v4906 = vcombine.low %v3381, %v3383
    %v4908 = vunpack.c.l.s4 1966171168
    %v4909 = vunpack.c.0.s8 %v4908
    %v4910 = vlaneseq
    %v4911 = vshrl.u32 %v4910, 7
    %v4912 = vsub.s32 %v4909, %v4911
    %v4913 = vrot.slane %v4903, %v4912
    %v4915 = vunpack.c.l.s4 1966171168
    %v4916 = vunpack.c.0.s8 %v4915
    %v4917 = vlaneseq
    %v4918 = vshrl.u32 %v4917, 7
    %v4919 = vsub.s32 %v4916, %v4918
    %v4920 = vrot.slane %v4904, %v4919
    %v4922 = vunpack.c.l.s4 1966171168
    %v4923 = vunpack.c.0.s8 %v4922
    %v4924 = vlaneseq
    %v4925 = vshrl.u32 %v4924, 7
    %v4926 = vsub.s32 %v4923, %v4925
    %v4927 = vrot.slane %v4905, %v4926
    %v4929 = vunpack.c.l.s4 1966171168
    %v4930 = vunpack.c.0.s8 %v4929
    %v4931 = vlaneseq
    %v4932 = vshrl.u32 %v4931, 7
    %v4933 = vsub.s32 %v4930, %v4932
    %v4934 = vrot.slane %v4906, %v4933
    %v4935 = vcombine.low %v4913, %v4920
    %v4936 = vcombine.low %v4927, %v4934
    %v4938 = vunpack.c.l.s4 1966171168
    %v4939 = vunpack.c.0.s8 %v4938
    %v4940 = vlaneseq
    %v4941 = vshrl.u32 %v4940, 7
    %v4942 = vsub.s32 %v4939, %v4941
    %v4943 = vrot.slane %v4935, %v4942
    %v4945 = vunpack.c.l.s4 1966171168
    %v4946 = vunpack.c.0.s8 %v4945
    %v4947 = vlaneseq
    %v4948 = vshrl.u32 %v4947, 7
    %v4949 = vsub.s32 %v4946, %v4948
    %v4950 = vrot.slane %v4936, %v4949
    %v4951 = vcombine.low %v4943, %v4950
    %v4952 = vcombine.low %v3407, %v3421
    %v4953 = vcombine.low %v3429, %v3431
    %v4954 = vcombine.low %v3414, %v3428
    %v4955 = vcombine.low %v3430, %v3432
    %v4957 = vunpack.c.l.s4 1966171168
    %v4958 = vunpack.c.0.s8 %v4957
    %v4959 = vlaneseq
    %v4960 = vshrl.u32 %v4959, 7
    %v4961 = vsub.s32 %v4958, %v4960
    %v4962 = vrot.slane %v4952, %v4961
    %v4964 = vunpack.c.l.s4 1966171168
    %v4965 = vunpack.c.0.s8 %v4964
    %v4966 = vlaneseq
    %v4967 = vshrl.u32 %v4966, 7
    %v4968 = vsub.s32 %v4965, %v4967
    %v4969 = vrot.slane %v4953, %v4968
    %v4971 = vunpack.c.l.s4 1966171168
    %v4972 = vunpack.c.0.s8 %v4971
    %v4973 = vlaneseq
    %v4974 = vshrl.u32 %v4973, 7
    %v4975 = vsub.s32 %v4972, %v4974
    %v4976 = vrot.slane %v4954, %v4975
    %v4978 = vunpack.c.l.s4 1966171168
    %v4979 = vunpack.c.0.s8 %v4978
    %v4980 = vlaneseq
    %v4981 = vshrl.u32 %v4980, 7
    %v4982 = vsub.s32 %v4979, %v4981
    %v4983 = vrot.slane %v4955, %v4982
    %v4984 = vcombine.low %v4962, %v4969
    %v4985 = vcombine.low %v4976, %v4983
    %v4987 = vunpack.c.l.s4 1966171168
    %v4988 = vunpack.c.0.s8 %v4987
    %v4989 = vlaneseq
    %v4990 = vshrl.u32 %v4989, 7
    %v4991 = vsub.s32 %v4988, %v4990
    %v4992 = vrot.slane %v4984, %v4991
    %v4994 = vunpack.c.l.s4 1966171168
    %v4995 = vunpack.c.0.s8 %v4994
    %v4996 = vlaneseq
    %v4997 = vshrl.u32 %v4996, 7
    %v4998 = vsub.s32 %v4995, %v4997
    %v4999 = vrot.slane %v4985, %v4998
    %v5000 = vcombine.low %v4992, %v4999
    %5001 = vset.pattern.permute.xlu0 0
    %5002 = vperm.xlu0 %5001, %v3481
    %v5003 = vpop.permute.xlu0 %5002
    %5004 = vset.pattern.permute.xlu0 0
    %5005 = vperm.xlu0 %5004, %v3530
    %v5006 = vpop.permute.xlu0 %5005
    %5007 = vset.pattern.permute.xlu0 0
    %5008 = vperm.xlu0 %5007, %v3579
    %v5009 = vpop.permute.xlu0 %5008
    %5010 = vset.pattern.permute.xlu0 0
    %5011 = vperm.xlu0 %5010, %v3628
    %v5012 = vpop.permute.xlu0 %5011
    %5013 = vset.pattern.permute.xlu0 0
    %5014 = vperm.xlu0 %5013, %v3677
    %v5015 = vpop.permute.xlu0 %5014
    %5016 = vset.pattern.permute.xlu0 0
    %5017 = vperm.xlu0 %5016, %v3726
    %v5018 = vpop.permute.xlu0 %5017
    %5019 = vset.pattern.permute.xlu0 0
    %5020 = vperm.xlu0 %5019, %v3775
    %v5021 = vpop.permute.xlu0 %5020
    %5022 = vset.pattern.permute.xlu0 0
    %5023 = vperm.xlu0 %5022, %v3824
    %v5024 = vpop.permute.xlu0 %5023
    %5025 = vset.pattern.permute.xlu0 0
    %5026 = vperm.xlu0 %5025, %v3873
    %v5027 = vpop.permute.xlu0 %5026
    %5028 = vset.pattern.permute.xlu0 0
    %5029 = vperm.xlu0 %5028, %v3922
    %v5030 = vpop.permute.xlu0 %5029
    %5031 = vset.pattern.permute.xlu0 0
    %5032 = vperm.xlu0 %5031, %v3971
    %v5033 = vpop.permute.xlu0 %5032
    %5034 = vset.pattern.permute.xlu0 0
    %5035 = vperm.xlu0 %5034, %v4020
    %v5036 = vpop.permute.xlu0 %5035
    %5037 = vset.pattern.permute.xlu0 0
    %5038 = vperm.xlu0 %5037, %v4069
    %v5039 = vpop.permute.xlu0 %5038
    %5040 = vset.pattern.permute.xlu0 0
    %5041 = vperm.xlu0 %5040, %v4118
    %v5042 = vpop.permute.xlu0 %5041
    %5043 = vset.pattern.permute.xlu0 0
    %5044 = vperm.xlu0 %5043, %v4167
    %v5045 = vpop.permute.xlu0 %5044
    %5046 = vset.pattern.permute.xlu0 0
    %5047 = vperm.xlu0 %5046, %v4216
    %v5048 = vpop.permute.xlu0 %5047
    %5049 = vset.pattern.permute.xlu0 0
    %5050 = vperm.xlu0 %5049, %v4265
    %v5051 = vpop.permute.xlu0 %5050
    %5052 = vset.pattern.permute.xlu0 0
    %5053 = vperm.xlu0 %5052, %v4314
    %v5054 = vpop.permute.xlu0 %5053
    %5055 = vset.pattern.permute.xlu0 0
    %5056 = vperm.xlu0 %5055, %v4363
    %v5057 = vpop.permute.xlu0 %5056
    %5058 = vset.pattern.permute.xlu0 0
    %5059 = vperm.xlu0 %5058, %v4412
    %v5060 = vpop.permute.xlu0 %5059
    %5061 = vset.pattern.permute.xlu0 0
    %5062 = vperm.xlu0 %5061, %v4461
    %v5063 = vpop.permute.xlu0 %5062
    %5064 = vset.pattern.permute.xlu0 0
    %5065 = vperm.xlu0 %5064, %v4510
    %v5066 = vpop.permute.xlu0 %5065
    %5067 = vset.pattern.permute.xlu0 0
    %5068 = vperm.xlu0 %5067, %v4559
    %v5069 = vpop.permute.xlu0 %5068
    %5070 = vset.pattern.permute.xlu0 0
    %5071 = vperm.xlu0 %5070, %v4608
    %v5072 = vpop.permute.xlu0 %5071
    %5073 = vset.pattern.permute.xlu0 0
    %5074 = vperm.xlu0 %5073, %v4657
    %v5075 = vpop.permute.xlu0 %5074
    %5076 = vset.pattern.permute.xlu0 0
    %5077 = vperm.xlu0 %5076, %v4706
    %v5078 = vpop.permute.xlu0 %5077
    %5079 = vset.pattern.permute.xlu0 0
    %5080 = vperm.xlu0 %5079, %v4755
    %v5081 = vpop.permute.xlu0 %5080
    %5082 = vset.pattern.permute.xlu0 0
    %5083 = vperm.xlu0 %5082, %v4804
    %v5084 = vpop.permute.xlu0 %5083
    %5085 = vset.pattern.permute.xlu0 0
    %5086 = vperm.xlu0 %5085, %v4853
    %v5087 = vpop.permute.xlu0 %5086
    %5088 = vset.pattern.permute.xlu0 0
    %5089 = vperm.xlu0 %5088, %v4902
    %v5090 = vpop.permute.xlu0 %5089
    %5091 = vset.pattern.permute.xlu0 0
    %5092 = vperm.xlu0 %5091, %v4951
    %v5093 = vpop.permute.xlu0 %5092
    %5094 = vset.pattern.permute.xlu0 0
    %5095 = vperm.xlu0 %5094, %v5000
    %v5096 = vpop.permute.xlu0 %5095
    %v5097 = vlaneseq
    %v5098 = vshrl.u32 %v5097, 7
    %v5099 = vsub.s32 %v892, %v5098
    %v5100 = vrot.slane %v5003, %v5099
    %v5101 = vadd.s32 %v892, 4294967288
    %v5102 = vlaneseq
    %v5103 = vshrl.u32 %v5102, 7
    %v5104 = vsub.s32 %v5101, %v5103
    %v5105 = vrot.slane %v5006, %v5104
    %vm5106 = vcmask 130112
    %v5107 = vsel %vm5106, %v5105, %v5100
    %v5108 = vadd.s32 %v892, 4294967280
    %v5109 = vlaneseq
    %v5110 = vshrl.u32 %v5109, 7
    %v5111 = vsub.s32 %v5108, %v5110
    %v5112 = vrot.slane %v5009, %v5111
    %vm5113 = vcmask 195712
    %v5114 = vsel %vm5113, %v5112, %v5107
    %v5115 = vadd.s32 %v892, 4294967272
    %v5116 = vlaneseq
    %v5117 = vshrl.u32 %v5116, 7
    %v5118 = vsub.s32 %v5115, %v5117
    %v5119 = vrot.slane %v5012, %v5118
    %vm5120 = vcmask 261312
    %v5121 = vsel %vm5120, %v5119, %v5114
    %v5122 = vadd.s32 %v892, 4294967264
    %v5123 = vlaneseq
    %v5124 = vshrl.u32 %v5123, 7
    %v5125 = vsub.s32 %v5122, %v5124
    %v5126 = vrot.slane %v5015, %v5125
    %vm5127 = vcmask 326912
    %v5128 = vsel %vm5127, %v5126, %v5121
    %v5129 = vadd.s32 %v892, 4294967256
    %v5130 = vlaneseq
    %v5131 = vshrl.u32 %v5130, 7
    %v5132 = vsub.s32 %v5129, %v5131
    %v5133 = vrot.slane %v5018, %v5132
    %vm5134 = vcmask 392512
    %v5135 = vsel %vm5134, %v5133, %v5128
    %v5136 = vadd.s32 %v892, 4294967248
    %v5137 = vlaneseq
    %v5138 = vshrl.u32 %v5137, 7
    %v5139 = vsub.s32 %v5136, %v5138
    %v5140 = vrot.slane %v5021, %v5139
    %vm5141 = vcmask 458112
    %v5142 = vsel %vm5141, %v5140, %v5135
    %v5143 = vadd.s32 %v892, 4294967240
    %v5144 = vlaneseq
    %v5145 = vshrl.u32 %v5144, 7
    %v5146 = vsub.s32 %v5143, %v5145
    %v5147 = vrot.slane %v5024, %v5146
    %vm5148 = vcmask 523712
    %v5149 = vsel %vm5148, %v5147, %v5142
    %v5150 = vadd.s32 %v892, 4294967232
    %v5151 = vlaneseq
    %v5152 = vshrl.u32 %v5151, 7
    %v5153 = vsub.s32 %v5150, %v5152
    %v5154 = vrot.slane %v5027, %v5153
    %vm5155 = vcmask 589312
    %v5156 = vsel %vm5155, %v5154, %v5149
    %v5157 = vadd.s32 %v892, 4294967224
    %v5158 = vlaneseq
    %v5159 = vshrl.u32 %v5158, 7
    %v5160 = vsub.s32 %v5157, %v5159
    %v5161 = vrot.slane %v5030, %v5160
    %vm5162 = vcmask 654912
    %v5163 = vsel %vm5162, %v5161, %v5156
    %v5164 = vadd.s32 %v892, 4294967216
    %v5165 = vlaneseq
    %v5166 = vshrl.u32 %v5165, 7
    %v5167 = vsub.s32 %v5164, %v5166
    %v5168 = vrot.slane %v5033, %v5167
    %vm5169 = vcmask 720512
    %v5170 = vsel %vm5169, %v5168, %v5163
    %v5171 = vadd.s32 %v892, 4294967208
    %v5172 = vlaneseq
    %v5173 = vshrl.u32 %v5172, 7
    %v5174 = vsub.s32 %v5171, %v5173
    %v5175 = vrot.slane %v5036, %v5174
    %vm5176 = vcmask 786112
    %v5177 = vsel %vm5176, %v5175, %v5170
    %v5178 = vadd.s32 %v892, 4294967200
    %v5179 = vlaneseq
    %v5180 = vshrl.u32 %v5179, 7
    %v5181 = vsub.s32 %v5178, %v5180
    %v5182 = vrot.slane %v5039, %v5181
    %vm5183 = vcmask 851712
    %v5184 = vsel %vm5183, %v5182, %v5177
    %v5185 = vadd.s32 %v892, 4294967192
    %v5186 = vlaneseq
    %v5187 = vshrl.u32 %v5186, 7
    %v5188 = vsub.s32 %v5185, %v5187
    %v5189 = vrot.slane %v5042, %v5188
    %vm5190 = vcmask 917312
    %v5191 = vsel %vm5190, %v5189, %v5184
    %v5192 = vadd.s32 %v892, 4294967184
    %v5193 = vlaneseq
    %v5194 = vshrl.u32 %v5193, 7
    %v5195 = vsub.s32 %v5192, %v5194
    %v5196 = vrot.slane %v5045, %v5195
    %vm5197 = vcmask 982912
    %v5198 = vsel %vm5197, %v5196, %v5191
    %v5199 = vadd.s32 %v892, 4294967176
    %v5200 = vlaneseq
    %v5201 = vshrl.u32 %v5200, 7
    %v5202 = vsub.s32 %v5199, %v5201
    %v5203 = vrot.slane %v5048, %v5202
    %vm5204 = vcmask 1048512
    %v5205 = vsel %vm5204, %v5203, %v5198
    %v5206 = vlaneseq
    %v5207 = vshrl.u32 %v5206, 7
    %v5208 = vsub.s32 %v892, %v5207
    %v5209 = vrot.slane %v5051, %v5208
    %v5210 = vlaneseq
    %v5211 = vshrl.u32 %v5210, 7
    %v5212 = vsub.s32 %v5101, %v5211
    %v5213 = vrot.slane %v5054, %v5212
    %v5214 = vsel %vm5106, %v5213, %v5209
    %v5215 = vlaneseq
    %v5216 = vshrl.u32 %v5215, 7
    %v5217 = vsub.s32 %v5108, %v5216
    %v5218 = vrot.slane %v5057, %v5217
    %v5219 = vsel %vm5113, %v5218, %v5214
    %v5220 = vlaneseq
    %v5221 = vshrl.u32 %v5220, 7
    %v5222 = vsub.s32 %v5115, %v5221
    %v5223 = vrot.slane %v5060, %v5222
    %v5224 = vsel %vm5120, %v5223, %v5219
    %v5225 = vlaneseq
    %v5226 = vshrl.u32 %v5225, 7
    %v5227 = vsub.s32 %v5122, %v5226
    %v5228 = vrot.slane %v5063, %v5227
    %v5229 = vsel %vm5127, %v5228, %v5224
    %v5230 = vlaneseq
    %v5231 = vshrl.u32 %v5230, 7
    %v5232 = vsub.s32 %v5129, %v5231
    %v5233 = vrot.slane %v5066, %v5232
    %v5234 = vsel %vm5134, %v5233, %v5229
    %v5235 = vlaneseq
    %v5236 = vshrl.u32 %v5235, 7
    %v5237 = vsub.s32 %v5136, %v5236
    %v5238 = vrot.slane %v5069, %v5237
    %v5239 = vsel %vm5141, %v5238, %v5234
    %v5240 = vlaneseq
    %v5241 = vshrl.u32 %v5240, 7
    %v5242 = vsub.s32 %v5143, %v5241
    %v5243 = vrot.slane %v5072, %v5242
    %v5244 = vsel %vm5148, %v5243, %v5239
    %v5245 = vlaneseq
    %v5246 = vshrl.u32 %v5245, 7
    %v5247 = vsub.s32 %v5150, %v5246
    %v5248 = vrot.slane %v5075, %v5247
    %v5249 = vsel %vm5155, %v5248, %v5244
    %v5250 = vlaneseq
    %v5251 = vshrl.u32 %v5250, 7
    %v5252 = vsub.s32 %v5157, %v5251
    %v5253 = vrot.slane %v5078, %v5252
    %v5254 = vsel %vm5162, %v5253, %v5249
    %v5255 = vlaneseq
    %v5256 = vshrl.u32 %v5255, 7
    %v5257 = vsub.s32 %v5164, %v5256
    %v5258 = vrot.slane %v5081, %v5257
    %v5259 = vsel %vm5169, %v5258, %v5254
    %v5260 = vlaneseq
    %v5261 = vshrl.u32 %v5260, 7
    %v5262 = vsub.s32 %v5171, %v5261
    %v5263 = vrot.slane %v5084, %v5262
    %v5264 = vsel %vm5176, %v5263, %v5259
    %v5265 = vlaneseq
    %v5266 = vshrl.u32 %v5265, 7
    %v5267 = vsub.s32 %v5178, %v5266
    %v5268 = vrot.slane %v5087, %v5267
    %v5269 = vsel %vm5183, %v5268, %v5264
    %v5270 = vlaneseq
    %v5271 = vshrl.u32 %v5270, 7
    %v5272 = vsub.s32 %v5185, %v5271
    %v5273 = vrot.slane %v5090, %v5272
    %v5274 = vsel %vm5190, %v5273, %v5269
    %v5275 = vlaneseq
    %v5276 = vshrl.u32 %v5275, 7
    %v5277 = vsub.s32 %v5192, %v5276
    %v5278 = vrot.slane %v5093, %v5277
    %v5279 = vsel %vm5197, %v5278, %v5274
    %v5280 = vlaneseq
    %v5281 = vshrl.u32 %v5280, 7
    %v5282 = vsub.s32 %v5199, %v5281
    %v5283 = vrot.slane %v5096, %v5282
    %v5284 = vsel %vm5204, %v5283, %v5279
    %v5285 = vcombine.low %v5205, %v5284
    %v5287 = vunpack.c.l.s4 1966171168
    %v5288 = vunpack.c.0.s8 %v5287
    %v5289 = vlaneseq
    %v5290 = vshrl.u32 %v5289, 7
    %v5291 = vsub.s32 %v5288, %v5290
    %v5292 = vrot.slane %v5285, %v5291
    %v5294 = vunpack.c.l.s4 1966171168
    %v5295 = vunpack.c.0.s8 %v5294
    %v5296 = vlaneseq
    %v5297 = vshrl.u32 %v5296, 7
    %v5298 = vsub.s32 %v5295, %v5297
    %v5299 = vrot.slane %v5292, %v5298
    %v5301 = vlaneseq
    %vm5302 = vcmp.ge.s32.totalorder %v5301, 0
    %vm5303 = vcmp.lt.s32.totalorder %v5301, 256
    %vm5304 = vmand %vm5302, %vm5303
    %5305 = vst.msk [vmem:[#allocation10] sm:$0x3] %vm5304, %v5299
    // Predicated region
    $region42: #{tpu_custom_call.1} parent=1 // pred_check
      _
    $region43: #{tpu_custom_call.1} parent=1 // pred_check_branch
      %5307 = sbr.rel (0) target = $region45
    $region44: #{tpu_custom_call.1} parent=1 // pred_region
      %s5309 = ssub.s32 32, 32
      %5310 = vsyncadd [#allocation4], %s5309
      %s5312 = sshll.u32 [#allocation10], 4
      %s5313 = int_to_ptr.vmem [resolvable:$true] %s5312
      %5315 = dma.vmem_to_hbm [thread:$0]  %s5313, 32, %s6, [#allocation4]
    $region45: #{tpu_custom_call.1} parent=1 // pred_fallthru
      _
    // Predicated region
    $region46: #{tpu_custom_call.1} parent=1 // pred_check
      _
    $region47: #{tpu_custom_call.1} parent=1 // pred_check_branch
      %5317 = sbr.rel (0) target = $region49
    $region48: #{tpu_custom_call.1} parent=1 // pred_region
      %5318 = dma.done [#allocation4], 32
    $region49: #{tpu_custom_call.1} parent=1 // pred_fallthru
      _
    %5319 = vsyncpa [#allocation3], 1
    %5320 = vsyncpa [#allocation6], 1
    %5321 = vsyncpa [#allocation9], 1
    %5322 = vsyncpa [#allocation4], 1

</llo_original>
